<compile_context>
chip_gen: v7x
topology: tpu7x:2x2x1
jax: 0.10.0
libtpu: 0.0.40
codegen_flags: <defaults>
</compile_context>

<pallas_src>
import functools

import jax
import jax.numpy as jnp
from jax import lax
from jax.experimental import pallas as pl
from jax.experimental.pallas import tpu as pltpu

EPS = 1e-3    # BatchNorm2d eps=0.001
LANE = 128


# ----------------------- Pallas kernels -----------------------

def _make_conv_stats_kernel(KH, KW, OH, OW, stride):
    """Conv (as KH*KW shifted matmuls) + per-channel sum / sum^2 partials."""
    OHW = OH * OW

    def kernel(x_ref, w_ref, y_ref, sum_ref, sq_ref):
        # x_ref:   (1, Hp, Wp, C)   spatially padded NHWC input for one image
        # w_ref:   (KH*KW, C, OCp)  weights, tap-major, channels-last, OC padded to lanes
        # y_ref:   (1, OHW, OCp)    conv output (doubles as the f32 accumulator)
        # sum_ref: (1, 1, OCp)      per-image channel sum
        # sq_ref:  (1, 1, OCp)      per-image channel sum of squares
        for kh in range(KH):
            for kw in range(KW):
                if stride == 1:
                    xs = x_ref[0, kh:kh + OH, kw:kw + OW, :]
                else:
                    xs = x_ref[0,
                               kh:kh + (OH - 1) * stride + 1,
                               kw:kw + (OW - 1) * stride + 1, :]
                    xs = xs[::stride, ::stride, :]
                xs = xs.reshape(OHW, xs.shape[-1])
                contrib = jnp.dot(xs, w_ref[kh * KW + kw],
                                  preferred_element_type=jnp.float32)
                if kh == 0 and kw == 0:
                    y_ref[0] = contrib          # first tap: write (no zero-init pass)
                else:
                    y_ref[0] += contrib         # later taps: accumulate in VMEM

        # per-image BN statistics partials (fused: y is still resident in VMEM)
        yv = y_ref[0]
        sum_ref[0] = jnp.sum(yv, axis=0, keepdims=True)
        sq_ref[0] = jnp.sum(yv * yv, axis=0, keepdims=True)

    return kernel


def _bn_relu_kernel(y_ref, scale_ref, shift_ref, o_ref):
    # fused BatchNorm scale/shift + ReLU (output aliased onto y -> in place)
    o_ref[0] = jnp.maximum(y_ref[0] * scale_ref[...] + shift_ref[...], 0.0)


# ----------------------- wrapper -----------------------

def basic_conv2d(x, weight, gamma, beta, *, stride=1, padding=0):
    """x: (N, C, H, W) f32; weight: (OC, C, KH, KW); gamma/beta: (OC,)."""
    N, C, H, W = x.shape
    OC, _, KH, KW = weight.shape
    OH = (H + 2 * padding - KH) // stride + 1
    OW = (W + 2 * padding - KW) // stride + 1
    OHW = OH * OW
    M = N * OHW
    OCp = ((OC + LANE - 1) // LANE) * LANE       # lane-dense output channels

    # ---- glue: NHWC + spatial zero-pad only (no im2col expansion) ----
    x_nhwc = jnp.transpose(x, (0, 2, 3, 1)).astype(jnp.float32)
    xp = jnp.pad(x_nhwc, ((0, 0), (padding, padding), (padding, padding), (0, 0)))
    Hp, Wp = H + 2 * padding, W + 2 * padding

    # PyTorch weight (OC, C, KH, KW) -> (KH*KW, C, OCp), zero-padded channels
    w = jnp.transpose(weight, (2, 3, 1, 0)).reshape(KH * KW, C, OC).astype(jnp.float32)
    w = jnp.pad(w, ((0, 0), (0, 0), (0, OCp - OC)))

    cost = pl.CostEstimate(
        flops=2 * M * C * OC * KH * KW,
        transcendentals=0,
        bytes_accessed=4 * (xp.size + w.size + M * OCp),
    )

    # ---- Pallas kernel 1: conv (shifted-matmul accumulation) + BN stats partials ----
    y, s_sum, s_sq = pl.pallas_call(
        _make_conv_stats_kernel(KH, KW, OH, OW, stride),
        out_shape=(jax.ShapeDtypeStruct((N, OHW, OCp), jnp.float32),
                   jax.ShapeDtypeStruct((N, 1, OCp), jnp.float32),
                   jax.ShapeDtypeStruct((N, 1, OCp), jnp.float32)),
        grid_spec=pltpu.PrefetchScalarGridSpec(
            num_scalar_prefetch=0,
            grid=(N,),
            in_specs=[pl.BlockSpec((1, Hp, Wp, C), lambda n: (n, 0, 0, 0)),
                      pl.BlockSpec((KH * KW, C, OCp), lambda n: (0, 0, 0))],
            out_specs=(pl.BlockSpec((1, OHW, OCp), lambda n: (n, 0, 0)),
                       pl.BlockSpec((1, 1, OCp), lambda n: (n, 0, 0)),
                       pl.BlockSpec((1, 1, OCp), lambda n: (n, 0, 0))),
        ),
        compiler_params=pltpu.CompilerParams(dimension_semantics=("parallel",)),
        cost_estimate=cost,
    )(xp, w)

    # ---- training-mode BatchNorm statistics (biased variance), tiny reduction over N ----
    ch_sum = jnp.sum(s_sum, axis=0)              # (1, OCp)
    ch_sq = jnp.sum(s_sq, axis=0)                # (1, OCp)
    mean = ch_sum / M
    var = jnp.maximum(ch_sq / M - mean * mean, 0.0)   # biased variance (clamped for rounding)
    inv_std = lax.rsqrt(var + EPS)
    gamma_p = jnp.pad(gamma.astype(jnp.float32), (0, OCp - OC)).reshape(1, OCp)
    beta_p = jnp.pad(beta.astype(jnp.float32), (0, OCp - OC)).reshape(1, OCp)
    scale = gamma_p * inv_std
    shift = beta_p - mean * scale

    # ---- Pallas kernel 2: fused BN affine + ReLU, written in place over y ----
    out = pl.pallas_call(
        _bn_relu_kernel,
        out_shape=jax.ShapeDtypeStruct((N, OHW, OCp), jnp.float32),
        grid_spec=pltpu.PrefetchScalarGridSpec(
            num_scalar_prefetch=0,
            grid=(N,),
            in_specs=[pl.BlockSpec((1, OHW, OCp), lambda n: (n, 0, 0)),
                      pl.BlockSpec((1, OCp), lambda n: (0, 0)),
                      pl.BlockSpec((1, OCp), lambda n: (0, 0))],
            out_specs=pl.BlockSpec((1, OHW, OCp), lambda n: (n, 0, 0)),
        ),
        compiler_params=pltpu.CompilerParams(dimension_semantics=("parallel",)),
        input_output_aliases={0: 0},
    )(y, scale, shift)

    out = out[:, :, :OC].reshape(N, OH, OW, OC)
    return jnp.transpose(out, (0, 3, 1, 2))      # back to NCHW (module interface)


# ----------------------- pure-JAX reference (for verification) -----------------------

def reference(x, weight, gamma, beta, stride, padding):
    y = lax.conv_general_dilated(
        x, weight, (stride, stride),
        [(padding, padding), (padding, padding)],
        dimension_numbers=("NCHW", "OIHW", "NCHW"))
    mean = y.mean(axis=(0, 2, 3), keepdims=True)
    var = y.var(axis=(0, 2, 3), keepdims=True)   # biased, as used for normalization in training
    y = (y - mean) * lax.rsqrt(var + EPS) * gamma.reshape(1, -1, 1, 1) + beta.reshape(1, -1, 1, 1)
    return jnp.maximum(y, 0.0)


if __name__ == "__main__":
    # BasicConv2d(in_planes=4, out_planes=8, kernel_size=3, stride=1, padding=1)
    N, C, H, W = 2, 4, 16, 16
    OC, KH, KW = 8, 3, 3
    stride, padding = 1, 1

    key = jax.random.PRNGKey(0)
    kx, kw = jax.random.split(key)
    x = jax.random.normal(kx, (N, C, H, W), dtype=jnp.float32)
    weight = 0.1 * jax.random.normal(kw, (OC, C, KH, KW), dtype=jnp.float32)
    gamma = jnp.linspace(0.5, 1.5, OC, dtype=jnp.float32)   # BN weight
    beta = jnp.linspace(-0.2, 0.2, OC, dtype=jnp.float32)   # BN bias
    # TODO(synk): running_mean/running_var (eval-mode BN + momentum buffer update) not modeled;
    # the module's default training-mode batch statistics are used, matching forward semantics.

    fn = jax.jit(functools.partial(basic_conv2d, stride=stride, padding=padding))
    out = jax.block_until_ready(fn(x, weight, gamma, beta))

    ref = reference(x, weight, gamma, beta, stride, padding)
    assert out.shape == (N, OC, H, W), out.shape
    assert jnp.allclose(out, ref, atol=1e-4, rtol=1e-4), float(jnp.max(jnp.abs(out - ref)))
    print("KERNEL_OK")
</pallas_src>

<mosaic_0001>
module attributes {stable_mosaic.version = 11 : i64} {
  func.func @kernel(%arg0: i32, %arg1: memref<1x18x18x4xf32, #tpu.memory_space<vmem>>, %arg2: memref<9x4x128xf32, #tpu.memory_space<vmem>>, %arg3: memref<1x256x128xf32, #tpu.memory_space<vmem>>, %arg4: memref<1x1x128xf32, #tpu.memory_space<vmem>>, %arg5: memref<1x1x128xf32, #tpu.memory_space<vmem>>) attributes {dimension_semantics = [#tpu.dimension_semantics<parallel>], iteration_bounds = array<i64: 2>, scalar_prefetch = 0 : i64, scratch_operands = 0 : i64, tpu.core_type = #tpu.core_type<tc>, window_params = [{transform_indices = @transform_0, window_bounds = array<i64: 1, 18, 18, 4>}, {pipeline_mode = #tpu.pipeline_mode<synchronous>, transform_indices = @transform_1, window_bounds = array<i64: 9, 4, 128>}, {transform_indices = @transform_2, window_bounds = array<i64: 1, 256, 128>}, {transform_indices = @transform_3, window_bounds = array<i64: 1, 1, 128>}, {transform_indices = @transform_4, window_bounds = array<i64: 1, 1, 128>}]} {
    %c0 = arith.constant 0 : index
    %c0_0 = arith.constant 0 : index
    %c0_1 = arith.constant 0 : index
    %c0_2 = arith.constant 0 : index
    %0 = vector.load %arg1[%c0, %c0_0, %c0_1, %c0_2] : memref<1x18x18x4xf32, #tpu.memory_space<vmem>>, vector<1x16x16x4xf32>
    %1 = vector.shape_cast %0 : vector<1x16x16x4xf32> to vector<16x16x4xf32>
    %2 = vector.shape_cast %1 : vector<16x16x4xf32> to vector<256x4xf32>
    %c0_3 = arith.constant 0 : index
    %c0_4 = arith.constant 0 : index
    %c0_5 = arith.constant 0 : index
    %3 = vector.load %arg2[%c0_3, %c0_4, %c0_5] : memref<9x4x128xf32, #tpu.memory_space<vmem>>, vector<1x4x128xf32>
    %4 = vector.shape_cast %3 : vector<1x4x128xf32> to vector<4x128xf32>
    %cst = arith.constant dense<0.000000e+00> : vector<256x128xf32>
    %5 = tpu.matmul %2, %4, %cst {dimension_numbers = #tpu.dot_dimension_numbers<[1], [0], [0], [1], [0, 0, 1, 1], [], []>} : vector<256x4xf32>, vector<4x128xf32>, vector<256x128xf32> -> vector<256x128xf32>
    %c0_6 = arith.constant 0 : index
    %c0_7 = arith.constant 0 : index
    %c0_8 = arith.constant 0 : index
    %6 = vector.load %arg3[%c0_6, %c0_7, %c0_8] : memref<1x256x128xf32, #tpu.memory_space<vmem>>, vector<1x256x128xf32>
    %7 = vector.shape_cast %6 : vector<1x256x128xf32> to vector<256x128xf32>
    %8 = vector.shape_cast %5 : vector<256x128xf32> to vector<1x256x128xf32>
    tpu.vector_store %arg3[%c0_6, %c0_7, %c0_8], %8 {strides = array<i32>} : memref<1x256x128xf32, #tpu.memory_space<vmem>>, vector<1x256x128xf32>,
    %c0_9 = arith.constant 0 : index
    %c0_10 = arith.constant 0 : index
    %c1 = arith.constant 1 : index
    %c0_11 = arith.constant 0 : index
    %9 = vector.load %arg1[%c0_9, %c0_10, %c1, %c0_11] : memref<1x18x18x4xf32, #tpu.memory_space<vmem>>, vector<1x16x16x4xf32>
    %10 = vector.shape_cast %9 : vector<1x16x16x4xf32> to vector<16x16x4xf32>
    %11 = vector.shape_cast %10 : vector<16x16x4xf32> to vector<256x4xf32>
    %c1_12 = arith.constant 1 : index
    %c0_13 = arith.constant 0 : index
    %c0_14 = arith.constant 0 : index
    %12 = vector.load %arg2[%c1_12, %c0_13, %c0_14] : memref<9x4x128xf32, #tpu.memory_space<vmem>>, vector<1x4x128xf32>
    %13 = vector.shape_cast %12 : vector<1x4x128xf32> to vector<4x128xf32>
    %cst_15 = arith.constant dense<0.000000e+00> : vector<256x128xf32>
    %14 = tpu.matmul %11, %13, %cst_15 {dimension_numbers = #tpu.dot_dimension_numbers<[1], [0], [0], [1], [0, 0, 1, 1], [], []>} : vector<256x4xf32>, vector<4x128xf32>, vector<256x128xf32> -> vector<256x128xf32>
    %c0_16 = arith.constant 0 : index
    %c0_17 = arith.constant 0 : index
    %c0_18 = arith.constant 0 : index
    %15 = vector.load %arg3[%c0_16, %c0_17, %c0_18] : memref<1x256x128xf32, #tpu.memory_space<vmem>>, vector<1x256x128xf32>
    %16 = vector.shape_cast %15 : vector<1x256x128xf32> to vector<256x128xf32>
    %17 = arith.addf %16, %14 : vector<256x128xf32>
    %c0_19 = arith.constant 0 : index
    %c0_20 = arith.constant 0 : index
    %c0_21 = arith.constant 0 : index
    %18 = vector.load %arg3[%c0_19, %c0_20, %c0_21] : memref<1x256x128xf32, #tpu.memory_space<vmem>>, vector<1x256x128xf32>
    %19 = vector.shape_cast %18 : vector<1x256x128xf32> to vector<256x128xf32>
    %20 = vector.shape_cast %17 : vector<256x128xf32> to vector<1x256x128xf32>
    tpu.vector_store %arg3[%c0_19, %c0_20, %c0_21], %20 {strides = array<i32>} : memref<1x256x128xf32, #tpu.memory_space<vmem>>, vector<1x256x128xf32>,
    %c0_22 = arith.constant 0 : index
    %c0_23 = arith.constant 0 : index
    %c2 = arith.constant 2 : index
    %c0_24 = arith.constant 0 : index
    %21 = vector.load %arg1[%c0_22, %c0_23, %c2, %c0_24] : memref<1x18x18x4xf32, #tpu.memory_space<vmem>>, vector<1x16x16x4xf32>
    %22 = vector.shape_cast %21 : vector<1x16x16x4xf32> to vector<16x16x4xf32>
    %23 = vector.shape_cast %22 : vector<16x16x4xf32> to vector<256x4xf32>
    %c2_25 = arith.constant 2 : index
    %c0_26 = arith.constant 0 : index
    %c0_27 = arith.constant 0 : index
    %24 = vector.load %arg2[%c2_25, %c0_26, %c0_27] : memref<9x4x128xf32, #tpu.memory_space<vmem>>, vector<1x4x128xf32>
    %25 = vector.shape_cast %24 : vector<1x4x128xf32> to vector<4x128xf32>
    %cst_28 = arith.constant dense<0.000000e+00> : vector<256x128xf32>
    %26 = tpu.matmul %23, %25, %cst_28 {dimension_numbers = #tpu.dot_dimension_numbers<[1], [0], [0], [1], [0, 0, 1, 1], [], []>} : vector<256x4xf32>, vector<4x128xf32>, vector<256x128xf32> -> vector<256x128xf32>
    %c0_29 = arith.constant 0 : index
    %c0_30 = arith.constant 0 : index
    %c0_31 = arith.constant 0 : index
    %27 = vector.load %arg3[%c0_29, %c0_30, %c0_31] : memref<1x256x128xf32, #tpu.memory_space<vmem>>, vector<1x256x128xf32>
    %28 = vector.shape_cast %27 : vector<1x256x128xf32> to vector<256x128xf32>
    %29 = arith.addf %28, %26 : vector<256x128xf32>
    %c0_32 = arith.constant 0 : index
    %c0_33 = arith.constant 0 : index
    %c0_34 = arith.constant 0 : index
    %30 = vector.load %arg3[%c0_32, %c0_33, %c0_34] : memref<1x256x128xf32, #tpu.memory_space<vmem>>, vector<1x256x128xf32>
    %31 = vector.shape_cast %30 : vector<1x256x128xf32> to vector<256x128xf32>
    %32 = vector.shape_cast %29 : vector<256x128xf32> to vector<1x256x128xf32>
    tpu.vector_store %arg3[%c0_32, %c0_33, %c0_34], %32 {strides = array<i32>} : memref<1x256x128xf32, #tpu.memory_space<vmem>>, vector<1x256x128xf32>,
    %c0_35 = arith.constant 0 : index
    %c1_36 = arith.constant 1 : index
    %c0_37 = arith.constant 0 : index
    %c0_38 = arith.constant 0 : index
    %33 = vector.load %arg1[%c0_35, %c1_36, %c0_37, %c0_38] : memref<1x18x18x4xf32, #tpu.memory_space<vmem>>, vector<1x16x16x4xf32>
    %34 = vector.shape_cast %33 : vector<1x16x16x4xf32> to vector<16x16x4xf32>
    %35 = vector.shape_cast %34 : vector<16x16x4xf32> to vector<256x4xf32>
    %c3 = arith.constant 3 : index
    %c0_39 = arith.constant 0 : index
    %c0_40 = arith.constant 0 : index
    %36 = vector.load %arg2[%c3, %c0_39, %c0_40] : memref<9x4x128xf32, #tpu.memory_space<vmem>>, vector<1x4x128xf32>
    %37 = vector.shape_cast %36 : vector<1x4x128xf32> to vector<4x128xf32>
    %cst_41 = arith.constant dense<0.000000e+00> : vector<256x128xf32>
    %38 = tpu.matmul %35, %37, %cst_41 {dimension_numbers = #tpu.dot_dimension_numbers<[1], [0], [0], [1], [0, 0, 1, 1], [], []>} : vector<256x4xf32>, vector<4x128xf32>, vector<256x128xf32> -> vector<256x128xf32>
    %c0_42 = arith.constant 0 : index
    %c0_43 = arith.constant 0 : index
    %c0_44 = arith.constant 0 : index
    %39 = vector.load %arg3[%c0_42, %c0_43, %c0_44] : memref<1x256x128xf32, #tpu.memory_space<vmem>>, vector<1x256x128xf32>
    %40 = vector.shape_cast %39 : vector<1x256x128xf32> to vector<256x128xf32>
    %41 = arith.addf %40, %38 : vector<256x128xf32>
    %c0_45 = arith.constant 0 : index
    %c0_46 = arith.constant 0 : index
    %c0_47 = arith.constant 0 : index
    %42 = vector.load %arg3[%c0_45, %c0_46, %c0_47] : memref<1x256x128xf32, #tpu.memory_space<vmem>>, vector<1x256x128xf32>
    %43 = vector.shape_cast %42 : vector<1x256x128xf32> to vector<256x128xf32>
    %44 = vector.shape_cast %41 : vector<256x128xf32> to vector<1x256x128xf32>
    tpu.vector_store %arg3[%c0_45, %c0_46, %c0_47], %44 {strides = array<i32>} : memref<1x256x128xf32, #tpu.memory_space<vmem>>, vector<1x256x128xf32>,
    %c0_48 = arith.constant 0 : index
    %c1_49 = arith.constant 1 : index
    %c1_50 = arith.constant 1 : index
    %c0_51 = arith.constant 0 : index
    %45 = vector.load %arg1[%c0_48, %c1_49, %c1_50, %c0_51] : memref<1x18x18x4xf32, #tpu.memory_space<vmem>>, vector<1x16x16x4xf32>
    %46 = vector.shape_cast %45 : vector<1x16x16x4xf32> to vector<16x16x4xf32>
    %47 = vector.shape_cast %46 : vector<16x16x4xf32> to vector<256x4xf32>
    %c4 = arith.constant 4 : index
    %c0_52 = arith.constant 0 : index
    %c0_53 = arith.constant 0 : index
    %48 = vector.load %arg2[%c4, %c0_52, %c0_53] : memref<9x4x128xf32, #tpu.memory_space<vmem>>, vector<1x4x128xf32>
    %49 = vector.shape_cast %48 : vector<1x4x128xf32> to vector<4x128xf32>
    %cst_54 = arith.constant dense<0.000000e+00> : vector<256x128xf32>
    %50 = tpu.matmul %47, %49, %cst_54 {dimension_numbers = #tpu.dot_dimension_numbers<[1], [0], [0], [1], [0, 0, 1, 1], [], []>} : vector<256x4xf32>, vector<4x128xf32>, vector<256x128xf32> -> vector<256x128xf32>
    %c0_55 = arith.constant 0 : index
    %c0_56 = arith.constant 0 : index
    %c0_57 = arith.constant 0 : index
    %51 = vector.load %arg3[%c0_55, %c0_56, %c0_57] : memref<1x256x128xf32, #tpu.memory_space<vmem>>, vector<1x256x128xf32>
    %52 = vector.shape_cast %51 : vector<1x256x128xf32> to vector<256x128xf32>
    %53 = arith.addf %52, %50 : vector<256x128xf32>
    %c0_58 = arith.constant 0 : index
    %c0_59 = arith.constant 0 : index
    %c0_60 = arith.constant 0 : index
    %54 = vector.load %arg3[%c0_58, %c0_59, %c0_60] : memref<1x256x128xf32, #tpu.memory_space<vmem>>, vector<1x256x128xf32>
    %55 = vector.shape_cast %54 : vector<1x256x128xf32> to vector<256x128xf32>
    %56 = vector.shape_cast %53 : vector<256x128xf32> to vector<1x256x128xf32>
    tpu.vector_store %arg3[%c0_58, %c0_59, %c0_60], %56 {strides = array<i32>} : memref<1x256x128xf32, #tpu.memory_space<vmem>>, vector<1x256x128xf32>,
    %c0_61 = arith.constant 0 : index
    %c1_62 = arith.constant 1 : index
    %c2_63 = arith.constant 2 : index
    %c0_64 = arith.constant 0 : index
    %57 = vector.load %arg1[%c0_61, %c1_62, %c2_63, %c0_64] : memref<1x18x18x4xf32, #tpu.memory_space<vmem>>, vector<1x16x16x4xf32>
    %58 = vector.shape_cast %57 : vector<1x16x16x4xf32> to vector<16x16x4xf32>
    %59 = vector.shape_cast %58 : vector<16x16x4xf32> to vector<256x4xf32>
    %c5 = arith.constant 5 : index
    %c0_65 = arith.constant 0 : index
    %c0_66 = arith.constant 0 : index
    %60 = vector.load %arg2[%c5, %c0_65, %c0_66] : memref<9x4x128xf32, #tpu.memory_space<vmem>>, vector<1x4x128xf32>
    %61 = vector.shape_cast %60 : vector<1x4x128xf32> to vector<4x128xf32>
    %cst_67 = arith.constant dense<0.000000e+00> : vector<256x128xf32>
    %62 = tpu.matmul %59, %61, %cst_67 {dimension_numbers = #tpu.dot_dimension_numbers<[1], [0], [0], [1], [0, 0, 1, 1], [], []>} : vector<256x4xf32>, vector<4x128xf32>, vector<256x128xf32> -> vector<256x128xf32>
    %c0_68 = arith.constant 0 : index
    %c0_69 = arith.constant 0 : index
    %c0_70 = arith.constant 0 : index
    %63 = vector.load %arg3[%c0_68, %c0_69, %c0_70] : memref<1x256x128xf32, #tpu.memory_space<vmem>>, vector<1x256x128xf32>
    %64 = vector.shape_cast %63 : vector<1x256x128xf32> to vector<256x128xf32>
    %65 = arith.addf %64, %62 : vector<256x128xf32>
    %c0_71 = arith.constant 0 : index
    %c0_72 = arith.constant 0 : index
    %c0_73 = arith.constant 0 : index
    %66 = vector.load %arg3[%c0_71, %c0_72, %c0_73] : memref<1x256x128xf32, #tpu.memory_space<vmem>>, vector<1x256x128xf32>
    %67 = vector.shape_cast %66 : vector<1x256x128xf32> to vector<256x128xf32>
    %68 = vector.shape_cast %65 : vector<256x128xf32> to vector<1x256x128xf32>
    tpu.vector_store %arg3[%c0_71, %c0_72, %c0_73], %68 {strides = array<i32>} : memref<1x256x128xf32, #tpu.memory_space<vmem>>, vector<1x256x128xf32>,
    %c0_74 = arith.constant 0 : index
    %c2_75 = arith.constant 2 : index
    %c0_76 = arith.constant 0 : index
    %c0_77 = arith.constant 0 : index
    %69 = vector.load %arg1[%c0_74, %c2_75, %c0_76, %c0_77] : memref<1x18x18x4xf32, #tpu.memory_space<vmem>>, vector<1x16x16x4xf32>
    %70 = vector.shape_cast %69 : vector<1x16x16x4xf32> to vector<16x16x4xf32>
    %71 = vector.shape_cast %70 : vector<16x16x4xf32> to vector<256x4xf32>
    %c6 = arith.constant 6 : index
    %c0_78 = arith.constant 0 : index
    %c0_79 = arith.constant 0 : index
    %72 = vector.load %arg2[%c6, %c0_78, %c0_79] : memref<9x4x128xf32, #tpu.memory_space<vmem>>, vector<1x4x128xf32>
    %73 = vector.shape_cast %72 : vector<1x4x128xf32> to vector<4x128xf32>
    %cst_80 = arith.constant dense<0.000000e+00> : vector<256x128xf32>
    %74 = tpu.matmul %71, %73, %cst_80 {dimension_numbers = #tpu.dot_dimension_numbers<[1], [0], [0], [1], [0, 0, 1, 1], [], []>} : vector<256x4xf32>, vector<4x128xf32>, vector<256x128xf32> -> vector<256x128xf32>
    %c0_81 = arith.constant 0 : index
    %c0_82 = arith.constant 0 : index
    %c0_83 = arith.constant 0 : index
    %75 = vector.load %arg3[%c0_81, %c0_82, %c0_83] : memref<1x256x128xf32, #tpu.memory_space<vmem>>, vector<1x256x128xf32>
    %76 = vector.shape_cast %75 : vector<1x256x128xf32> to vector<256x128xf32>
    %77 = arith.addf %76, %74 : vector<256x128xf32>
    %c0_84 = arith.constant 0 : index
    %c0_85 = arith.constant 0 : index
    %c0_86 = arith.constant 0 : index
    %78 = vector.load %arg3[%c0_84, %c0_85, %c0_86] : memref<1x256x128xf32, #tpu.memory_space<vmem>>, vector<1x256x128xf32>
    %79 = vector.shape_cast %78 : vector<1x256x128xf32> to vector<256x128xf32>
    %80 = vector.shape_cast %77 : vector<256x128xf32> to vector<1x256x128xf32>
    tpu.vector_store %arg3[%c0_84, %c0_85, %c0_86], %80 {strides = array<i32>} : memref<1x256x128xf32, #tpu.memory_space<vmem>>, vector<1x256x128xf32>,
    %c0_87 = arith.constant 0 : index
    %c2_88 = arith.constant 2 : index
    %c1_89 = arith.constant 1 : index
    %c0_90 = arith.constant 0 : index
    %81 = vector.load %arg1[%c0_87, %c2_88, %c1_89, %c0_90] : memref<1x18x18x4xf32, #tpu.memory_space<vmem>>, vector<1x16x16x4xf32>
    %82 = vector.shape_cast %81 : vector<1x16x16x4xf32> to vector<16x16x4xf32>
    %83 = vector.shape_cast %82 : vector<16x16x4xf32> to vector<256x4xf32>
    %c7 = arith.constant 7 : index
    %c0_91 = arith.constant 0 : index
    %c0_92 = arith.constant 0 : index
    %84 = vector.load %arg2[%c7, %c0_91, %c0_92] : memref<9x4x128xf32, #tpu.memory_space<vmem>>, vector<1x4x128xf32>
    %85 = vector.shape_cast %84 : vector<1x4x128xf32> to vector<4x128xf32>
    %cst_93 = arith.constant dense<0.000000e+00> : vector<256x128xf32>
    %86 = tpu.matmul %83, %85, %cst_93 {dimension_numbers = #tpu.dot_dimension_numbers<[1], [0], [0], [1], [0, 0, 1, 1], [], []>} : vector<256x4xf32>, vector<4x128xf32>, vector<256x128xf32> -> vector<256x128xf32>
    %c0_94 = arith.constant 0 : index
    %c0_95 = arith.constant 0 : index
    %c0_96 = arith.constant 0 : index
    %87 = vector.load %arg3[%c0_94, %c0_95, %c0_96] : memref<1x256x128xf32, #tpu.memory_space<vmem>>, vector<1x256x128xf32>
    %88 = vector.shape_cast %87 : vector<1x256x128xf32> to vector<256x128xf32>
    %89 = arith.addf %88, %86 : vector<256x128xf32>
    %c0_97 = arith.constant 0 : index
    %c0_98 = arith.constant 0 : index
    %c0_99 = arith.constant 0 : index
    %90 = vector.load %arg3[%c0_97, %c0_98, %c0_99] : memref<1x256x128xf32, #tpu.memory_space<vmem>>, vector<1x256x128xf32>
    %91 = vector.shape_cast %90 : vector<1x256x128xf32> to vector<256x128xf32>
    %92 = vector.shape_cast %89 : vector<256x128xf32> to vector<1x256x128xf32>
    tpu.vector_store %arg3[%c0_97, %c0_98, %c0_99], %92 {strides = array<i32>} : memref<1x256x128xf32, #tpu.memory_space<vmem>>, vector<1x256x128xf32>,
    %c0_100 = arith.constant 0 : index
    %c2_101 = arith.constant 2 : index
    %c2_102 = arith.constant 2 : index
    %c0_103 = arith.constant 0 : index
    %93 = vector.load %arg1[%c0_100, %c2_101, %c2_102, %c0_103] : memref<1x18x18x4xf32, #tpu.memory_space<vmem>>, vector<1x16x16x4xf32>
    %94 = vector.shape_cast %93 : vector<1x16x16x4xf32> to vector<16x16x4xf32>
    %95 = vector.shape_cast %94 : vector<16x16x4xf32> to vector<256x4xf32>
    %c8 = arith.constant 8 : index
    %c0_104 = arith.constant 0 : index
    %c0_105 = arith.constant 0 : index
    %96 = vector.load %arg2[%c8, %c0_104, %c0_105] : memref<9x4x128xf32, #tpu.memory_space<vmem>>, vector<1x4x128xf32>
    %97 = vector.shape_cast %96 : vector<1x4x128xf32> to vector<4x128xf32>
    %cst_106 = arith.constant dense<0.000000e+00> : vector<256x128xf32>
    %98 = tpu.matmul %95, %97, %cst_106 {dimension_numbers = #tpu.dot_dimension_numbers<[1], [0], [0], [1], [0, 0, 1, 1], [], []>} : vector<256x4xf32>, vector<4x128xf32>, vector<256x128xf32> -> vector<256x128xf32>
    %c0_107 = arith.constant 0 : index
    %c0_108 = arith.constant 0 : index
    %c0_109 = arith.constant 0 : index
    %99 = vector.load %arg3[%c0_107, %c0_108, %c0_109] : memref<1x256x128xf32, #tpu.memory_space<vmem>>, vector<1x256x128xf32>
    %100 = vector.shape_cast %99 : vector<1x256x128xf32> to vector<256x128xf32>
    %101 = arith.addf %100, %98 : vector<256x128xf32>
    %c0_110 = arith.constant 0 : index
    %c0_111 = arith.constant 0 : index
    %c0_112 = arith.constant 0 : index
    %102 = vector.load %arg3[%c0_110, %c0_111, %c0_112] : memref<1x256x128xf32, #tpu.memory_space<vmem>>, vector<1x256x128xf32>
    %103 = vector.shape_cast %102 : vector<1x256x128xf32> to vector<256x128xf32>
    %104 = vector.shape_cast %101 : vector<256x128xf32> to vector<1x256x128xf32>
    tpu.vector_store %arg3[%c0_110, %c0_111, %c0_112], %104 {strides = array<i32>} : memref<1x256x128xf32, #tpu.memory_space<vmem>>, vector<1x256x128xf32>,
    %c0_113 = arith.constant 0 : index
    %c0_114 = arith.constant 0 : index
    %c0_115 = arith.constant 0 : index
    %105 = vector.load %arg3[%c0_113, %c0_114, %c0_115] : memref<1x256x128xf32, #tpu.memory_space<vmem>>, vector<1x256x128xf32>
    %106 = vector.shape_cast %105 : vector<1x256x128xf32> to vector<256x128xf32>
    %cst_116 = arith.constant dense<0.000000e+00> : vector<128xf32>
    %107 = vector.multi_reduction <add>, %106, %cst_116 [0] : vector<256x128xf32> to vector<128xf32>
    %108 = vector.shape_cast %107 : vector<128xf32> to vector<1x128xf32>
    %c0_117 = arith.constant 0 : index
    %c0_118 = arith.constant 0 : index
    %c0_119 = arith.constant 0 : index
    %109 = vector.load %arg4[%c0_117, %c0_118, %c0_119] : memref<1x1x128xf32, #tpu.memory_space<vmem>>, vector<1x1x128xf32>
    %110 = vector.shape_cast %109 : vector<1x1x128xf32> to vector<1x128xf32>
    %111 = vector.shape_cast %108 : vector<1x128xf32> to vector<1x1x128xf32>
    tpu.vector_store %arg4[%c0_117, %c0_118, %c0_119], %111 {strides = array<i32>} : memref<1x1x128xf32, #tpu.memory_space<vmem>>, vector<1x1x128xf32>,
    %112 = arith.mulf %106, %106 : vector<256x128xf32>
    %cst_120 = arith.constant dense<0.000000e+00> : vector<128xf32>
    %113 = vector.multi_reduction <add>, %112, %cst_120 [0] : vector<256x128xf32> to vector<128xf32>
    %114 = vector.shape_cast %113 : vector<128xf32> to vector<1x128xf32>
    %c0_121 = arith.constant 0 : index
    %c0_122 = arith.constant 0 : index
    %c0_123 = arith.constant 0 : index
    %115 = vector.load %arg5[%c0_121, %c0_122, %c0_123] : memref<1x1x128xf32, #tpu.memory_space<vmem>>, vector<1x1x128xf32>
    %116 = vector.shape_cast %115 : vector<1x1x128xf32> to vector<1x128xf32>
    %117 = vector.shape_cast %114 : vector<1x128xf32> to vector<1x1x128xf32>
    tpu.vector_store %arg5[%c0_121, %c0_122, %c0_123], %117 {strides = array<i32>} : memref<1x1x128xf32, #tpu.memory_space<vmem>>, vector<1x1x128xf32>,
    return
  }
  func.func @transform_0(%arg0: i32) -> (i32, i32, i32, i32) {
    %c0_i32 = arith.constant 0 : i32
    %c0_i32_0 = arith.constant 0 : i32
    %c0_i32_1 = arith.constant 0 : i32
    %c0_i32_2 = arith.constant 0 : i32
    return %arg0, %c0_i32, %c0_i32_0, %c0_i32_1 : i32, i32, i32, i32
  }
  func.func @transform_1(%arg0: i32) -> (i32, i32, i32) {
    %c0_i32 = arith.constant 0 : i32
    %c0_i32_0 = arith.constant 0 : i32
    %c0_i32_1 = arith.constant 0 : i32
    %c0_i32_2 = arith.constant 0 : i32
    return %c0_i32, %c0_i32_0, %c0_i32_1 : i32, i32, i32
  }
  func.func @transform_2(%arg0: i32) -> (i32, i32, i32) {
    %c0_i32 = arith.constant 0 : i32
    %c0_i32_0 = arith.constant 0 : i32
    %c0_i32_1 = arith.constant 0 : i32
    return %arg0, %c0_i32, %c0_i32_0 : i32, i32, i32
  }
  func.func @transform_3(%arg0: i32) -> (i32, i32, i32) {
    %c0_i32 = arith.constant 0 : i32
    %c0_i32_0 = arith.constant 0 : i32
    %c0_i32_1 = arith.constant 0 : i32
    return %arg0, %c0_i32, %c0_i32_0 : i32, i32, i32
  }
  func.func @transform_4(%arg0: i32) -> (i32, i32, i32) {
    %c0_i32 = arith.constant 0 : i32
    %c0_i32_0 = arith.constant 0 : i32
    %c0_i32_1 = arith.constant 0 : i32
    return %arg0, %c0_i32, %c0_i32_0 : i32, i32, i32
  }
}

module attributes {stable_mosaic.version = 11 : i64} {
  func.func @_bn_relu_kernel(%arg0: i32, %arg1: memref<1x256x128xf32, #tpu.memory_space<vmem>>, %arg2: memref<1x128xf32, #tpu.memory_space<vmem>>, %arg3: memref<1x128xf32, #tpu.memory_space<vmem>>, %arg4: memref<1x256x128xf32, #tpu.memory_space<vmem>>) attributes {dimension_semantics = [#tpu.dimension_semantics<parallel>], iteration_bounds = array<i64: 2>, scalar_prefetch = 0 : i64, scratch_operands = 0 : i64, tpu.core_type = #tpu.core_type<tc>, window_params = [{transform_indices = @transform_0, window_bounds = array<i64: 1, 256, 128>}, {pipeline_mode = #tpu.pipeline_mode<synchronous>, transform_indices = @transform_1, window_bounds = array<i64: 1, 128>}, {pipeline_mode = #tpu.pipeline_mode<synchronous>, transform_indices = @transform_2, window_bounds = array<i64: 1, 128>}, {transform_indices = @transform_3, window_bounds = array<i64: 1, 256, 128>}]} {
    %c0 = arith.constant 0 : index
    %c0_0 = arith.constant 0 : index
    %c0_1 = arith.constant 0 : index
    %0 = vector.load %arg1[%c0, %c0_0, %c0_1] : memref<1x256x128xf32, #tpu.memory_space<vmem>>, vector<1x256x128xf32>
    %1 = vector.shape_cast %0 : vector<1x256x128xf32> to vector<256x128xf32>
    %c0_2 = arith.constant 0 : index
    %c0_3 = arith.constant 0 : index
    %2 = vector.load %arg2[%c0_2, %c0_3] : memref<1x128xf32, #tpu.memory_space<vmem>>, vector<1x128xf32>
    %3 = vector.broadcast %2 : vector<1x128xf32> to vector<256x128xf32>
    %4 = arith.mulf %1, %3 : vector<256x128xf32>
    %c0_4 = arith.constant 0 : index
    %c0_5 = arith.constant 0 : index
    %5 = vector.load %arg3[%c0_4, %c0_5] : memref<1x128xf32, #tpu.memory_space<vmem>>, vector<1x128xf32>
    %6 = vector.broadcast %5 : vector<1x128xf32> to vector<256x128xf32>
    %7 = arith.addf %4, %6 : vector<256x128xf32>
    %cst = arith.constant 0.000000e+00 : f32
    %8 = vector.broadcast %cst : f32 to vector<256x128xf32>
    %9 = arith.maximumf %7, %8 : vector<256x128xf32>
    %c0_6 = arith.constant 0 : index
    %c0_7 = arith.constant 0 : index
    %c0_8 = arith.constant 0 : index
    %10 = vector.load %arg4[%c0_6, %c0_7, %c0_8] : memref<1x256x128xf32, #tpu.memory_space<vmem>>, vector<1x256x128xf32>
    %11 = vector.shape_cast %10 : vector<1x256x128xf32> to vector<256x128xf32>
    %12 = vector.shape_cast %9 : vector<256x128xf32> to vector<1x256x128xf32>
    tpu.vector_store %arg4[%c0_6, %c0_7, %c0_8], %12 {strides = array<i32>} : memref<1x256x128xf32, #tpu.memory_space<vmem>>, vector<1x256x128xf32>,
    return
  }
  func.func @transform_0(%arg0: i32) -> (i32, i32, i32) {
    %c0_i32 = arith.constant 0 : i32
    %c0_i32_0 = arith.constant 0 : i32
    %c0_i32_1 = arith.constant 0 : i32
    return %arg0, %c0_i32, %c0_i32_0 : i32, i32, i32
  }
  func.func @transform_1(%arg0: i32) -> (i32, i32) {
    %c0_i32 = arith.constant 0 : i32
    %c0_i32_0 = arith.constant 0 : i32
    %c0_i32_1 = arith.constant 0 : i32
    return %c0_i32, %c0_i32_0 : i32, i32
  }
  func.func @transform_2(%arg0: i32) -> (i32, i32) {
    %c0_i32 = arith.constant 0 : i32
    %c0_i32_0 = arith.constant 0 : i32
    %c0_i32_1 = arith.constant 0 : i32
    return %c0_i32, %c0_i32_0 : i32, i32
  }
  func.func @transform_3(%arg0: i32) -> (i32, i32, i32) {
    %c0_i32 = arith.constant 0 : i32
    %c0_i32_0 = arith.constant 0 : i32
    %c0_i32_1 = arith.constant 0 : i32
    return %arg0, %c0_i32, %c0_i32_0 : i32, i32, i32
  }
}

</mosaic_0001>

<llo_original>
// kernel: basic_conv2d.3
$region0: #{basic_conv2d.3}
  #allocation0 [shape = 'u32[]', space=smem, size = 0x4, offset = 0x4, fixed_abs, tag = 'smem constant byte address 0x4 - core index']
  #allocation1 [shape = 'u32[144,128]{1,0:T(1,128)}', space=vmem, size = 0x12000, scoped, tag = 'internal scratch']
  %s0 = inlined_call_operand.vmem [shape: f32[2,256,128], index: 0, kind: input, shape index: {}, may-alias: {0,3}]
  %s1 = inlined_call_operand.vmem [shape: f32[1,128], index: 1, kind: input, shape index: {}]
  %s2 = inlined_call_operand.vmem [shape: f32[1,128], index: 2, kind: input, shape index: {}]
  %s3 = inlined_call_operand.vmem [shape: f32[2,256,128], index: 3, kind: output, shape index: {}, may-alias: {0,3}]
  %s4 = sld [smem:[#allocation0]]
  $region45: #{basic_conv2d.3} parent=0
    _
  %s6 = ssub.s32 1, %s4
  %s7 = scalar_select 0, %s6, %s4
  loop: start=0, step=1, limit=4
  $region2: #{basic_conv2d.3} parent=0 // loop_pre_header
    _
  $region3: #{basic_conv2d.3} parent=0 // loop_header
    %s9 = sphi 0, %s13
    %p10 = scmp.ge.s32.totalorder %s9, 4
    %s19 = sphi 0, %s21
    %s22 = sphi 0, %s19
    %s23 = sphi 0, %s22
    %s39 = sphi 0, %s23
    %s43 = sphi 0, %s43
    %s45 = sphi 0, %s43
    %s46 = sphi 0, %s45
    %s60 = sphi 0, %s46
    %s64 = sphi 0, %s64
    %s66 = sphi 0, %s64
    %s67 = sphi 0, %s66
    %s81 = sphi 0, %s67
    %s87 = sphi 0, %s89
    %s90 = sphi 0, %s87
    %s91 = sphi 0, %s90
    %s107 = sphi 0, %s91
  $region4: #{basic_conv2d.3} parent=0 // loop_header_branch
    %12 = sbr.rel (%p10) target = $region8
  $region5: #{basic_conv2d.3} parent=0 // loop_body
    %s14 = ssub.s32 %s9, 1
    %s15 = ssub.s32 %s9, 2
    %s16 = sadd.s32 %s9, 1
    %s17 = ssub.s32 %s9, %s16
    %p18 = scmp.eq.s32.totalorder %s17, 0
    %s20 = sadd.s32 %s19, 1
    %s21 = scalar_select %p18, %s19, %s20
    %p24 = pneg %p18
    %p25 = scmp.eq.s32.totalorder %s9, 1
    %p26 = por %p24, %p25
    %p27 = scmp.ne.s32.totalorder %s19, %s22
    %p28 = scmp.eq.s32.totalorder %s9, 0
    %p29 = por %p27, %p28
    %p30 = scmp.ne.s32.totalorder %s19, %s22
    %p31 = scmp.eq.s32.totalorder %s14, 1
    %p32 = por %p30, %p31
    %p33 = scmp.ne.s32.totalorder %s22, %s23
    %p34 = scmp.eq.s32.totalorder %s14, 0
    %p35 = por %p33, %p34
    %p36 = scmp.ne.s32.totalorder %s22, %s23
    %p37 = scmp.eq.s32.totalorder %s15, 1
    %p38 = por %p36, %p37
    %p40 = scmp.ne.s32.totalorder %s23, %s39
    %p41 = scmp.eq.s32.totalorder %s15, 0
    %p42 = por %p40, %p41
    %s44 = sadd.s32 %s43, 1
    %p47 = scmp.eq.s32.totalorder %s9, 1
    %p48 = scmp.ne.s32.totalorder %s43, %s45
    %p49 = scmp.eq.s32.totalorder %s9, 0
    %p50 = por %p48, %p49
    %p51 = scmp.ne.s32.totalorder %s43, %s45
    %p52 = scmp.eq.s32.totalorder %s14, 1
    %p53 = por %p51, %p52
    %p54 = scmp.ne.s32.totalorder %s45, %s46
    %p55 = scmp.eq.s32.totalorder %s14, 0
    %p56 = por %p54, %p55
    %p57 = scmp.ne.s32.totalorder %s45, %s46
    %p58 = scmp.eq.s32.totalorder %s15, 1
    %p59 = por %p57, %p58
    %p61 = scmp.ne.s32.totalorder %s46, %s60
    %p62 = scmp.eq.s32.totalorder %s15, 0
    %p63 = por %p61, %p62
    %s65 = sadd.s32 %s64, 1
    %p68 = scmp.eq.s32.totalorder %s9, 1
    %p69 = scmp.ne.s32.totalorder %s64, %s66
    %p70 = scmp.eq.s32.totalorder %s9, 0
    %p71 = por %p69, %p70
    %p72 = scmp.ne.s32.totalorder %s64, %s66
    %p73 = scmp.eq.s32.totalorder %s14, 1
    %p74 = por %p72, %p73
    %p75 = scmp.ne.s32.totalorder %s66, %s67
    %p76 = scmp.eq.s32.totalorder %s14, 0
    %p77 = por %p75, %p76
    %p78 = scmp.ne.s32.totalorder %s66, %s67
    %p79 = scmp.eq.s32.totalorder %s15, 1
    %p80 = por %p78, %p79
    %p82 = scmp.ne.s32.totalorder %s67, %s81
    %p83 = scmp.eq.s32.totalorder %s15, 0
    %p84 = por %p82, %p83
    %s85 = ssub.s32 %s9, %s16
    %p86 = scmp.eq.s32.totalorder %s85, 0
    %s88 = sadd.s32 %s87, 1
    %s89 = scalar_select %p86, %s87, %s88
    %p92 = pneg %p86
    %p93 = scmp.eq.s32.totalorder %s9, 1
    %p94 = por %p92, %p93
    %p95 = scmp.ne.s32.totalorder %s87, %s90
    %p96 = scmp.eq.s32.totalorder %s9, 0
    %p97 = por %p95, %p96
    %p98 = scmp.ne.s32.totalorder %s87, %s90
    %p99 = scmp.eq.s32.totalorder %s14, 1
    %p100 = por %p98, %p99
    %p101 = scmp.ne.s32.totalorder %s90, %s91
    %p102 = scmp.eq.s32.totalorder %s14, 0
    %p103 = por %p101, %p102
    %p104 = scmp.ne.s32.totalorder %s90, %s91
    %p105 = scmp.eq.s32.totalorder %s15, 1
    %p106 = por %p104, %p105
    %p108 = scmp.ne.s32.totalorder %s91, %s107
    %p109 = scmp.eq.s32.totalorder %s15, 0
    %p110 = por %p108, %p109
    %p111 = scmp.le.s32.totalorder 1, %s9
    %p112 = scmp.lt.s32.totalorder %s9, 3
    %p113 = pnand %p111, %p112
    %p114 = pneg %p113
    // Predicated region
    $region9: #{basic_conv2d.3} parent=5 // pred_check
      _
    $region10: #{basic_conv2d.3} parent=5 // pred_check_branch
      %116 = sbr.rel (%p113) target = $region12
    $region11: #{basic_conv2d.3} parent=5 // pred_region
      %s117 = ssub.s32 %s9, 1
      // Predicated region
      $region13: #{basic_conv2d.3} parent=11 // pred_check
        %p118 = pneg %p56
      $region14: #{basic_conv2d.3} parent=11 // pred_check_branch
        %120 = sbr.rel (%p118) target = $region16
      $region15: #{basic_conv2d.3} parent=11 // pred_region
        _
      $region16: #{basic_conv2d.3} parent=11 // pred_fallthru
        _
      // Predicated region
      $region17: #{basic_conv2d.3} parent=11 // pred_check
        %p121 = pneg %p77
      $region18: #{basic_conv2d.3} parent=11 // pred_check_branch
        %123 = sbr.rel (%p121) target = $region20
      $region19: #{basic_conv2d.3} parent=11 // pred_region
        _
      $region20: #{basic_conv2d.3} parent=11 // pred_fallthru
        _
    $region12: #{basic_conv2d.3} parent=5 // pred_fallthru
      _
    %p124 = scmp.lt.s32.totalorder %s9, 2
    // Predicated region
    $region21: #{basic_conv2d.3} parent=5 // pred_check
      %p125 = pneg %p124
    $region22: #{basic_conv2d.3} parent=5 // pred_check_branch
      %127 = sbr.rel (%p125) target = $region24
    $region23: #{basic_conv2d.3} parent=5 // pred_region
      // Predicated region
      $region25: #{basic_conv2d.3} parent=23 // pred_check
        %p128 = pneg %p29
      $region26: #{basic_conv2d.3} parent=23 // pred_check_branch
        %130 = sbr.rel (%p128) target = $region28
      $region27: #{basic_conv2d.3} parent=23 // pred_region
        %p131 = scmp.lt.s32.totalorder %s9, 1
        %s132 = scalar_select %p131, %s9, 1
        %s133 = smul.addr %s132, 32
        %s134 = smul.addr %s133, 8
        %s135 = scalar_lea.vmem %s0, %s134
      $region28: #{basic_conv2d.3} parent=23 // pred_fallthru
        _
    $region24: #{basic_conv2d.3} parent=5 // pred_fallthru
      _
    %p136 = scmp.le.s32.totalorder 1, %s9
    %p137 = scmp.lt.s32.totalorder %s9, 3
    %p138 = pnand %p136, %p137
    %p139 = pneg %p138
    // Predicated region
    $region29: #{basic_conv2d.3} parent=5 // pred_check
      _
    $region30: #{basic_conv2d.3} parent=5 // pred_check_branch
      %141 = sbr.rel (%p138) target = $region32
    $region31: #{basic_conv2d.3} parent=5 // pred_region
      %s142 = ssub.s32 %s9, 1
      %p143 = scmp.lt.s32.totalorder %s14, 1
      %s144 = scalar_select %p143, %s14, 1
      %s145 = smul.addr %s144, 32
      %s146 = smul.addr %s145, 8
      %s147 = scalar_lea.vmem %s0, %s146
      %p148 = pneg %p35
      %p149 = pneg %p32
      %p150 = pneg %p56
      %p151 = pneg %p53
      %p152 = pneg %p77
      %p153 = pneg %p74
      %p154 = pneg %p103
      %p155 = pneg %p100
      %p156 = scmp.lt.s32.totalorder %s14, 1
      %s157 = scalar_select %p156, %s14, 1
      %s158 = smul.addr %s157, 32
      %s159 = smul.addr %s158, 8
      %s160 = scalar_lea.vmem %s3, %s159
      %p161 = scmp.lt.s32.totalorder %s14, 1
      %s162 = scalar_select %p161, %s14, 1
      %s163 = smul.addr %s162, 32
      %s164 = smul.addr %s163, 8
      %s165 = scalar_lea.vmem %s0, %s164
      %p166 = scmp.lt.s32.totalorder %s14, 1
      %s167 = scalar_select %p166, %s14, 1
      %s168 = smul.addr %s167, 32
      %s169 = smul.addr %s168, 8
      %s170 = scalar_lea.vmem %s3, %s169
      %v171 = vld [vmem:[%s165] sm:$0xff]
      %v172 = vld [vmem:[%s165 + $0x8] sm:$0xff]
      %v173 = vld [vmem:[%s165 + $0x10] sm:$0xff]
      %v174 = vld [vmem:[%s165 + $0x18] sm:$0xff]
      %v175 = vld [vmem:[%s165 + $0x20] sm:$0xff]
      %v176 = vld [vmem:[%s165 + $0x28] sm:$0xff]
      %v177 = vld [vmem:[%s165 + $0x30] sm:$0xff]
      %v178 = vld [vmem:[%s165 + $0x38] sm:$0xff]
      %v179 = vld [vmem:[%s165 + $0x40] sm:$0xff]
      %v180 = vld [vmem:[%s165 + $0x48] sm:$0xff]
      %v181 = vld [vmem:[%s165 + $0x50] sm:$0xff]
      %v182 = vld [vmem:[%s165 + $0x58] sm:$0xff]
      %v183 = vld [vmem:[%s165 + $0x60] sm:$0xff]
      %v184 = vld [vmem:[%s165 + $0x68] sm:$0xff]
      %v185 = vld [vmem:[%s165 + $0x70] sm:$0xff]
      %v186 = vld [vmem:[%s165 + $0x78] sm:$0xff]
      %v187 = vld [vmem:[%s165 + $0x80] sm:$0xff]
      %v188 = vld [vmem:[%s165 + $0x88] sm:$0xff]
      %v189 = vld [vmem:[%s165 + $0x90] sm:$0xff]
      %v190 = vld [vmem:[%s165 + $0x98] sm:$0xff]
      %v191 = vld [vmem:[%s165 + $0xa0] sm:$0xff]
      %v192 = vld [vmem:[%s165 + $0xa8] sm:$0xff]
      %v193 = vld [vmem:[%s165 + $0xb0] sm:$0xff]
      %v194 = vld [vmem:[%s165 + $0xb8] sm:$0xff]
      %v195 = vld [vmem:[%s165 + $0xc0] sm:$0xff]
      %v196 = vld [vmem:[%s165 + $0xc8] sm:$0xff]
      %v197 = vld [vmem:[%s165 + $0xd0] sm:$0xff]
      %v198 = vld [vmem:[%s165 + $0xd8] sm:$0xff]
      %v199 = vld [vmem:[%s165 + $0xe0] sm:$0xff]
      %v200 = vld [vmem:[%s165 + $0xe8] sm:$0xff]
      %v201 = vld [vmem:[%s165 + $0xf0] sm:$0xff]
      %v202 = vld [vmem:[%s165 + $0xf8] sm:$0xff]
      %v203 = vld [vmem:[%s1] sm:$0x1]
      %v205 = vlaneseq
      %v206 = vshrl.u32 %v205, 7
      %v207 = vsub.s32 0, %v206
      %v208 = vrot.slane %v203, %v207
      %v210 = vmul.f32 %v171, %v208
      %v211 = vmul.f32 %v172, %v208
      %v212 = vmul.f32 %v173, %v208
      %v213 = vmul.f32 %v174, %v208
      %v214 = vmul.f32 %v175, %v208
      %v215 = vmul.f32 %v176, %v208
      %v216 = vmul.f32 %v177, %v208
      %v217 = vmul.f32 %v178, %v208
      %v218 = vmul.f32 %v179, %v208
      %v219 = vmul.f32 %v180, %v208
      %v220 = vmul.f32 %v181, %v208
      %v221 = vmul.f32 %v182, %v208
      %v222 = vmul.f32 %v183, %v208
      %v223 = vmul.f32 %v184, %v208
      %v224 = vmul.f32 %v185, %v208
      %v225 = vmul.f32 %v186, %v208
      %v226 = vmul.f32 %v187, %v208
      %v227 = vmul.f32 %v188, %v208
      %v228 = vmul.f32 %v189, %v208
      %v229 = vmul.f32 %v190, %v208
      %v230 = vmul.f32 %v191, %v208
      %v231 = vmul.f32 %v192, %v208
      %v232 = vmul.f32 %v193, %v208
      %v233 = vmul.f32 %v194, %v208
      %v234 = vmul.f32 %v195, %v208
      %v235 = vmul.f32 %v196, %v208
      %v236 = vmul.f32 %v197, %v208
      %v237 = vmul.f32 %v198, %v208
      %v238 = vmul.f32 %v199, %v208
      %v239 = vmul.f32 %v200, %v208
      %v240 = vmul.f32 %v201, %v208
      %v241 = vmul.f32 %v202, %v208
      %v242 = vld [vmem:[%s2] sm:$0x1]
      %v244 = vlaneseq
      %v245 = vshrl.u32 %v244, 7
      %v246 = vsub.s32 0, %v245
      %v247 = vrot.slane %v242, %v246
      %v249 = vadd.f32 %v210, %v247
      %v250 = vadd.f32 %v211, %v247
      %v251 = vadd.f32 %v212, %v247
      %v252 = vadd.f32 %v213, %v247
      %v253 = vadd.f32 %v214, %v247
      %v254 = vadd.f32 %v215, %v247
      %v255 = vadd.f32 %v216, %v247
      %v256 = vadd.f32 %v217, %v247
      %v257 = vadd.f32 %v218, %v247
      %v258 = vadd.f32 %v219, %v247
      %v259 = vadd.f32 %v220, %v247
      %v260 = vadd.f32 %v221, %v247
      %v261 = vadd.f32 %v222, %v247
      %v262 = vadd.f32 %v223, %v247
      %v263 = vadd.f32 %v224, %v247
      %v264 = vadd.f32 %v225, %v247
      %v265 = vadd.f32 %v226, %v247
      %v266 = vadd.f32 %v227, %v247
      %v267 = vadd.f32 %v228, %v247
      %v268 = vadd.f32 %v229, %v247
      %v269 = vadd.f32 %v230, %v247
      %v270 = vadd.f32 %v231, %v247
      %v271 = vadd.f32 %v232, %v247
      %v272 = vadd.f32 %v233, %v247
      %v273 = vadd.f32 %v234, %v247
      %v274 = vadd.f32 %v235, %v247
      %v275 = vadd.f32 %v236, %v247
      %v276 = vadd.f32 %v237, %v247
      %v277 = vadd.f32 %v238, %v247
      %v278 = vadd.f32 %v239, %v247
      %v279 = vadd.f32 %v240, %v247
      %v280 = vadd.f32 %v241, %v247
      %v281 = vmax.f32 %v249, 0.0
      %v282 = vmax.f32 %v250, 0.0
      %v283 = vmax.f32 %v251, 0.0
      %v284 = vmax.f32 %v252, 0.0
      %v285 = vmax.f32 %v253, 0.0
      %v286 = vmax.f32 %v254, 0.0
      %v287 = vmax.f32 %v255, 0.0
      %v288 = vmax.f32 %v256, 0.0
      %v289 = vmax.f32 %v257, 0.0
      %v290 = vmax.f32 %v258, 0.0
      %v291 = vmax.f32 %v259, 0.0
      %v292 = vmax.f32 %v260, 0.0
      %v293 = vmax.f32 %v261, 0.0
      %v294 = vmax.f32 %v262, 0.0
      %v295 = vmax.f32 %v263, 0.0
      %v296 = vmax.f32 %v264, 0.0
      %v297 = vmax.f32 %v265, 0.0
      %v298 = vmax.f32 %v266, 0.0
      %v299 = vmax.f32 %v267, 0.0
      %v300 = vmax.f32 %v268, 0.0
      %v301 = vmax.f32 %v269, 0.0
      %v302 = vmax.f32 %v270, 0.0
      %v303 = vmax.f32 %v271, 0.0
      %v304 = vmax.f32 %v272, 0.0
      %v305 = vmax.f32 %v273, 0.0
      %v306 = vmax.f32 %v274, 0.0
      %v307 = vmax.f32 %v275, 0.0
      %v308 = vmax.f32 %v276, 0.0
      %v309 = vmax.f32 %v277, 0.0
      %v310 = vmax.f32 %v278, 0.0
      %v311 = vmax.f32 %v279, 0.0
      %v312 = vmax.f32 %v280, 0.0
      %313 = vst [vmem:[%s170] sm:$0xff] %v281
      %314 = vst [vmem:[%s170 + $0x8] sm:$0xff] %v282
      %315 = vst [vmem:[%s170 + $0x10] sm:$0xff] %v283
      %316 = vst [vmem:[%s170 + $0x18] sm:$0xff] %v284
      %317 = vst [vmem:[%s170 + $0x20] sm:$0xff] %v285
      %318 = vst [vmem:[%s170 + $0x28] sm:$0xff] %v286
      %319 = vst [vmem:[%s170 + $0x30] sm:$0xff] %v287
      %320 = vst [vmem:[%s170 + $0x38] sm:$0xff] %v288
      %321 = vst [vmem:[%s170 + $0x40] sm:$0xff] %v289
      %322 = vst [vmem:[%s170 + $0x48] sm:$0xff] %v290
      %323 = vst [vmem:[%s170 + $0x50] sm:$0xff] %v291
      %324 = vst [vmem:[%s170 + $0x58] sm:$0xff] %v292
      %325 = vst [vmem:[%s170 + $0x60] sm:$0xff] %v293
      %326 = vst [vmem:[%s170 + $0x68] sm:$0xff] %v294
      %327 = vst [vmem:[%s170 + $0x70] sm:$0xff] %v295
      %328 = vst [vmem:[%s170 + $0x78] sm:$0xff] %v296
      %329 = vst [vmem:[%s170 + $0x80] sm:$0xff] %v297
      %330 = vst [vmem:[%s170 + $0x88] sm:$0xff] %v298
      %331 = vst [vmem:[%s170 + $0x90] sm:$0xff] %v299
      %332 = vst [vmem:[%s170 + $0x98] sm:$0xff] %v300
      %333 = vst [vmem:[%s170 + $0xa0] sm:$0xff] %v301
      %334 = vst [vmem:[%s170 + $0xa8] sm:$0xff] %v302
      %335 = vst [vmem:[%s170 + $0xb0] sm:$0xff] %v303
      %336 = vst [vmem:[%s170 + $0xb8] sm:$0xff] %v304
      %337 = vst [vmem:[%s170 + $0xc0] sm:$0xff] %v305
      %338 = vst [vmem:[%s170 + $0xc8] sm:$0xff] %v306
      %339 = vst [vmem:[%s170 + $0xd0] sm:$0xff] %v307
      %340 = vst [vmem:[%s170 + $0xd8] sm:$0xff] %v308
      %341 = vst [vmem:[%s170 + $0xe0] sm:$0xff] %v309
      %342 = vst [vmem:[%s170 + $0xe8] sm:$0xff] %v310
      %343 = vst [vmem:[%s170 + $0xf0] sm:$0xff] %v311
      %344 = vst [vmem:[%s170 + $0xf8] sm:$0xff] %v312
      %p345 = scmp.lt.s32.totalorder %s14, 1
      %s346 = scalar_select %p345, %s14, 1
      %s347 = smul.addr %s346, 32
      %s348 = smul.addr %s347, 8
      %s349 = scalar_lea.vmem %s3, %s348
      // Predicated region
      $region33: #{basic_conv2d.3} parent=31 // pred_check
        %p350 = pneg %p100
      $region34: #{basic_conv2d.3} parent=31 // pred_check_branch
        %352 = sbr.rel (%p350) target = $region36
      $region35: #{basic_conv2d.3} parent=31 // pred_region
        _
      $region36: #{basic_conv2d.3} parent=31 // pred_fallthru
        _
    $region32: #{basic_conv2d.3} parent=5 // pred_fallthru
      _
    %p353 = scmp.le.s32.totalorder 2, %s9
    // Predicated region
    $region37: #{basic_conv2d.3} parent=5 // pred_check
      %p354 = pneg %p353
    $region38: #{basic_conv2d.3} parent=5 // pred_check_branch
      %356 = sbr.rel (%p354) target = $region40
    $region39: #{basic_conv2d.3} parent=5 // pred_region
      %s357 = ssub.s32 %s9, 2
      // Predicated region
      $region41: #{basic_conv2d.3} parent=39 // pred_check
        %p358 = pneg %p106
      $region42: #{basic_conv2d.3} parent=39 // pred_check_branch
        %360 = sbr.rel (%p358) target = $region44
      $region43: #{basic_conv2d.3} parent=39 // pred_region
        %p361 = scmp.lt.s32.totalorder %s15, 1
        %s362 = scalar_select %p361, %s15, 1
        %s363 = smul.addr %s362, 32
        %s364 = smul.addr %s363, 8
        %s365 = scalar_lea.vmem %s3, %s364
      $region44: #{basic_conv2d.3} parent=39 // pred_fallthru
        _
    $region40: #{basic_conv2d.3} parent=5 // pred_fallthru
      _
  $region6: #{basic_conv2d.3} parent=0 // loop_footer
    %s13 = sadd.s32 1, %s9
  $region7: #{basic_conv2d.3} parent=0 // loop_footer_branch
    %8 = sbr.rel target = $region3
  $region8: #{basic_conv2d.3} parent=0 // loop_exit
    _

// kernel: basic_conv2d.2
$region0: #{basic_conv2d.2}
  #allocation0 [shape = 'u32[]', space=smem, size = 0x4, offset = 0x4, fixed_abs, tag = 'smem constant byte address 0x4 - core index']
  #allocation1 [shape = 'u32[144,128]{1,0:T(1,128)}', space=vmem, size = 0x12000, scoped, tag = 'internal scratch']
  %s0 = inlined_call_operand.vmem [shape: f32[2,18,18,4], index: 0, kind: input, shape index: {}]
  %s1 = inlined_call_operand.vmem [shape: f32[9,4,128], index: 1, kind: input, shape index: {}]
  %s2 = inlined_call_operand.vmem [shape: f32[2,256,128], index: 2, kind: output, shape index: {0}]
  %s3 = inlined_call_operand.vmem [shape: f32[2,1,128], index: 3, kind: output, shape index: {1}]
  %s4 = inlined_call_operand.vmem [shape: f32[2,1,128], index: 4, kind: output, shape index: {2}]
  %5 = xla_tuple %s2, %s3, %s4
  %s6 = sld [smem:[#allocation0]]
  $region57: #{basic_conv2d.2} parent=0
    _
  %s8 = ssub.s32 1, %s6
  %s9 = scalar_select 0, %s8, %s6
  loop: start=0, step=1, limit=4
  $region2: #{basic_conv2d.2} parent=0 // loop_pre_header
    _
  $region3: #{basic_conv2d.2} parent=0 // loop_header
    %s11 = sphi 0, %s15
    %p12 = scmp.ge.s32.totalorder %s11, 4
    %s21 = sphi 0, %s23
    %s24 = sphi 0, %s21
    %s25 = sphi 0, %s24
    %s41 = sphi 0, %s25
    %s45 = sphi 0, %s45
    %s47 = sphi 0, %s45
    %s48 = sphi 0, %s47
    %s62 = sphi 0, %s48
    %s68 = sphi 0, %s70
    %s71 = sphi 0, %s68
    %s72 = sphi 0, %s71
    %s88 = sphi 0, %s72
    %s94 = sphi 0, %s96
    %s97 = sphi 0, %s94
    %s98 = sphi 0, %s97
    %s114 = sphi 0, %s98
    %s120 = sphi 0, %s122
    %s123 = sphi 0, %s120
    %s124 = sphi 0, %s123
    %s140 = sphi 0, %s124
  $region4: #{basic_conv2d.2} parent=0 // loop_header_branch
    %14 = sbr.rel (%p12) target = $region8
  $region5: #{basic_conv2d.2} parent=0 // loop_body
    %s16 = ssub.s32 %s11, 1
    %s17 = ssub.s32 %s11, 2
    %s18 = sadd.s32 %s11, 1
    %s19 = ssub.s32 %s11, %s18
    %p20 = scmp.eq.s32.totalorder %s19, 0
    %s22 = sadd.s32 %s21, 1
    %s23 = scalar_select %p20, %s21, %s22
    %p26 = pneg %p20
    %p27 = scmp.eq.s32.totalorder %s11, 1
    %p28 = por %p26, %p27
    %p29 = scmp.ne.s32.totalorder %s21, %s24
    %p30 = scmp.eq.s32.totalorder %s11, 0
    %p31 = por %p29, %p30
    %p32 = scmp.ne.s32.totalorder %s21, %s24
    %p33 = scmp.eq.s32.totalorder %s16, 1
    %p34 = por %p32, %p33
    %p35 = scmp.ne.s32.totalorder %s24, %s25
    %p36 = scmp.eq.s32.totalorder %s16, 0
    %p37 = por %p35, %p36
    %p38 = scmp.ne.s32.totalorder %s24, %s25
    %p39 = scmp.eq.s32.totalorder %s17, 1
    %p40 = por %p38, %p39
    %p42 = scmp.ne.s32.totalorder %s25, %s41
    %p43 = scmp.eq.s32.totalorder %s17, 0
    %p44 = por %p42, %p43
    %s46 = sadd.s32 %s45, 1
    %p49 = scmp.eq.s32.totalorder %s11, 1
    %p50 = scmp.ne.s32.totalorder %s45, %s47
    %p51 = scmp.eq.s32.totalorder %s11, 0
    %p52 = por %p50, %p51
    %p53 = scmp.ne.s32.totalorder %s45, %s47
    %p54 = scmp.eq.s32.totalorder %s16, 1
    %p55 = por %p53, %p54
    %p56 = scmp.ne.s32.totalorder %s47, %s48
    %p57 = scmp.eq.s32.totalorder %s16, 0
    %p58 = por %p56, %p57
    %p59 = scmp.ne.s32.totalorder %s47, %s48
    %p60 = scmp.eq.s32.totalorder %s17, 1
    %p61 = por %p59, %p60
    %p63 = scmp.ne.s32.totalorder %s48, %s62
    %p64 = scmp.eq.s32.totalorder %s17, 0
    %p65 = por %p63, %p64
    %s66 = ssub.s32 %s11, %s18
    %p67 = scmp.eq.s32.totalorder %s66, 0
    %s69 = sadd.s32 %s68, 1
    %s70 = scalar_select %p67, %s68, %s69
    %p73 = pneg %p67
    %p74 = scmp.eq.s32.totalorder %s11, 1
    %p75 = por %p73, %p74
    %p76 = scmp.ne.s32.totalorder %s68, %s71
    %p77 = scmp.eq.s32.totalorder %s11, 0
    %p78 = por %p76, %p77
    %p79 = scmp.ne.s32.totalorder %s68, %s71
    %p80 = scmp.eq.s32.totalorder %s16, 1
    %p81 = por %p79, %p80
    %p82 = scmp.ne.s32.totalorder %s71, %s72
    %p83 = scmp.eq.s32.totalorder %s16, 0
    %p84 = por %p82, %p83
    %p85 = scmp.ne.s32.totalorder %s71, %s72
    %p86 = scmp.eq.s32.totalorder %s17, 1
    %p87 = por %p85, %p86
    %p89 = scmp.ne.s32.totalorder %s72, %s88
    %p90 = scmp.eq.s32.totalorder %s17, 0
    %p91 = por %p89, %p90
    %s92 = ssub.s32 %s11, %s18
    %p93 = scmp.eq.s32.totalorder %s92, 0
    %s95 = sadd.s32 %s94, 1
    %s96 = scalar_select %p93, %s94, %s95
    %p99 = pneg %p93
    %p100 = scmp.eq.s32.totalorder %s11, 1
    %p101 = por %p99, %p100
    %p102 = scmp.ne.s32.totalorder %s94, %s97
    %p103 = scmp.eq.s32.totalorder %s11, 0
    %p104 = por %p102, %p103
    %p105 = scmp.ne.s32.totalorder %s94, %s97
    %p106 = scmp.eq.s32.totalorder %s16, 1
    %p107 = por %p105, %p106
    %p108 = scmp.ne.s32.totalorder %s97, %s98
    %p109 = scmp.eq.s32.totalorder %s16, 0
    %p110 = por %p108, %p109
    %p111 = scmp.ne.s32.totalorder %s97, %s98
    %p112 = scmp.eq.s32.totalorder %s17, 1
    %p113 = por %p111, %p112
    %p115 = scmp.ne.s32.totalorder %s98, %s114
    %p116 = scmp.eq.s32.totalorder %s17, 0
    %p117 = por %p115, %p116
    %s118 = ssub.s32 %s11, %s18
    %p119 = scmp.eq.s32.totalorder %s118, 0
    %s121 = sadd.s32 %s120, 1
    %s122 = scalar_select %p119, %s120, %s121
    %p125 = pneg %p119
    %p126 = scmp.eq.s32.totalorder %s11, 1
    %p127 = por %p125, %p126
    %p128 = scmp.ne.s32.totalorder %s120, %s123
    %p129 = scmp.eq.s32.totalorder %s11, 0
    %p130 = por %p128, %p129
    %p131 = scmp.ne.s32.totalorder %s120, %s123
    %p132 = scmp.eq.s32.totalorder %s16, 1
    %p133 = por %p131, %p132
    %p134 = scmp.ne.s32.totalorder %s123, %s124
    %p135 = scmp.eq.s32.totalorder %s16, 0
    %p136 = por %p134, %p135
    %p137 = scmp.ne.s32.totalorder %s123, %s124
    %p138 = scmp.eq.s32.totalorder %s17, 1
    %p139 = por %p137, %p138
    %p141 = scmp.ne.s32.totalorder %s124, %s140
    %p142 = scmp.eq.s32.totalorder %s17, 0
    %p143 = por %p141, %p142
    %p144 = scmp.le.s32.totalorder 1, %s11
    %p145 = scmp.lt.s32.totalorder %s11, 3
    %p146 = pnand %p144, %p145
    %p147 = pneg %p146
    // Predicated region
    $region9: #{basic_conv2d.2} parent=5 // pred_check
      _
    $region10: #{basic_conv2d.2} parent=5 // pred_check_branch
      %149 = sbr.rel (%p146) target = $region12
    $region11: #{basic_conv2d.2} parent=5 // pred_region
      %s150 = ssub.s32 %s11, 1
      // Predicated region
      $region13: #{basic_conv2d.2} parent=11 // pred_check
        %p151 = pneg %p58
      $region14: #{basic_conv2d.2} parent=11 // pred_check_branch
        %153 = sbr.rel (%p151) target = $region16
      $region15: #{basic_conv2d.2} parent=11 // pred_region
        _
      $region16: #{basic_conv2d.2} parent=11 // pred_fallthru
        _
    $region12: #{basic_conv2d.2} parent=5 // pred_fallthru
      _
    %p154 = scmp.lt.s32.totalorder %s11, 2
    // Predicated region
    $region17: #{basic_conv2d.2} parent=5 // pred_check
      %p155 = pneg %p154
    $region18: #{basic_conv2d.2} parent=5 // pred_check_branch
      %157 = sbr.rel (%p155) target = $region20
    $region19: #{basic_conv2d.2} parent=5 // pred_region
      // Predicated region
      $region21: #{basic_conv2d.2} parent=19 // pred_check
        %p158 = pneg %p31
      $region22: #{basic_conv2d.2} parent=19 // pred_check_branch
        %160 = sbr.rel (%p158) target = $region24
      $region23: #{basic_conv2d.2} parent=19 // pred_region
        %p161 = scmp.lt.s32.totalorder %s11, 1
        %s162 = scalar_select %p161, %s11, 1
        %s163 = smul.addr %s162, 54
        %s164 = smul.addr %s163, 8
        %s165 = scalar_lea.vmem %s0, %s164
      $region24: #{basic_conv2d.2} parent=19 // pred_fallthru
        _
    $region20: #{basic_conv2d.2} parent=5 // pred_fallthru
      _
    %p166 = scmp.le.s32.totalorder 1, %s11
    %p167 = scmp.lt.s32.totalorder %s11, 3
    %p168 = pnand %p166, %p167
    %p169 = pneg %p168
    // Predicated region
    $region25: #{basic_conv2d.2} parent=5 // pred_check
      _
    $region26: #{basic_conv2d.2} parent=5 // pred_check_branch
      %171 = sbr.rel (%p168) target = $region28
    $region27: #{basic_conv2d.2} parent=5 // pred_region
      %s172 = ssub.s32 %s11, 1
      %p173 = scmp.lt.s32.totalorder %s16, 1
      %s174 = scalar_select %p173, %s16, 1
      %s175 = smul.addr %s174, 54
      %s176 = smul.addr %s175, 8
      %s177 = scalar_lea.vmem %s0, %s176
      %p178 = pneg %p37
      %p179 = pneg %p34
      %p180 = pneg %p58
      %p181 = pneg %p55
      %p182 = pneg %p84
      %p183 = pneg %p81
      %p184 = scmp.lt.s32.totalorder %s16, 1
      %s185 = scalar_select %p184, %s16, 1
      %s186 = smul.addr %s185, 32
      %s187 = smul.addr %s186, 8
      %s188 = scalar_lea.vmem %s2, %s187
      %p189 = pneg %p110
      %p190 = pneg %p107
      %p191 = scmp.lt.s32.totalorder %s16, 1
      %s192 = scalar_select %p191, %s16, 1
      %s193 = scalar_lea.vmem %s3, %s192
      %p194 = pneg %p136
      %p195 = pneg %p133
      %p196 = scmp.lt.s32.totalorder %s16, 1
      %s197 = scalar_select %p196, %s16, 1
      %s198 = scalar_lea.vmem %s4, %s197
      %p199 = scmp.lt.s32.totalorder %s16, 1
      %s200 = scalar_select %p199, %s16, 1
      %s201 = smul.addr %s200, 54
      %s202 = smul.addr %s201, 8
      %s203 = scalar_lea.vmem %s0, %s202
      %p204 = scmp.lt.s32.totalorder %s16, 1
      %s205 = scalar_select %p204, %s16, 1
      %s206 = smul.addr %s205, 32
      %s207 = smul.addr %s206, 8
      %s208 = scalar_lea.vmem %s2, %s207
      %p209 = scmp.lt.s32.totalorder %s16, 1
      %s210 = scalar_select %p209, %s16, 1
      %s211 = scalar_lea.vmem %s3, %s210
      %p212 = scmp.lt.s32.totalorder %s16, 1
      %s213 = scalar_select %p212, %s16, 1
      %s214 = scalar_lea.vmem %s4, %s213
      %v215 = vld [vmem:[%s203] sm:$0xff]
      %v216 = vld [vmem:[%s203 + $0x8] sm:$0xff]
      %v217 = vld [vmem:[%s203 + $0x18] sm:$0xff]
      %v218 = vld [vmem:[%s203 + $0x20] sm:$0xff]
      %v219 = vld [vmem:[%s203 + $0x30] sm:$0xff]
      %v220 = vld [vmem:[%s203 + $0x38] sm:$0xff]
      %v221 = vld [vmem:[%s203 + $0x48] sm:$0xff]
      %v222 = vld [vmem:[%s203 + $0x50] sm:$0xff]
      %v223 = vld [vmem:[%s203 + $0x60] sm:$0xff]
      %v224 = vld [vmem:[%s203 + $0x68] sm:$0xff]
      %v225 = vld [vmem:[%s203 + $0x78] sm:$0xff]
      %v226 = vld [vmem:[%s203 + $0x80] sm:$0xff]
      %v227 = vld [vmem:[%s203 + $0x90] sm:$0xff]
      %v228 = vld [vmem:[%s203 + $0x98] sm:$0xff]
      %v229 = vld [vmem:[%s203 + $0xa8] sm:$0xff]
      %v230 = vld [vmem:[%s203 + $0xb0] sm:$0xff]
      %v231 = vld [vmem:[%s203 + $0xc0] sm:$0xff]
      %v232 = vld [vmem:[%s203 + $0xc8] sm:$0xff]
      %v233 = vld [vmem:[%s203 + $0xd8] sm:$0xff]
      %v234 = vld [vmem:[%s203 + $0xe0] sm:$0xff]
      %v235 = vld [vmem:[%s203 + $0xf0] sm:$0xff]
      %v236 = vld [vmem:[%s203 + $0xf8] sm:$0xff]
      %v237 = vld [vmem:[%s203 + $0x108] sm:$0xff]
      %v238 = vld [vmem:[%s203 + $0x110] sm:$0xff]
      %v239 = vld [vmem:[%s203 + $0x120] sm:$0xff]
      %v240 = vld [vmem:[%s203 + $0x128] sm:$0xff]
      %v241 = vld [vmem:[%s203 + $0x138] sm:$0xff]
      %v242 = vld [vmem:[%s203 + $0x140] sm:$0xff]
      %v243 = vld [vmem:[%s203 + $0x150] sm:$0xff]
      %v244 = vld [vmem:[%s203 + $0x158] sm:$0xff]
      %v245 = vld [vmem:[%s203 + $0x168] sm:$0xff]
      %v246 = vld [vmem:[%s203 + $0x170] sm:$0xff]
      %v247 = vld [vmem:[%s1] sm:$0xf]
      %vm248 = vcmask 31744
      %v250 = vsel %vm248, %v215, 0
      %v253 = vsel %vm248, %v216, 0
      %v256 = vsel %vm248, %v217, 0
      %v259 = vsel %vm248, %v218, 0
      %v262 = vsel %vm248, %v219, 0
      %v265 = vsel %vm248, %v220, 0
      %v268 = vsel %vm248, %v221, 0
      %v271 = vsel %vm248, %v222, 0
      %v274 = vsel %vm248, %v223, 0
      %v277 = vsel %vm248, %v224, 0
      %v280 = vsel %vm248, %v225, 0
      %v283 = vsel %vm248, %v226, 0
      %v286 = vsel %vm248, %v227, 0
      %v289 = vsel %vm248, %v228, 0
      %v292 = vsel %vm248, %v229, 0
      %v295 = vsel %vm248, %v230, 0
      %v298 = vsel %vm248, %v231, 0
      %v301 = vsel %vm248, %v232, 0
      %v304 = vsel %vm248, %v233, 0
      %v307 = vsel %vm248, %v234, 0
      %v310 = vsel %vm248, %v235, 0
      %v313 = vsel %vm248, %v236, 0
      %v316 = vsel %vm248, %v237, 0
      %v319 = vsel %vm248, %v238, 0
      %v322 = vsel %vm248, %v239, 0
      %v325 = vsel %vm248, %v240, 0
      %v328 = vsel %vm248, %v241, 0
      %v331 = vsel %vm248, %v242, 0
      %v334 = vsel %vm248, %v243, 0
      %v337 = vsel %vm248, %v244, 0
      %v340 = vsel %vm248, %v245, 0
      %v343 = vsel %vm248, %v246, 0
      %vm345 = vcmask 1043456
      %v347 = vsel %vm345, %v247, 0
      %349 = vmatprep.subr.mxu0 0.0
      %350 = vmatpush1.msra.mxu0 %v347
      %351 = vmatprep.subr.mxu0 0.0
      %352 = vmatpush1.msra.mxu0 0.0
      %353 = vmatprep.subr.mxu0 0.0
      %354 = vmatpush1.msra.mxu0 0.0
      %355 = vmatprep.subr.mxu0 0.0
      %356 = vmatpush1.msra.mxu0 0.0
      %357 = vmatprep.subr.mxu0 0.0
      %358 = vmatpush1.msra.mxu0 0.0
      %359 = vmatprep.subr.mxu0 0.0
      %360 = vmatpush1.msra.mxu0 0.0
      %361 = vmatprep.subr.mxu0 0.0
      %362 = vmatpush1.msra.mxu0 0.0
      %363 = vmatprep.subr.mxu0 0.0
      %364 = vmatpush1.msra.mxu0 0.0
      %365 = vmatprep.subr.mxu0 0.0
      %366 = vmatpush1.msra.mxu0 0.0
      %367 = vmatprep.subr.mxu0 0.0
      %368 = vmatpush1.msra.mxu0 0.0
      %369 = vmatprep.subr.mxu0 0.0
      %370 = vmatpush1.msra.mxu0 0.0
      %371 = vmatprep.subr.mxu0 0.0
      %372 = vmatpush1.msra.mxu0 0.0
      %373 = vmatprep.subr.mxu0 0.0
      %374 = vmatpush1.msra.mxu0 0.0
      %375 = vmatprep.subr.mxu0 0.0
      %376 = vmatpush1.msra.mxu0 0.0
      %377 = vmatprep.subr.mxu0 0.0
      %378 = vmatpush1.msra.mxu0 0.0
      %379 = vmatprep.subr.mxu0 0.0
      %380 = vmatpush1.msra.mxu0 0.0
      %381 = vmatprep.subr.mxu0 0.0
      %382 = vmatpush1.msra.mxu0 0.0
      %383 = vmatprep.subr.mxu0 0.0
      %384 = vmatpush1.msra.mxu0 0.0
      %385 = vmatprep.subr.mxu0 0.0
      %386 = vmatpush1.msra.mxu0 0.0
      %387 = vmatprep.subr.mxu0 0.0
      %388 = vmatpush1.msra.mxu0 0.0
      %389 = vmatprep.subr.mxu0 0.0
      %390 = vmatpush1.msra.mxu0 0.0
      %391 = vmatprep.subr.mxu0 0.0
      %392 = vmatpush1.msra.mxu0 0.0
      %393 = vmatprep.subr.mxu0 0.0
      %394 = vmatpush1.msra.mxu0 0.0
      %395 = vmatprep.subr.mxu0 0.0
      %396 = vmatpush1.msra.mxu0 0.0
      %397 = vmatprep.subr.mxu0 0.0
      %398 = vmatpush1.msra.mxu0 0.0
      %399 = vmatprep.subr.mxu0 0.0
      %400 = vmatpush1.msra.mxu0 0.0
      %401 = vmatprep.subr.mxu0 0.0
      %402 = vmatpush1.msra.mxu0 0.0
      %403 = vmatprep.subr.mxu0 0.0
      %404 = vmatpush1.msra.mxu0 0.0
      %405 = vmatprep.subr.mxu0 0.0
      %406 = vmatpush1.msra.mxu0 0.0
      %407 = vmatprep.subr.mxu0 0.0
      %408 = vmatpush1.msra.mxu0 0.0
      %409 = vmatprep.subr.mxu0 0.0
      %410 = vmatpush1.msra.mxu0 0.0
      %411 = vmatprep.subr.mxu0 0.0
      %412 = vmatpush1.msra.mxu0 0.0
      %413 = vmatprep.mubr.f32.mxu0 0.0
      %414 = vmatmul.mubr.f32.gmra.mrb[0].mxu0 %v250
      %v415 = vpop.f32.mrb[0].mxu0
      %v416 = vadd.f32 0.0, %v415
      %v417 = vpop.f32.mrb[0].mxu0
      %418 = vmatprep.mubr.f32.mxu0 0.0
      %419 = vmatmul.mubr.f32.gmra.mrb[0].mxu0 %v253
      %v420 = vpop.f32.mrb[0].mxu0
      %v421 = vadd.f32 0.0, %v420
      %v422 = vpop.f32.mrb[0].mxu0
      %423 = vmatprep.mubr.f32.mxu0 0.0
      %424 = vmatmul.mubr.f32.gmra.mrb[0].mxu0 %v256
      %v425 = vpop.f32.mrb[0].mxu0
      %v426 = vadd.f32 0.0, %v425
      %v427 = vpop.f32.mrb[0].mxu0
      %428 = vmatprep.mubr.f32.mxu0 0.0
      %429 = vmatmul.mubr.f32.gmra.mrb[0].mxu0 %v259
      %v430 = vpop.f32.mrb[0].mxu0
      %v431 = vadd.f32 0.0, %v430
      %v432 = vpop.f32.mrb[0].mxu0
      %433 = vmatprep.mubr.f32.mxu0 0.0
      %434 = vmatmul.mubr.f32.gmra.mrb[0].mxu0 %v262
      %v435 = vpop.f32.mrb[0].mxu0
      %v436 = vadd.f32 0.0, %v435
      %v437 = vpop.f32.mrb[0].mxu0
      %438 = vmatprep.mubr.f32.mxu0 0.0
      %439 = vmatmul.mubr.f32.gmra.mrb[0].mxu0 %v265
      %v440 = vpop.f32.mrb[0].mxu0
      %v441 = vadd.f32 0.0, %v440
      %v442 = vpop.f32.mrb[0].mxu0
      %443 = vmatprep.mubr.f32.mxu0 0.0
      %444 = vmatmul.mubr.f32.gmra.mrb[0].mxu0 %v268
      %v445 = vpop.f32.mrb[0].mxu0
      %v446 = vadd.f32 0.0, %v445
      %v447 = vpop.f32.mrb[0].mxu0
      %448 = vmatprep.mubr.f32.mxu0 0.0
      %449 = vmatmul.mubr.f32.gmra.mrb[0].mxu0 %v271
      %v450 = vpop.f32.mrb[0].mxu0
      %v451 = vadd.f32 0.0, %v450
      %v452 = vpop.f32.mrb[0].mxu0
      %453 = vmatprep.mubr.f32.mxu0 0.0
      %454 = vmatmul.mubr.f32.gmra.mrb[0].mxu0 %v274
      %v455 = vpop.f32.mrb[0].mxu0
      %v456 = vadd.f32 0.0, %v455
      %v457 = vpop.f32.mrb[0].mxu0
      %458 = vmatprep.mubr.f32.mxu0 0.0
      %459 = vmatmul.mubr.f32.gmra.mrb[0].mxu0 %v277
      %v460 = vpop.f32.mrb[0].mxu0
      %v461 = vadd.f32 0.0, %v460
      %v462 = vpop.f32.mrb[0].mxu0
      %463 = vmatprep.mubr.f32.mxu0 0.0
      %464 = vmatmul.mubr.f32.gmra.mrb[0].mxu0 %v280
      %v465 = vpop.f32.mrb[0].mxu0
      %v466 = vadd.f32 0.0, %v465
      %v467 = vpop.f32.mrb[0].mxu0
      %468 = vmatprep.mubr.f32.mxu0 0.0
      %469 = vmatmul.mubr.f32.gmra.mrb[0].mxu0 %v283
      %v470 = vpop.f32.mrb[0].mxu0
      %v471 = vadd.f32 0.0, %v470
      %v472 = vpop.f32.mrb[0].mxu0
      %473 = vmatprep.mubr.f32.mxu0 0.0
      %474 = vmatmul.mubr.f32.gmra.mrb[0].mxu0 %v286
      %v475 = vpop.f32.mrb[0].mxu0
      %v476 = vadd.f32 0.0, %v475
      %v477 = vpop.f32.mrb[0].mxu0
      %478 = vmatprep.mubr.f32.mxu0 0.0
      %479 = vmatmul.mubr.f32.gmra.mrb[0].mxu0 %v289
      %v480 = vpop.f32.mrb[0].mxu0
      %v481 = vadd.f32 0.0, %v480
      %v482 = vpop.f32.mrb[0].mxu0
      %483 = vmatprep.mubr.f32.mxu0 0.0
      %484 = vmatmul.mubr.f32.gmra.mrb[0].mxu0 %v292
      %v485 = vpop.f32.mrb[0].mxu0
      %v486 = vadd.f32 0.0, %v485
      %v487 = vpop.f32.mrb[0].mxu0
      %488 = vmatprep.mubr.f32.mxu0 0.0
      %489 = vmatmul.mubr.f32.gmra.mrb[0].mxu0 %v295
      %v490 = vpop.f32.mrb[0].mxu0
      %v491 = vadd.f32 0.0, %v490
      %v492 = vpop.f32.mrb[0].mxu0
      %493 = vmatprep.mubr.f32.mxu0 0.0
      %494 = vmatmul.mubr.f32.gmra.mrb[0].mxu0 %v298
      %v495 = vpop.f32.mrb[0].mxu0
      %v496 = vadd.f32 0.0, %v495
      %v497 = vpop.f32.mrb[0].mxu0
      %498 = vmatprep.mubr.f32.mxu0 0.0
      %499 = vmatmul.mubr.f32.gmra.mrb[0].mxu0 %v301
      %v500 = vpop.f32.mrb[0].mxu0
      %v501 = vadd.f32 0.0, %v500
      %v502 = vpop.f32.mrb[0].mxu0
      %503 = vmatprep.mubr.f32.mxu0 0.0
      %504 = vmatmul.mubr.f32.gmra.mrb[0].mxu0 %v304
      %v505 = vpop.f32.mrb[0].mxu0
      %v506 = vadd.f32 0.0, %v505
      %v507 = vpop.f32.mrb[0].mxu0
      %508 = vmatprep.mubr.f32.mxu0 0.0
      %509 = vmatmul.mubr.f32.gmra.mrb[0].mxu0 %v307
      %v510 = vpop.f32.mrb[0].mxu0
      %v511 = vadd.f32 0.0, %v510
      %v512 = vpop.f32.mrb[0].mxu0
      %513 = vmatprep.mubr.f32.mxu0 0.0
      %514 = vmatmul.mubr.f32.gmra.mrb[0].mxu0 %v310
      %v515 = vpop.f32.mrb[0].mxu0
      %v516 = vadd.f32 0.0, %v515
      %v517 = vpop.f32.mrb[0].mxu0
      %518 = vmatprep.mubr.f32.mxu0 0.0
      %519 = vmatmul.mubr.f32.gmra.mrb[0].mxu0 %v313
      %v520 = vpop.f32.mrb[0].mxu0
      %v521 = vadd.f32 0.0, %v520
      %v522 = vpop.f32.mrb[0].mxu0
      %523 = vmatprep.mubr.f32.mxu0 0.0
      %524 = vmatmul.mubr.f32.gmra.mrb[0].mxu0 %v316
      %v525 = vpop.f32.mrb[0].mxu0
      %v526 = vadd.f32 0.0, %v525
      %v527 = vpop.f32.mrb[0].mxu0
      %528 = vmatprep.mubr.f32.mxu0 0.0
      %529 = vmatmul.mubr.f32.gmra.mrb[0].mxu0 %v319
      %v530 = vpop.f32.mrb[0].mxu0
      %v531 = vadd.f32 0.0, %v530
      %v532 = vpop.f32.mrb[0].mxu0
      %533 = vmatprep.mubr.f32.mxu0 0.0
      %534 = vmatmul.mubr.f32.gmra.mrb[0].mxu0 %v322
      %v535 = vpop.f32.mrb[0].mxu0
      %v536 = vadd.f32 0.0, %v535
      %v537 = vpop.f32.mrb[0].mxu0
      %538 = vmatprep.mubr.f32.mxu0 0.0
      %539 = vmatmul.mubr.f32.gmra.mrb[0].mxu0 %v325
      %v540 = vpop.f32.mrb[0].mxu0
      %v541 = vadd.f32 0.0, %v540
      %v542 = vpop.f32.mrb[0].mxu0
      %543 = vmatprep.mubr.f32.mxu0 0.0
      %544 = vmatmul.mubr.f32.gmra.mrb[0].mxu0 %v328
      %v545 = vpop.f32.mrb[0].mxu0
      %v546 = vadd.f32 0.0, %v545
      %v547 = vpop.f32.mrb[0].mxu0
      %548 = vmatprep.mubr.f32.mxu0 0.0
      %549 = vmatmul.mubr.f32.gmra.mrb[0].mxu0 %v331
      %v550 = vpop.f32.mrb[0].mxu0
      %v551 = vadd.f32 0.0, %v550
      %v552 = vpop.f32.mrb[0].mxu0
      %553 = vmatprep.mubr.f32.mxu0 0.0
      %554 = vmatmul.mubr.f32.gmra.mrb[0].mxu0 %v334
      %v555 = vpop.f32.mrb[0].mxu0
      %v556 = vadd.f32 0.0, %v555
      %v557 = vpop.f32.mrb[0].mxu0
      %558 = vmatprep.mubr.f32.mxu0 0.0
      %559 = vmatmul.mubr.f32.gmra.mrb[0].mxu0 %v337
      %v560 = vpop.f32.mrb[0].mxu0
      %v561 = vadd.f32 0.0, %v560
      %v562 = vpop.f32.mrb[0].mxu0
      %563 = vmatprep.mubr.f32.mxu0 0.0
      %564 = vmatmul.mubr.f32.gmra.mrb[0].mxu0 %v340
      %v565 = vpop.f32.mrb[0].mxu0
      %v566 = vadd.f32 0.0, %v565
      %v567 = vpop.f32.mrb[0].mxu0
      %568 = vmatprep.mubr.f32.mxu0 0.0
      %569 = vmatmul.mubr.f32.gmra.mrb[0].mxu0 %v343
      %v570 = vpop.f32.mrb[0].mxu0
      %v571 = vadd.f32 0.0, %v570
      %v572 = vpop.f32.mrb[0].mxu0
      %573 = vdwg.mxu0
      %574 = vst [vmem:[%s208] sm:$0xff] %v416
      %575 = vst [vmem:[%s208 + $0x8] sm:$0xff] %v421
      %576 = vst [vmem:[%s208 + $0x10] sm:$0xff] %v426
      %577 = vst [vmem:[%s208 + $0x18] sm:$0xff] %v431
      %578 = vst [vmem:[%s208 + $0x20] sm:$0xff] %v436
      %579 = vst [vmem:[%s208 + $0x28] sm:$0xff] %v441
      %580 = vst [vmem:[%s208 + $0x30] sm:$0xff] %v446
      %581 = vst [vmem:[%s208 + $0x38] sm:$0xff] %v451
      %582 = vst [vmem:[%s208 + $0x40] sm:$0xff] %v456
      %583 = vst [vmem:[%s208 + $0x48] sm:$0xff] %v461
      %584 = vst [vmem:[%s208 + $0x50] sm:$0xff] %v466
      %585 = vst [vmem:[%s208 + $0x58] sm:$0xff] %v471
      %586 = vst [vmem:[%s208 + $0x60] sm:$0xff] %v476
      %587 = vst [vmem:[%s208 + $0x68] sm:$0xff] %v481
      %588 = vst [vmem:[%s208 + $0x70] sm:$0xff] %v486
      %589 = vst [vmem:[%s208 + $0x78] sm:$0xff] %v491
      %590 = vst [vmem:[%s208 + $0x80] sm:$0xff] %v496
      %591 = vst [vmem:[%s208 + $0x88] sm:$0xff] %v501
      %592 = vst [vmem:[%s208 + $0x90] sm:$0xff] %v506
      %593 = vst [vmem:[%s208 + $0x98] sm:$0xff] %v511
      %594 = vst [vmem:[%s208 + $0xa0] sm:$0xff] %v516
      %595 = vst [vmem:[%s208 + $0xa8] sm:$0xff] %v521
      %596 = vst [vmem:[%s208 + $0xb0] sm:$0xff] %v526
      %597 = vst [vmem:[%s208 + $0xb8] sm:$0xff] %v531
      %598 = vst [vmem:[%s208 + $0xc0] sm:$0xff] %v536
      %599 = vst [vmem:[%s208 + $0xc8] sm:$0xff] %v541
      %600 = vst [vmem:[%s208 + $0xd0] sm:$0xff] %v546
      %601 = vst [vmem:[%s208 + $0xd8] sm:$0xff] %v551
      %602 = vst [vmem:[%s208 + $0xe0] sm:$0xff] %v556
      %603 = vst [vmem:[%s208 + $0xe8] sm:$0xff] %v561
      %604 = vst [vmem:[%s208 + $0xf0] sm:$0xff] %v566
      %605 = vst [vmem:[%s208 + $0xf8] sm:$0xff] %v571
      %v606 = vld [vmem:[%s203 + $0x1] sm:$0xff]
      %v607 = vld [vmem:[%s203 + $0x9] sm:$0xff]
      %v608 = vld [vmem:[%s203 + $0x19] sm:$0xff]
      %v609 = vld [vmem:[%s203 + $0x21] sm:$0xff]
      %v610 = vld [vmem:[%s203 + $0x31] sm:$0xff]
      %v611 = vld [vmem:[%s203 + $0x39] sm:$0xff]
      %v612 = vld [vmem:[%s203 + $0x49] sm:$0xff]
      %v613 = vld [vmem:[%s203 + $0x51] sm:$0xff]
      %v614 = vld [vmem:[%s203 + $0x61] sm:$0xff]
      %v615 = vld [vmem:[%s203 + $0x69] sm:$0xff]
      %v616 = vld [vmem:[%s203 + $0x79] sm:$0xff]
      %v617 = vld [vmem:[%s203 + $0x81] sm:$0xff]
      %v618 = vld [vmem:[%s203 + $0x91] sm:$0xff]
      %v619 = vld [vmem:[%s203 + $0x99] sm:$0xff]
      %v620 = vld [vmem:[%s203 + $0xa9] sm:$0xff]
      %v621 = vld [vmem:[%s203 + $0xb1] sm:$0xff]
      %v622 = vld [vmem:[%s203 + $0xc1] sm:$0xff]
      %v623 = vld [vmem:[%s203 + $0xc9] sm:$0xff]
      %v624 = vld [vmem:[%s203 + $0xd9] sm:$0xff]
      %v625 = vld [vmem:[%s203 + $0xe1] sm:$0xff]
      %v626 = vld [vmem:[%s203 + $0xf1] sm:$0xff]
      %v627 = vld [vmem:[%s203 + $0xf9] sm:$0xff]
      %v628 = vld [vmem:[%s203 + $0x109] sm:$0xff]
      %v629 = vld [vmem:[%s203 + $0x111] sm:$0xff]
      %v630 = vld [vmem:[%s203 + $0x121] sm:$0xff]
      %v631 = vld [vmem:[%s203 + $0x129] sm:$0xff]
      %v632 = vld [vmem:[%s203 + $0x139] sm:$0xff]
      %v633 = vld [vmem:[%s203 + $0x141] sm:$0xff]
      %v634 = vld [vmem:[%s203 + $0x151] sm:$0xff]
      %v635 = vld [vmem:[%s203 + $0x159] sm:$0xff]
      %v636 = vld [vmem:[%s203 + $0x169] sm:$0xff]
      %v637 = vld [vmem:[%s203 + $0x171] sm:$0xff]
      %s638 = scalar_lea.vmem %s1, 4
      %v639 = vld [vmem:[%s638] sm:$0xf]
      %v641 = vsel %vm248, %v606, 0
      %v644 = vsel %vm248, %v607, 0
      %v647 = vsel %vm248, %v608, 0
      %v650 = vsel %vm248, %v609, 0
      %v653 = vsel %vm248, %v610, 0
      %v656 = vsel %vm248, %v611, 0
      %v659 = vsel %vm248, %v612, 0
      %v662 = vsel %vm248, %v613, 0
      %v665 = vsel %vm248, %v614, 0
      %v668 = vsel %vm248, %v615, 0
      %v671 = vsel %vm248, %v616, 0
      %v674 = vsel %vm248, %v617, 0
      %v677 = vsel %vm248, %v618, 0
      %v680 = vsel %vm248, %v619, 0
      %v683 = vsel %vm248, %v620, 0
      %v686 = vsel %vm248, %v621, 0
      %v689 = vsel %vm248, %v622, 0
      %v692 = vsel %vm248, %v623, 0
      %v695 = vsel %vm248, %v624, 0
      %v698 = vsel %vm248, %v625, 0
      %v701 = vsel %vm248, %v626, 0
      %v704 = vsel %vm248, %v627, 0
      %v707 = vsel %vm248, %v628, 0
      %v710 = vsel %vm248, %v629, 0
      %v713 = vsel %vm248, %v630, 0
      %v716 = vsel %vm248, %v631, 0
      %v719 = vsel %vm248, %v632, 0
      %v722 = vsel %vm248, %v633, 0
      %v725 = vsel %vm248, %v634, 0
      %v728 = vsel %vm248, %v635, 0
      %v731 = vsel %vm248, %v636, 0
      %v734 = vsel %vm248, %v637, 0
      %v737 = vsel %vm345, %v639, 0
      %739 = vmatprep.subr.mxu0 0.0
      %740 = vmatpush1.msra.mxu0 %v737
      %741 = vmatprep.subr.mxu0 0.0
      %742 = vmatpush1.msra.mxu0 0.0
      %743 = vmatprep.subr.mxu0 0.0
      %744 = vmatpush1.msra.mxu0 0.0
      %745 = vmatprep.subr.mxu0 0.0
      %746 = vmatpush1.msra.mxu0 0.0
      %747 = vmatprep.subr.mxu0 0.0
      %748 = vmatpush1.msra.mxu0 0.0
      %749 = vmatprep.subr.mxu0 0.0
      %750 = vmatpush1.msra.mxu0 0.0
      %751 = vmatprep.subr.mxu0 0.0
      %752 = vmatpush1.msra.mxu0 0.0
      %753 = vmatprep.subr.mxu0 0.0
      %754 = vmatpush1.msra.mxu0 0.0
      %755 = vmatprep.subr.mxu0 0.0
      %756 = vmatpush1.msra.mxu0 0.0
      %757 = vmatprep.subr.mxu0 0.0
      %758 = vmatpush1.msra.mxu0 0.0
      %759 = vmatprep.subr.mxu0 0.0
      %760 = vmatpush1.msra.mxu0 0.0
      %761 = vmatprep.subr.mxu0 0.0
      %762 = vmatpush1.msra.mxu0 0.0
      %763 = vmatprep.subr.mxu0 0.0
      %764 = vmatpush1.msra.mxu0 0.0
      %765 = vmatprep.subr.mxu0 0.0
      %766 = vmatpush1.msra.mxu0 0.0
      %767 = vmatprep.subr.mxu0 0.0
      %768 = vmatpush1.msra.mxu0 0.0
      %769 = vmatprep.subr.mxu0 0.0
      %770 = vmatpush1.msra.mxu0 0.0
      %771 = vmatprep.subr.mxu0 0.0
      %772 = vmatpush1.msra.mxu0 0.0
      %773 = vmatprep.subr.mxu0 0.0
      %774 = vmatpush1.msra.mxu0 0.0
      %775 = vmatprep.subr.mxu0 0.0
      %776 = vmatpush1.msra.mxu0 0.0
      %777 = vmatprep.subr.mxu0 0.0
      %778 = vmatpush1.msra.mxu0 0.0
      %779 = vmatprep.subr.mxu0 0.0
      %780 = vmatpush1.msra.mxu0 0.0
      %781 = vmatprep.subr.mxu0 0.0
      %782 = vmatpush1.msra.mxu0 0.0
      %783 = vmatprep.subr.mxu0 0.0
      %784 = vmatpush1.msra.mxu0 0.0
      %785 = vmatprep.subr.mxu0 0.0
      %786 = vmatpush1.msra.mxu0 0.0
      %787 = vmatprep.subr.mxu0 0.0
      %788 = vmatpush1.msra.mxu0 0.0
      %789 = vmatprep.subr.mxu0 0.0
      %790 = vmatpush1.msra.mxu0 0.0
      %791 = vmatprep.subr.mxu0 0.0
      %792 = vmatpush1.msra.mxu0 0.0
      %793 = vmatprep.subr.mxu0 0.0
      %794 = vmatpush1.msra.mxu0 0.0
      %795 = vmatprep.subr.mxu0 0.0
      %796 = vmatpush1.msra.mxu0 0.0
      %797 = vmatprep.subr.mxu0 0.0
      %798 = vmatpush1.msra.mxu0 0.0
      %799 = vmatprep.subr.mxu0 0.0
      %800 = vmatpush1.msra.mxu0 0.0
      %801 = vmatprep.subr.mxu0 0.0
      %802 = vmatpush1.msra.mxu0 0.0
      %803 = vmatprep.mubr.f32.mxu0 0.0
      %804 = vmatmul.mubr.f32.gmra.mrb[0].mxu0 %v641
      %v805 = vpop.f32.mrb[0].mxu0
      %v806 = vadd.f32 0.0, %v805
      %v807 = vpop.f32.mrb[0].mxu0
      %808 = vmatprep.mubr.f32.mxu0 0.0
      %809 = vmatmul.mubr.f32.gmra.mrb[0].mxu0 %v644
      %v810 = vpop.f32.mrb[0].mxu0
      %v811 = vadd.f32 0.0, %v810
      %v812 = vpop.f32.mrb[0].mxu0
      %813 = vmatprep.mubr.f32.mxu0 0.0
      %814 = vmatmul.mubr.f32.gmra.mrb[0].mxu0 %v647
      %v815 = vpop.f32.mrb[0].mxu0
      %v816 = vadd.f32 0.0, %v815
      %v817 = vpop.f32.mrb[0].mxu0
      %818 = vmatprep.mubr.f32.mxu0 0.0
      %819 = vmatmul.mubr.f32.gmra.mrb[0].mxu0 %v650
      %v820 = vpop.f32.mrb[0].mxu0
      %v821 = vadd.f32 0.0, %v820
      %v822 = vpop.f32.mrb[0].mxu0
      %823 = vmatprep.mubr.f32.mxu0 0.0
      %824 = vmatmul.mubr.f32.gmra.mrb[0].mxu0 %v653
      %v825 = vpop.f32.mrb[0].mxu0
      %v826 = vadd.f32 0.0, %v825
      %v827 = vpop.f32.mrb[0].mxu0
      %828 = vmatprep.mubr.f32.mxu0 0.0
      %829 = vmatmul.mubr.f32.gmra.mrb[0].mxu0 %v656
      %v830 = vpop.f32.mrb[0].mxu0
      %v831 = vadd.f32 0.0, %v830
      %v832 = vpop.f32.mrb[0].mxu0
      %833 = vmatprep.mubr.f32.mxu0 0.0
      %834 = vmatmul.mubr.f32.gmra.mrb[0].mxu0 %v659
      %v835 = vpop.f32.mrb[0].mxu0
      %v836 = vadd.f32 0.0, %v835
      %v837 = vpop.f32.mrb[0].mxu0
      %838 = vmatprep.mubr.f32.mxu0 0.0
      %839 = vmatmul.mubr.f32.gmra.mrb[0].mxu0 %v662
      %v840 = vpop.f32.mrb[0].mxu0
      %v841 = vadd.f32 0.0, %v840
      %v842 = vpop.f32.mrb[0].mxu0
      %843 = vmatprep.mubr.f32.mxu0 0.0
      %844 = vmatmul.mubr.f32.gmra.mrb[0].mxu0 %v665
      %v845 = vpop.f32.mrb[0].mxu0
      %v846 = vadd.f32 0.0, %v845
      %v847 = vpop.f32.mrb[0].mxu0
      %848 = vmatprep.mubr.f32.mxu0 0.0
      %849 = vmatmul.mubr.f32.gmra.mrb[0].mxu0 %v668
      %v850 = vpop.f32.mrb[0].mxu0
      %v851 = vadd.f32 0.0, %v850
      %v852 = vpop.f32.mrb[0].mxu0
      %853 = vmatprep.mubr.f32.mxu0 0.0
      %854 = vmatmul.mubr.f32.gmra.mrb[0].mxu0 %v671
      %v855 = vpop.f32.mrb[0].mxu0
      %v856 = vadd.f32 0.0, %v855
      %v857 = vpop.f32.mrb[0].mxu0
      %858 = vmatprep.mubr.f32.mxu0 0.0
      %859 = vmatmul.mubr.f32.gmra.mrb[0].mxu0 %v674
      %v860 = vpop.f32.mrb[0].mxu0
      %v861 = vadd.f32 0.0, %v860
      %v862 = vpop.f32.mrb[0].mxu0
      %863 = vmatprep.mubr.f32.mxu0 0.0
      %864 = vmatmul.mubr.f32.gmra.mrb[0].mxu0 %v677
      %v865 = vpop.f32.mrb[0].mxu0
      %v866 = vadd.f32 0.0, %v865
      %v867 = vpop.f32.mrb[0].mxu0
      %868 = vmatprep.mubr.f32.mxu0 0.0
      %869 = vmatmul.mubr.f32.gmra.mrb[0].mxu0 %v680
      %v870 = vpop.f32.mrb[0].mxu0
      %v871 = vadd.f32 0.0, %v870
      %v872 = vpop.f32.mrb[0].mxu0
      %873 = vmatprep.mubr.f32.mxu0 0.0
      %874 = vmatmul.mubr.f32.gmra.mrb[0].mxu0 %v683
      %v875 = vpop.f32.mrb[0].mxu0
      %v876 = vadd.f32 0.0, %v875
      %v877 = vpop.f32.mrb[0].mxu0
      %878 = vmatprep.mubr.f32.mxu0 0.0
      %879 = vmatmul.mubr.f32.gmra.mrb[0].mxu0 %v686
      %v880 = vpop.f32.mrb[0].mxu0
      %v881 = vadd.f32 0.0, %v880
      %v882 = vpop.f32.mrb[0].mxu0
      %883 = vmatprep.mubr.f32.mxu0 0.0
      %884 = vmatmul.mubr.f32.gmra.mrb[0].mxu0 %v689
      %v885 = vpop.f32.mrb[0].mxu0
      %v886 = vadd.f32 0.0, %v885
      %v887 = vpop.f32.mrb[0].mxu0
      %888 = vmatprep.mubr.f32.mxu0 0.0
      %889 = vmatmul.mubr.f32.gmra.mrb[0].mxu0 %v692
      %v890 = vpop.f32.mrb[0].mxu0
      %v891 = vadd.f32 0.0, %v890
      %v892 = vpop.f32.mrb[0].mxu0
      %893 = vmatprep.mubr.f32.mxu0 0.0
      %894 = vmatmul.mubr.f32.gmra.mrb[0].mxu0 %v695
      %v895 = vpop.f32.mrb[0].mxu0
      %v896 = vadd.f32 0.0, %v895
      %v897 = vpop.f32.mrb[0].mxu0
      %898 = vmatprep.mubr.f32.mxu0 0.0
      %899 = vmatmul.mubr.f32.gmra.mrb[0].mxu0 %v698
      %v900 = vpop.f32.mrb[0].mxu0
      %v901 = vadd.f32 0.0, %v900
      %v902 = vpop.f32.mrb[0].mxu0
      %903 = vmatprep.mubr.f32.mxu0 0.0
      %904 = vmatmul.mubr.f32.gmra.mrb[0].mxu0 %v701
      %v905 = vpop.f32.mrb[0].mxu0
      %v906 = vadd.f32 0.0, %v905
      %v907 = vpop.f32.mrb[0].mxu0
      %908 = vmatprep.mubr.f32.mxu0 0.0
      %909 = vmatmul.mubr.f32.gmra.mrb[0].mxu0 %v704
      %v910 = vpop.f32.mrb[0].mxu0
      %v911 = vadd.f32 0.0, %v910
      %v912 = vpop.f32.mrb[0].mxu0
      %913 = vmatprep.mubr.f32.mxu0 0.0
      %914 = vmatmul.mubr.f32.gmra.mrb[0].mxu0 %v707
      %v915 = vpop.f32.mrb[0].mxu0
      %v916 = vadd.f32 0.0, %v915
      %v917 = vpop.f32.mrb[0].mxu0
      %918 = vmatprep.mubr.f32.mxu0 0.0
      %919 = vmatmul.mubr.f32.gmra.mrb[0].mxu0 %v710
      %v920 = vpop.f32.mrb[0].mxu0
      %v921 = vadd.f32 0.0, %v920
      %v922 = vpop.f32.mrb[0].mxu0
      %923 = vmatprep.mubr.f32.mxu0 0.0
      %924 = vmatmul.mubr.f32.gmra.mrb[0].mxu0 %v713
      %v925 = vpop.f32.mrb[0].mxu0
      %v926 = vadd.f32 0.0, %v925
      %v927 = vpop.f32.mrb[0].mxu0
      %928 = vmatprep.mubr.f32.mxu0 0.0
      %929 = vmatmul.mubr.f32.gmra.mrb[0].mxu0 %v716
      %v930 = vpop.f32.mrb[0].mxu0
      %v931 = vadd.f32 0.0, %v930
      %v932 = vpop.f32.mrb[0].mxu0
      %933 = vmatprep.mubr.f32.mxu0 0.0
      %934 = vmatmul.mubr.f32.gmra.mrb[0].mxu0 %v719
      %v935 = vpop.f32.mrb[0].mxu0
      %v936 = vadd.f32 0.0, %v935
      %v937 = vpop.f32.mrb[0].mxu0
      %938 = vmatprep.mubr.f32.mxu0 0.0
      %939 = vmatmul.mubr.f32.gmra.mrb[0].mxu0 %v722
      %v940 = vpop.f32.mrb[0].mxu0
      %v941 = vadd.f32 0.0, %v940
      %v942 = vpop.f32.mrb[0].mxu0
      %943 = vmatprep.mubr.f32.mxu0 0.0
      %944 = vmatmul.mubr.f32.gmra.mrb[0].mxu0 %v725
      %v945 = vpop.f32.mrb[0].mxu0
      %v946 = vadd.f32 0.0, %v945
      %v947 = vpop.f32.mrb[0].mxu0
      %948 = vmatprep.mubr.f32.mxu0 0.0
      %949 = vmatmul.mubr.f32.gmra.mrb[0].mxu0 %v728
      %v950 = vpop.f32.mrb[0].mxu0
      %v951 = vadd.f32 0.0, %v950
      %v952 = vpop.f32.mrb[0].mxu0
      %953 = vmatprep.mubr.f32.mxu0 0.0
      %954 = vmatmul.mubr.f32.gmra.mrb[0].mxu0 %v731
      %v955 = vpop.f32.mrb[0].mxu0
      %v956 = vadd.f32 0.0, %v955
      %v957 = vpop.f32.mrb[0].mxu0
      %958 = vmatprep.mubr.f32.mxu0 0.0
      %959 = vmatmul.mubr.f32.gmra.mrb[0].mxu0 %v734
      %v960 = vpop.f32.mrb[0].mxu0
      %v961 = vadd.f32 0.0, %v960
      %v962 = vpop.f32.mrb[0].mxu0
      %963 = vdwg.mxu0
      %v964 = vld [vmem:[%s208] sm:$0xff]
      %v965 = vld [vmem:[%s208 + $0x8] sm:$0xff]
      %v966 = vld [vmem:[%s208 + $0x10] sm:$0xff]
      %v967 = vld [vmem:[%s208 + $0x18] sm:$0xff]
      %v968 = vld [vmem:[%s208 + $0x20] sm:$0xff]
      %v969 = vld [vmem:[%s208 + $0x28] sm:$0xff]
      %v970 = vld [vmem:[%s208 + $0x30] sm:$0xff]
      %v971 = vld [vmem:[%s208 + $0x38] sm:$0xff]
      %v972 = vld [vmem:[%s208 + $0x40] sm:$0xff]
      %v973 = vld [vmem:[%s208 + $0x48] sm:$0xff]
      %v974 = vld [vmem:[%s208 + $0x50] sm:$0xff]
      %v975 = vld [vmem:[%s208 + $0x58] sm:$0xff]
      %v976 = vld [vmem:[%s208 + $0x60] sm:$0xff]
      %v977 = vld [vmem:[%s208 + $0x68] sm:$0xff]
      %v978 = vld [vmem:[%s208 + $0x70] sm:$0xff]
      %v979 = vld [vmem:[%s208 + $0x78] sm:$0xff]
      %v980 = vld [vmem:[%s208 + $0x80] sm:$0xff]
      %v981 = vld [vmem:[%s208 + $0x88] sm:$0xff]
      %v982 = vld [vmem:[%s208 + $0x90] sm:$0xff]
      %v983 = vld [vmem:[%s208 + $0x98] sm:$0xff]
      %v984 = vld [vmem:[%s208 + $0xa0] sm:$0xff]
      %v985 = vld [vmem:[%s208 + $0xa8] sm:$0xff]
      %v986 = vld [vmem:[%s208 + $0xb0] sm:$0xff]
      %v987 = vld [vmem:[%s208 + $0xb8] sm:$0xff]
      %v988 = vld [vmem:[%s208 + $0xc0] sm:$0xff]
      %v989 = vld [vmem:[%s208 + $0xc8] sm:$0xff]
      %v990 = vld [vmem:[%s208 + $0xd0] sm:$0xff]
      %v991 = vld [vmem:[%s208 + $0xd8] sm:$0xff]
      %v992 = vld [vmem:[%s208 + $0xe0] sm:$0xff]
      %v993 = vld [vmem:[%s208 + $0xe8] sm:$0xff]
      %v994 = vld [vmem:[%s208 + $0xf0] sm:$0xff]
      %v995 = vld [vmem:[%s208 + $0xf8] sm:$0xff]
      %v996 = vadd.f32 %v964, %v806
      %v997 = vadd.f32 %v965, %v811
      %v998 = vadd.f32 %v966, %v816
      %v999 = vadd.f32 %v967, %v821
      %v1000 = vadd.f32 %v968, %v826
      %v1001 = vadd.f32 %v969, %v831
      %v1002 = vadd.f32 %v970, %v836
      %v1003 = vadd.f32 %v971, %v841
      %v1004 = vadd.f32 %v972, %v846
      %v1005 = vadd.f32 %v973, %v851
      %v1006 = vadd.f32 %v974, %v856
      %v1007 = vadd.f32 %v975, %v861
      %v1008 = vadd.f32 %v976, %v866
      %v1009 = vadd.f32 %v977, %v871
      %v1010 = vadd.f32 %v978, %v876
      %v1011 = vadd.f32 %v979, %v881
      %v1012 = vadd.f32 %v980, %v886
      %v1013 = vadd.f32 %v981, %v891
      %v1014 = vadd.f32 %v982, %v896
      %v1015 = vadd.f32 %v983, %v901
      %v1016 = vadd.f32 %v984, %v906
      %v1017 = vadd.f32 %v985, %v911
      %v1018 = vadd.f32 %v986, %v916
      %v1019 = vadd.f32 %v987, %v921
      %v1020 = vadd.f32 %v988, %v926
      %v1021 = vadd.f32 %v989, %v931
      %v1022 = vadd.f32 %v990, %v936
      %v1023 = vadd.f32 %v991, %v941
      %v1024 = vadd.f32 %v992, %v946
      %v1025 = vadd.f32 %v993, %v951
      %v1026 = vadd.f32 %v994, %v956
      %v1027 = vadd.f32 %v995, %v961
      %1028 = vst [vmem:[%s208] sm:$0xff] %v996
      %1029 = vst [vmem:[%s208 + $0x8] sm:$0xff] %v997
      %1030 = vst [vmem:[%s208 + $0x10] sm:$0xff] %v998
      %1031 = vst [vmem:[%s208 + $0x18] sm:$0xff] %v999
      %1032 = vst [vmem:[%s208 + $0x20] sm:$0xff] %v1000
      %1033 = vst [vmem:[%s208 + $0x28] sm:$0xff] %v1001
      %1034 = vst [vmem:[%s208 + $0x30] sm:$0xff] %v1002
      %1035 = vst [vmem:[%s208 + $0x38] sm:$0xff] %v1003
      %1036 = vst [vmem:[%s208 + $0x40] sm:$0xff] %v1004
      %1037 = vst [vmem:[%s208 + $0x48] sm:$0xff] %v1005
      %1038 = vst [vmem:[%s208 + $0x50] sm:$0xff] %v1006
      %1039 = vst [vmem:[%s208 + $0x58] sm:$0xff] %v1007
      %1040 = vst [vmem:[%s208 + $0x60] sm:$0xff] %v1008
      %1041 = vst [vmem:[%s208 + $0x68] sm:$0xff] %v1009
      %1042 = vst [vmem:[%s208 + $0x70] sm:$0xff] %v1010
      %1043 = vst [vmem:[%s208 + $0x78] sm:$0xff] %v1011
      %1044 = vst [vmem:[%s208 + $0x80] sm:$0xff] %v1012
      %1045 = vst [vmem:[%s208 + $0x88] sm:$0xff] %v1013
      %1046 = vst [vmem:[%s208 + $0x90] sm:$0xff] %v1014
      %1047 = vst [vmem:[%s208 + $0x98] sm:$0xff] %v1015
      %1048 = vst [vmem:[%s208 + $0xa0] sm:$0xff] %v1016
      %1049 = vst [vmem:[%s208 + $0xa8] sm:$0xff] %v1017
      %1050 = vst [vmem:[%s208 + $0xb0] sm:$0xff] %v1018
      %1051 = vst [vmem:[%s208 + $0xb8] sm:$0xff] %v1019
      %1052 = vst [vmem:[%s208 + $0xc0] sm:$0xff] %v1020
      %1053 = vst [vmem:[%s208 + $0xc8] sm:$0xff] %v1021
      %1054 = vst [vmem:[%s208 + $0xd0] sm:$0xff] %v1022
      %1055 = vst [vmem:[%s208 + $0xd8] sm:$0xff] %v1023
      %1056 = vst [vmem:[%s208 + $0xe0] sm:$0xff] %v1024
      %1057 = vst [vmem:[%s208 + $0xe8] sm:$0xff] %v1025
      %1058 = vst [vmem:[%s208 + $0xf0] sm:$0xff] %v1026
      %1059 = vst [vmem:[%s208 + $0xf8] sm:$0xff] %v1027
      %v1060 = vld [vmem:[%s203 + $0x2] sm:$0xff]
      %v1061 = vld [vmem:[%s203 + $0xa] sm:$0xff]
      %v1062 = vld [vmem:[%s203 + $0x1a] sm:$0xff]
      %v1063 = vld [vmem:[%s203 + $0x22] sm:$0xff]
      %v1064 = vld [vmem:[%s203 + $0x32] sm:$0xff]
      %v1065 = vld [vmem:[%s203 + $0x3a] sm:$0xff]
      %v1066 = vld [vmem:[%s203 + $0x4a] sm:$0xff]
      %v1067 = vld [vmem:[%s203 + $0x52] sm:$0xff]
      %v1068 = vld [vmem:[%s203 + $0x62] sm:$0xff]
      %v1069 = vld [vmem:[%s203 + $0x6a] sm:$0xff]
      %v1070 = vld [vmem:[%s203 + $0x7a] sm:$0xff]
      %v1071 = vld [vmem:[%s203 + $0x82] sm:$0xff]
      %v1072 = vld [vmem:[%s203 + $0x92] sm:$0xff]
      %v1073 = vld [vmem:[%s203 + $0x9a] sm:$0xff]
      %v1074 = vld [vmem:[%s203 + $0xaa] sm:$0xff]
      %v1075 = vld [vmem:[%s203 + $0xb2] sm:$0xff]
      %v1076 = vld [vmem:[%s203 + $0xc2] sm:$0xff]
      %v1077 = vld [vmem:[%s203 + $0xca] sm:$0xff]
      %v1078 = vld [vmem:[%s203 + $0xda] sm:$0xff]
      %v1079 = vld [vmem:[%s203 + $0xe2] sm:$0xff]
      %v1080 = vld [vmem:[%s203 + $0xf2] sm:$0xff]
      %v1081 = vld [vmem:[%s203 + $0xfa] sm:$0xff]
      %v1082 = vld [vmem:[%s203 + $0x10a] sm:$0xff]
      %v1083 = vld [vmem:[%s203 + $0x112] sm:$0xff]
      %v1084 = vld [vmem:[%s203 + $0x122] sm:$0xff]
      %v1085 = vld [vmem:[%s203 + $0x12a] sm:$0xff]
      %v1086 = vld [vmem:[%s203 + $0x13a] sm:$0xff]
      %v1087 = vld [vmem:[%s203 + $0x142] sm:$0xff]
      %v1088 = vld [vmem:[%s203 + $0x152] sm:$0xff]
      %v1089 = vld [vmem:[%s203 + $0x15a] sm:$0xff]
      %v1090 = vld [vmem:[%s203 + $0x16a] sm:$0xff]
      %v1091 = vld [vmem:[%s203 + $0x172] sm:$0xff]
      %s1092 = scalar_lea.vmem %s1, 8
      %v1093 = vld [vmem:[%s1092] sm:$0xf]
      %v1095 = vsel %vm248, %v1060, 0
      %v1098 = vsel %vm248, %v1061, 0
      %v1101 = vsel %vm248, %v1062, 0
      %v1104 = vsel %vm248, %v1063, 0
      %v1107 = vsel %vm248, %v1064, 0
      %v1110 = vsel %vm248, %v1065, 0
      %v1113 = vsel %vm248, %v1066, 0
      %v1116 = vsel %vm248, %v1067, 0
      %v1119 = vsel %vm248, %v1068, 0
      %v1122 = vsel %vm248, %v1069, 0
      %v1125 = vsel %vm248, %v1070, 0
      %v1128 = vsel %vm248, %v1071, 0
      %v1131 = vsel %vm248, %v1072, 0
      %v1134 = vsel %vm248, %v1073, 0
      %v1137 = vsel %vm248, %v1074, 0
      %v1140 = vsel %vm248, %v1075, 0
      %v1143 = vsel %vm248, %v1076, 0
      %v1146 = vsel %vm248, %v1077, 0
      %v1149 = vsel %vm248, %v1078, 0
      %v1152 = vsel %vm248, %v1079, 0
      %v1155 = vsel %vm248, %v1080, 0
      %v1158 = vsel %vm248, %v1081, 0
      %v1161 = vsel %vm248, %v1082, 0
      %v1164 = vsel %vm248, %v1083, 0
      %v1167 = vsel %vm248, %v1084, 0
      %v1170 = vsel %vm248, %v1085, 0
      %v1173 = vsel %vm248, %v1086, 0
      %v1176 = vsel %vm248, %v1087, 0
      %v1179 = vsel %vm248, %v1088, 0
      %v1182 = vsel %vm248, %v1089, 0
      %v1185 = vsel %vm248, %v1090, 0
      %v1188 = vsel %vm248, %v1091, 0
      %v1191 = vsel %vm345, %v1093, 0
      %1193 = vmatprep.subr.mxu0 0.0
      %1194 = vmatpush1.msra.mxu0 %v1191
      %1195 = vmatprep.subr.mxu0 0.0
      %1196 = vmatpush1.msra.mxu0 0.0
      %1197 = vmatprep.subr.mxu0 0.0
      %1198 = vmatpush1.msra.mxu0 0.0
      %1199 = vmatprep.subr.mxu0 0.0
      %1200 = vmatpush1.msra.mxu0 0.0
      %1201 = vmatprep.subr.mxu0 0.0
      %1202 = vmatpush1.msra.mxu0 0.0
      %1203 = vmatprep.subr.mxu0 0.0
      %1204 = vmatpush1.msra.mxu0 0.0
      %1205 = vmatprep.subr.mxu0 0.0
      %1206 = vmatpush1.msra.mxu0 0.0
      %1207 = vmatprep.subr.mxu0 0.0
      %1208 = vmatpush1.msra.mxu0 0.0
      %1209 = vmatprep.subr.mxu0 0.0
      %1210 = vmatpush1.msra.mxu0 0.0
      %1211 = vmatprep.subr.mxu0 0.0
      %1212 = vmatpush1.msra.mxu0 0.0
      %1213 = vmatprep.subr.mxu0 0.0
      %1214 = vmatpush1.msra.mxu0 0.0
      %1215 = vmatprep.subr.mxu0 0.0
      %1216 = vmatpush1.msra.mxu0 0.0
      %1217 = vmatprep.subr.mxu0 0.0
      %1218 = vmatpush1.msra.mxu0 0.0
      %1219 = vmatprep.subr.mxu0 0.0
      %1220 = vmatpush1.msra.mxu0 0.0
      %1221 = vmatprep.subr.mxu0 0.0
      %1222 = vmatpush1.msra.mxu0 0.0
      %1223 = vmatprep.subr.mxu0 0.0
      %1224 = vmatpush1.msra.mxu0 0.0
      %1225 = vmatprep.subr.mxu0 0.0
      %1226 = vmatpush1.msra.mxu0 0.0
      %1227 = vmatprep.subr.mxu0 0.0
      %1228 = vmatpush1.msra.mxu0 0.0
      %1229 = vmatprep.subr.mxu0 0.0
      %1230 = vmatpush1.msra.mxu0 0.0
      %1231 = vmatprep.subr.mxu0 0.0
      %1232 = vmatpush1.msra.mxu0 0.0
      %1233 = vmatprep.subr.mxu0 0.0
      %1234 = vmatpush1.msra.mxu0 0.0
      %1235 = vmatprep.subr.mxu0 0.0
      %1236 = vmatpush1.msra.mxu0 0.0
      %1237 = vmatprep.subr.mxu0 0.0
      %1238 = vmatpush1.msra.mxu0 0.0
      %1239 = vmatprep.subr.mxu0 0.0
      %1240 = vmatpush1.msra.mxu0 0.0
      %1241 = vmatprep.subr.mxu0 0.0
      %1242 = vmatpush1.msra.mxu0 0.0
      %1243 = vmatprep.subr.mxu0 0.0
      %1244 = vmatpush1.msra.mxu0 0.0
      %1245 = vmatprep.subr.mxu0 0.0
      %1246 = vmatpush1.msra.mxu0 0.0
      %1247 = vmatprep.subr.mxu0 0.0
      %1248 = vmatpush1.msra.mxu0 0.0
      %1249 = vmatprep.subr.mxu0 0.0
      %1250 = vmatpush1.msra.mxu0 0.0
      %1251 = vmatprep.subr.mxu0 0.0
      %1252 = vmatpush1.msra.mxu0 0.0
      %1253 = vmatprep.subr.mxu0 0.0
      %1254 = vmatpush1.msra.mxu0 0.0
      %1255 = vmatprep.subr.mxu0 0.0
      %1256 = vmatpush1.msra.mxu0 0.0
      %1257 = vmatprep.mubr.f32.mxu0 0.0
      %1258 = vmatmul.mubr.f32.gmra.mrb[0].mxu0 %v1095
      %v1259 = vpop.f32.mrb[0].mxu0
      %v1260 = vadd.f32 0.0, %v1259
      %v1261 = vpop.f32.mrb[0].mxu0
      %1262 = vmatprep.mubr.f32.mxu0 0.0
      %1263 = vmatmul.mubr.f32.gmra.mrb[0].mxu0 %v1098
      %v1264 = vpop.f32.mrb[0].mxu0
      %v1265 = vadd.f32 0.0, %v1264
      %v1266 = vpop.f32.mrb[0].mxu0
      %1267 = vmatprep.mubr.f32.mxu0 0.0
      %1268 = vmatmul.mubr.f32.gmra.mrb[0].mxu0 %v1101
      %v1269 = vpop.f32.mrb[0].mxu0
      %v1270 = vadd.f32 0.0, %v1269
      %v1271 = vpop.f32.mrb[0].mxu0
      %1272 = vmatprep.mubr.f32.mxu0 0.0
      %1273 = vmatmul.mubr.f32.gmra.mrb[0].mxu0 %v1104
      %v1274 = vpop.f32.mrb[0].mxu0
      %v1275 = vadd.f32 0.0, %v1274
      %v1276 = vpop.f32.mrb[0].mxu0
      %1277 = vmatprep.mubr.f32.mxu0 0.0
      %1278 = vmatmul.mubr.f32.gmra.mrb[0].mxu0 %v1107
      %v1279 = vpop.f32.mrb[0].mxu0
      %v1280 = vadd.f32 0.0, %v1279
      %v1281 = vpop.f32.mrb[0].mxu0
      %1282 = vmatprep.mubr.f32.mxu0 0.0
      %1283 = vmatmul.mubr.f32.gmra.mrb[0].mxu0 %v1110
      %v1284 = vpop.f32.mrb[0].mxu0
      %v1285 = vadd.f32 0.0, %v1284
      %v1286 = vpop.f32.mrb[0].mxu0
      %1287 = vmatprep.mubr.f32.mxu0 0.0
      %1288 = vmatmul.mubr.f32.gmra.mrb[0].mxu0 %v1113
      %v1289 = vpop.f32.mrb[0].mxu0
      %v1290 = vadd.f32 0.0, %v1289
      %v1291 = vpop.f32.mrb[0].mxu0
      %1292 = vmatprep.mubr.f32.mxu0 0.0
      %1293 = vmatmul.mubr.f32.gmra.mrb[0].mxu0 %v1116
      %v1294 = vpop.f32.mrb[0].mxu0
      %v1295 = vadd.f32 0.0, %v1294
      %v1296 = vpop.f32.mrb[0].mxu0
      %1297 = vmatprep.mubr.f32.mxu0 0.0
      %1298 = vmatmul.mubr.f32.gmra.mrb[0].mxu0 %v1119
      %v1299 = vpop.f32.mrb[0].mxu0
      %v1300 = vadd.f32 0.0, %v1299
      %v1301 = vpop.f32.mrb[0].mxu0
      %1302 = vmatprep.mubr.f32.mxu0 0.0
      %1303 = vmatmul.mubr.f32.gmra.mrb[0].mxu0 %v1122
      %v1304 = vpop.f32.mrb[0].mxu0
      %v1305 = vadd.f32 0.0, %v1304
      %v1306 = vpop.f32.mrb[0].mxu0
      %1307 = vmatprep.mubr.f32.mxu0 0.0
      %1308 = vmatmul.mubr.f32.gmra.mrb[0].mxu0 %v1125
      %v1309 = vpop.f32.mrb[0].mxu0
      %v1310 = vadd.f32 0.0, %v1309
      %v1311 = vpop.f32.mrb[0].mxu0
      %1312 = vmatprep.mubr.f32.mxu0 0.0
      %1313 = vmatmul.mubr.f32.gmra.mrb[0].mxu0 %v1128
      %v1314 = vpop.f32.mrb[0].mxu0
      %v1315 = vadd.f32 0.0, %v1314
      %v1316 = vpop.f32.mrb[0].mxu0
      %1317 = vmatprep.mubr.f32.mxu0 0.0
      %1318 = vmatmul.mubr.f32.gmra.mrb[0].mxu0 %v1131
      %v1319 = vpop.f32.mrb[0].mxu0
      %v1320 = vadd.f32 0.0, %v1319
      %v1321 = vpop.f32.mrb[0].mxu0
      %1322 = vmatprep.mubr.f32.mxu0 0.0
      %1323 = vmatmul.mubr.f32.gmra.mrb[0].mxu0 %v1134
      %v1324 = vpop.f32.mrb[0].mxu0
      %v1325 = vadd.f32 0.0, %v1324
      %v1326 = vpop.f32.mrb[0].mxu0
      %1327 = vmatprep.mubr.f32.mxu0 0.0
      %1328 = vmatmul.mubr.f32.gmra.mrb[0].mxu0 %v1137
      %v1329 = vpop.f32.mrb[0].mxu0
      %v1330 = vadd.f32 0.0, %v1329
      %v1331 = vpop.f32.mrb[0].mxu0
      %1332 = vmatprep.mubr.f32.mxu0 0.0
      %1333 = vmatmul.mubr.f32.gmra.mrb[0].mxu0 %v1140
      %v1334 = vpop.f32.mrb[0].mxu0
      %v1335 = vadd.f32 0.0, %v1334
      %v1336 = vpop.f32.mrb[0].mxu0
      %1337 = vmatprep.mubr.f32.mxu0 0.0
      %1338 = vmatmul.mubr.f32.gmra.mrb[0].mxu0 %v1143
      %v1339 = vpop.f32.mrb[0].mxu0
      %v1340 = vadd.f32 0.0, %v1339
      %v1341 = vpop.f32.mrb[0].mxu0
      %1342 = vmatprep.mubr.f32.mxu0 0.0
      %1343 = vmatmul.mubr.f32.gmra.mrb[0].mxu0 %v1146
      %v1344 = vpop.f32.mrb[0].mxu0
      %v1345 = vadd.f32 0.0, %v1344
      %v1346 = vpop.f32.mrb[0].mxu0
      %1347 = vmatprep.mubr.f32.mxu0 0.0
      %1348 = vmatmul.mubr.f32.gmra.mrb[0].mxu0 %v1149
      %v1349 = vpop.f32.mrb[0].mxu0
      %v1350 = vadd.f32 0.0, %v1349
      %v1351 = vpop.f32.mrb[0].mxu0
      %1352 = vmatprep.mubr.f32.mxu0 0.0
      %1353 = vmatmul.mubr.f32.gmra.mrb[0].mxu0 %v1152
      %v1354 = vpop.f32.mrb[0].mxu0
      %v1355 = vadd.f32 0.0, %v1354
      %v1356 = vpop.f32.mrb[0].mxu0
      %1357 = vmatprep.mubr.f32.mxu0 0.0
      %1358 = vmatmul.mubr.f32.gmra.mrb[0].mxu0 %v1155
      %v1359 = vpop.f32.mrb[0].mxu0
      %v1360 = vadd.f32 0.0, %v1359
      %v1361 = vpop.f32.mrb[0].mxu0
      %1362 = vmatprep.mubr.f32.mxu0 0.0
      %1363 = vmatmul.mubr.f32.gmra.mrb[0].mxu0 %v1158
      %v1364 = vpop.f32.mrb[0].mxu0
      %v1365 = vadd.f32 0.0, %v1364
      %v1366 = vpop.f32.mrb[0].mxu0
      %1367 = vmatprep.mubr.f32.mxu0 0.0
      %1368 = vmatmul.mubr.f32.gmra.mrb[0].mxu0 %v1161
      %v1369 = vpop.f32.mrb[0].mxu0
      %v1370 = vadd.f32 0.0, %v1369
      %v1371 = vpop.f32.mrb[0].mxu0
      %1372 = vmatprep.mubr.f32.mxu0 0.0
      %1373 = vmatmul.mubr.f32.gmra.mrb[0].mxu0 %v1164
      %v1374 = vpop.f32.mrb[0].mxu0
      %v1375 = vadd.f32 0.0, %v1374
      %v1376 = vpop.f32.mrb[0].mxu0
      %1377 = vmatprep.mubr.f32.mxu0 0.0
      %1378 = vmatmul.mubr.f32.gmra.mrb[0].mxu0 %v1167
      %v1379 = vpop.f32.mrb[0].mxu0
      %v1380 = vadd.f32 0.0, %v1379
      %v1381 = vpop.f32.mrb[0].mxu0
      %1382 = vmatprep.mubr.f32.mxu0 0.0
      %1383 = vmatmul.mubr.f32.gmra.mrb[0].mxu0 %v1170
      %v1384 = vpop.f32.mrb[0].mxu0
      %v1385 = vadd.f32 0.0, %v1384
      %v1386 = vpop.f32.mrb[0].mxu0
      %1387 = vmatprep.mubr.f32.mxu0 0.0
      %1388 = vmatmul.mubr.f32.gmra.mrb[0].mxu0 %v1173
      %v1389 = vpop.f32.mrb[0].mxu0
      %v1390 = vadd.f32 0.0, %v1389
      %v1391 = vpop.f32.mrb[0].mxu0
      %1392 = vmatprep.mubr.f32.mxu0 0.0
      %1393 = vmatmul.mubr.f32.gmra.mrb[0].mxu0 %v1176
      %v1394 = vpop.f32.mrb[0].mxu0
      %v1395 = vadd.f32 0.0, %v1394
      %v1396 = vpop.f32.mrb[0].mxu0
      %1397 = vmatprep.mubr.f32.mxu0 0.0
      %1398 = vmatmul.mubr.f32.gmra.mrb[0].mxu0 %v1179
      %v1399 = vpop.f32.mrb[0].mxu0
      %v1400 = vadd.f32 0.0, %v1399
      %v1401 = vpop.f32.mrb[0].mxu0
      %1402 = vmatprep.mubr.f32.mxu0 0.0
      %1403 = vmatmul.mubr.f32.gmra.mrb[0].mxu0 %v1182
      %v1404 = vpop.f32.mrb[0].mxu0
      %v1405 = vadd.f32 0.0, %v1404
      %v1406 = vpop.f32.mrb[0].mxu0
      %1407 = vmatprep.mubr.f32.mxu0 0.0
      %1408 = vmatmul.mubr.f32.gmra.mrb[0].mxu0 %v1185
      %v1409 = vpop.f32.mrb[0].mxu0
      %v1410 = vadd.f32 0.0, %v1409
      %v1411 = vpop.f32.mrb[0].mxu0
      %1412 = vmatprep.mubr.f32.mxu0 0.0
      %1413 = vmatmul.mubr.f32.gmra.mrb[0].mxu0 %v1188
      %v1414 = vpop.f32.mrb[0].mxu0
      %v1415 = vadd.f32 0.0, %v1414
      %v1416 = vpop.f32.mrb[0].mxu0
      %1417 = vdwg.mxu0
      %v1418 = vld [vmem:[%s208] sm:$0xff]
      %v1419 = vld [vmem:[%s208 + $0x8] sm:$0xff]
      %v1420 = vld [vmem:[%s208 + $0x10] sm:$0xff]
      %v1421 = vld [vmem:[%s208 + $0x18] sm:$0xff]
      %v1422 = vld [vmem:[%s208 + $0x20] sm:$0xff]
      %v1423 = vld [vmem:[%s208 + $0x28] sm:$0xff]
      %v1424 = vld [vmem:[%s208 + $0x30] sm:$0xff]
      %v1425 = vld [vmem:[%s208 + $0x38] sm:$0xff]
      %v1426 = vld [vmem:[%s208 + $0x40] sm:$0xff]
      %v1427 = vld [vmem:[%s208 + $0x48] sm:$0xff]
      %v1428 = vld [vmem:[%s208 + $0x50] sm:$0xff]
      %v1429 = vld [vmem:[%s208 + $0x58] sm:$0xff]
      %v1430 = vld [vmem:[%s208 + $0x60] sm:$0xff]
      %v1431 = vld [vmem:[%s208 + $0x68] sm:$0xff]
      %v1432 = vld [vmem:[%s208 + $0x70] sm:$0xff]
      %v1433 = vld [vmem:[%s208 + $0x78] sm:$0xff]
      %v1434 = vld [vmem:[%s208 + $0x80] sm:$0xff]
      %v1435 = vld [vmem:[%s208 + $0x88] sm:$0xff]
      %v1436 = vld [vmem:[%s208 + $0x90] sm:$0xff]
      %v1437 = vld [vmem:[%s208 + $0x98] sm:$0xff]
      %v1438 = vld [vmem:[%s208 + $0xa0] sm:$0xff]
      %v1439 = vld [vmem:[%s208 + $0xa8] sm:$0xff]
      %v1440 = vld [vmem:[%s208 + $0xb0] sm:$0xff]
      %v1441 = vld [vmem:[%s208 + $0xb8] sm:$0xff]
      %v1442 = vld [vmem:[%s208 + $0xc0] sm:$0xff]
      %v1443 = vld [vmem:[%s208 + $0xc8] sm:$0xff]
      %v1444 = vld [vmem:[%s208 + $0xd0] sm:$0xff]
      %v1445 = vld [vmem:[%s208 + $0xd8] sm:$0xff]
      %v1446 = vld [vmem:[%s208 + $0xe0] sm:$0xff]
      %v1447 = vld [vmem:[%s208 + $0xe8] sm:$0xff]
      %v1448 = vld [vmem:[%s208 + $0xf0] sm:$0xff]
      %v1449 = vld [vmem:[%s208 + $0xf8] sm:$0xff]
      %v1450 = vadd.f32 %v1418, %v1260
      %v1451 = vadd.f32 %v1419, %v1265
      %v1452 = vadd.f32 %v1420, %v1270
      %v1453 = vadd.f32 %v1421, %v1275
      %v1454 = vadd.f32 %v1422, %v1280
      %v1455 = vadd.f32 %v1423, %v1285
      %v1456 = vadd.f32 %v1424, %v1290
      %v1457 = vadd.f32 %v1425, %v1295
      %v1458 = vadd.f32 %v1426, %v1300
      %v1459 = vadd.f32 %v1427, %v1305
      %v1460 = vadd.f32 %v1428, %v1310
      %v1461 = vadd.f32 %v1429, %v1315
      %v1462 = vadd.f32 %v1430, %v1320
      %v1463 = vadd.f32 %v1431, %v1325
      %v1464 = vadd.f32 %v1432, %v1330
      %v1465 = vadd.f32 %v1433, %v1335
      %v1466 = vadd.f32 %v1434, %v1340
      %v1467 = vadd.f32 %v1435, %v1345
      %v1468 = vadd.f32 %v1436, %v1350
      %v1469 = vadd.f32 %v1437, %v1355
      %v1470 = vadd.f32 %v1438, %v1360
      %v1471 = vadd.f32 %v1439, %v1365
      %v1472 = vadd.f32 %v1440, %v1370
      %v1473 = vadd.f32 %v1441, %v1375
      %v1474 = vadd.f32 %v1442, %v1380
      %v1475 = vadd.f32 %v1443, %v1385
      %v1476 = vadd.f32 %v1444, %v1390
      %v1477 = vadd.f32 %v1445, %v1395
      %v1478 = vadd.f32 %v1446, %v1400
      %v1479 = vadd.f32 %v1447, %v1405
      %v1480 = vadd.f32 %v1448, %v1410
      %v1481 = vadd.f32 %v1449, %v1415
      %1482 = vst [vmem:[%s208] sm:$0xff] %v1450
      %1483 = vst [vmem:[%s208 + $0x8] sm:$0xff] %v1451
      %1484 = vst [vmem:[%s208 + $0x10] sm:$0xff] %v1452
      %1485 = vst [vmem:[%s208 + $0x18] sm:$0xff] %v1453
      %1486 = vst [vmem:[%s208 + $0x20] sm:$0xff] %v1454
      %1487 = vst [vmem:[%s208 + $0x28] sm:$0xff] %v1455
      %1488 = vst [vmem:[%s208 + $0x30] sm:$0xff] %v1456
      %1489 = vst [vmem:[%s208 + $0x38] sm:$0xff] %v1457
      %1490 = vst [vmem:[%s208 + $0x40] sm:$0xff] %v1458
      %1491 = vst [vmem:[%s208 + $0x48] sm:$0xff] %v1459
      %1492 = vst [vmem:[%s208 + $0x50] sm:$0xff] %v1460
      %1493 = vst [vmem:[%s208 + $0x58] sm:$0xff] %v1461
      %1494 = vst [vmem:[%s208 + $0x60] sm:$0xff] %v1462
      %1495 = vst [vmem:[%s208 + $0x68] sm:$0xff] %v1463
      %1496 = vst [vmem:[%s208 + $0x70] sm:$0xff] %v1464
      %1497 = vst [vmem:[%s208 + $0x78] sm:$0xff] %v1465
      %1498 = vst [vmem:[%s208 + $0x80] sm:$0xff] %v1466
      %1499 = vst [vmem:[%s208 + $0x88] sm:$0xff] %v1467
      %1500 = vst [vmem:[%s208 + $0x90] sm:$0xff] %v1468
      %1501 = vst [vmem:[%s208 + $0x98] sm:$0xff] %v1469
      %1502 = vst [vmem:[%s208 + $0xa0] sm:$0xff] %v1470
      %1503 = vst [vmem:[%s208 + $0xa8] sm:$0xff] %v1471
      %1504 = vst [vmem:[%s208 + $0xb0] sm:$0xff] %v1472
      %1505 = vst [vmem:[%s208 + $0xb8] sm:$0xff] %v1473
      %1506 = vst [vmem:[%s208 + $0xc0] sm:$0xff] %v1474
      %1507 = vst [vmem:[%s208 + $0xc8] sm:$0xff] %v1475
      %1508 = vst [vmem:[%s208 + $0xd0] sm:$0xff] %v1476
      %1509 = vst [vmem:[%s208 + $0xd8] sm:$0xff] %v1477
      %1510 = vst [vmem:[%s208 + $0xe0] sm:$0xff] %v1478
      %1511 = vst [vmem:[%s208 + $0xe8] sm:$0xff] %v1479
      %1512 = vst [vmem:[%s208 + $0xf0] sm:$0xff] %v1480
      %1513 = vst [vmem:[%s208 + $0xf8] sm:$0xff] %v1481
      %s1514 = scalar_lea.vmem %s203, 24
      %v1515 = vld [vmem:[%s1514] sm:$0xff]
      %v1516 = vld [vmem:[%s1514 + $0x8] sm:$0xff]
      %v1517 = vld [vmem:[%s1514 + $0x18] sm:$0xff]
      %v1518 = vld [vmem:[%s1514 + $0x20] sm:$0xff]
      %v1519 = vld [vmem:[%s1514 + $0x30] sm:$0xff]
      %v1520 = vld [vmem:[%s1514 + $0x38] sm:$0xff]
      %v1521 = vld [vmem:[%s1514 + $0x48] sm:$0xff]
      %v1522 = vld [vmem:[%s1514 + $0x50] sm:$0xff]
      %v1523 = vld [vmem:[%s1514 + $0x60] sm:$0xff]
      %v1524 = vld [vmem:[%s1514 + $0x68] sm:$0xff]
      %v1525 = vld [vmem:[%s1514 + $0x78] sm:$0xff]
      %v1526 = vld [vmem:[%s1514 + $0x80] sm:$0xff]
      %v1527 = vld [vmem:[%s1514 + $0x90] sm:$0xff]
      %v1528 = vld [vmem:[%s1514 + $0x98] sm:$0xff]
      %v1529 = vld [vmem:[%s1514 + $0xa8] sm:$0xff]
      %v1530 = vld [vmem:[%s1514 + $0xb0] sm:$0xff]
      %v1531 = vld [vmem:[%s1514 + $0xc0] sm:$0xff]
      %v1532 = vld [vmem:[%s1514 + $0xc8] sm:$0xff]
      %v1533 = vld [vmem:[%s1514 + $0xd8] sm:$0xff]
      %v1534 = vld [vmem:[%s1514 + $0xe0] sm:$0xff]
      %v1535 = vld [vmem:[%s1514 + $0xf0] sm:$0xff]
      %v1536 = vld [vmem:[%s1514 + $0xf8] sm:$0xff]
      %v1537 = vld [vmem:[%s1514 + $0x108] sm:$0xff]
      %v1538 = vld [vmem:[%s1514 + $0x110] sm:$0xff]
      %v1539 = vld [vmem:[%s1514 + $0x120] sm:$0xff]
      %v1540 = vld [vmem:[%s1514 + $0x128] sm:$0xff]
      %v1541 = vld [vmem:[%s1514 + $0x138] sm:$0xff]
      %v1542 = vld [vmem:[%s1514 + $0x140] sm:$0xff]
      %v1543 = vld [vmem:[%s1514 + $0x150] sm:$0xff]
      %v1544 = vld [vmem:[%s1514 + $0x158] sm:$0xff]
      %v1545 = vld [vmem:[%s1514 + $0x168] sm:$0xff]
      %v1546 = vld [vmem:[%s1514 + $0x170] sm:$0xff]
      %s1547 = scalar_lea.vmem %s1, 12
      %v1548 = vld [vmem:[%s1547] sm:$0xf]
      %v1550 = vsel %vm248, %v1515, 0
      %v1553 = vsel %vm248, %v1516, 0
      %v1556 = vsel %vm248, %v1517, 0
      %v1559 = vsel %vm248, %v1518, 0
      %v1562 = vsel %vm248, %v1519, 0
      %v1565 = vsel %vm248, %v1520, 0
      %v1568 = vsel %vm248, %v1521, 0
      %v1571 = vsel %vm248, %v1522, 0
      %v1574 = vsel %vm248, %v1523, 0
      %v1577 = vsel %vm248, %v1524, 0
      %v1580 = vsel %vm248, %v1525, 0
      %v1583 = vsel %vm248, %v1526, 0
      %v1586 = vsel %vm248, %v1527, 0
      %v1589 = vsel %vm248, %v1528, 0
      %v1592 = vsel %vm248, %v1529, 0
      %v1595 = vsel %vm248, %v1530, 0
      %v1598 = vsel %vm248, %v1531, 0
      %v1601 = vsel %vm248, %v1532, 0
      %v1604 = vsel %vm248, %v1533, 0
      %v1607 = vsel %vm248, %v1534, 0
      %v1610 = vsel %vm248, %v1535, 0
      %v1613 = vsel %vm248, %v1536, 0
      %v1616 = vsel %vm248, %v1537, 0
      %v1619 = vsel %vm248, %v1538, 0
      %v1622 = vsel %vm248, %v1539, 0
      %v1625 = vsel %vm248, %v1540, 0
      %v1628 = vsel %vm248, %v1541, 0
      %v1631 = vsel %vm248, %v1542, 0
      %v1634 = vsel %vm248, %v1543, 0
      %v1637 = vsel %vm248, %v1544, 0
      %v1640 = vsel %vm248, %v1545, 0
      %v1643 = vsel %vm248, %v1546, 0
      %v1646 = vsel %vm345, %v1548, 0
      %1648 = vmatprep.subr.mxu0 0.0
      %1649 = vmatpush1.msra.mxu0 %v1646
      %1650 = vmatprep.subr.mxu0 0.0
      %1651 = vmatpush1.msra.mxu0 0.0
      %1652 = vmatprep.subr.mxu0 0.0
      %1653 = vmatpush1.msra.mxu0 0.0
      %1654 = vmatprep.subr.mxu0 0.0
      %1655 = vmatpush1.msra.mxu0 0.0
      %1656 = vmatprep.subr.mxu0 0.0
      %1657 = vmatpush1.msra.mxu0 0.0
      %1658 = vmatprep.subr.mxu0 0.0
      %1659 = vmatpush1.msra.mxu0 0.0
      %1660 = vmatprep.subr.mxu0 0.0
      %1661 = vmatpush1.msra.mxu0 0.0
      %1662 = vmatprep.subr.mxu0 0.0
      %1663 = vmatpush1.msra.mxu0 0.0
      %1664 = vmatprep.subr.mxu0 0.0
      %1665 = vmatpush1.msra.mxu0 0.0
      %1666 = vmatprep.subr.mxu0 0.0
      %1667 = vmatpush1.msra.mxu0 0.0
      %1668 = vmatprep.subr.mxu0 0.0
      %1669 = vmatpush1.msra.mxu0 0.0
      %1670 = vmatprep.subr.mxu0 0.0
      %1671 = vmatpush1.msra.mxu0 0.0
      %1672 = vmatprep.subr.mxu0 0.0
      %1673 = vmatpush1.msra.mxu0 0.0
      %1674 = vmatprep.subr.mxu0 0.0
      %1675 = vmatpush1.msra.mxu0 0.0
      %1676 = vmatprep.subr.mxu0 0.0
      %1677 = vmatpush1.msra.mxu0 0.0
      %1678 = vmatprep.subr.mxu0 0.0
      %1679 = vmatpush1.msra.mxu0 0.0
      %1680 = vmatprep.subr.mxu0 0.0
      %1681 = vmatpush1.msra.mxu0 0.0
      %1682 = vmatprep.subr.mxu0 0.0
      %1683 = vmatpush1.msra.mxu0 0.0
      %1684 = vmatprep.subr.mxu0 0.0
      %1685 = vmatpush1.msra.mxu0 0.0
      %1686 = vmatprep.subr.mxu0 0.0
      %1687 = vmatpush1.msra.mxu0 0.0
      %1688 = vmatprep.subr.mxu0 0.0
      %1689 = vmatpush1.msra.mxu0 0.0
      %1690 = vmatprep.subr.mxu0 0.0
      %1691 = vmatpush1.msra.mxu0 0.0
      %1692 = vmatprep.subr.mxu0 0.0
      %1693 = vmatpush1.msra.mxu0 0.0
      %1694 = vmatprep.subr.mxu0 0.0
      %1695 = vmatpush1.msra.mxu0 0.0
      %1696 = vmatprep.subr.mxu0 0.0
      %1697 = vmatpush1.msra.mxu0 0.0
      %1698 = vmatprep.subr.mxu0 0.0
      %1699 = vmatpush1.msra.mxu0 0.0
      %1700 = vmatprep.subr.mxu0 0.0
      %1701 = vmatpush1.msra.mxu0 0.0
      %1702 = vmatprep.subr.mxu0 0.0
      %1703 = vmatpush1.msra.mxu0 0.0
      %1704 = vmatprep.subr.mxu0 0.0
      %1705 = vmatpush1.msra.mxu0 0.0
      %1706 = vmatprep.subr.mxu0 0.0
      %1707 = vmatpush1.msra.mxu0 0.0
      %1708 = vmatprep.subr.mxu0 0.0
      %1709 = vmatpush1.msra.mxu0 0.0
      %1710 = vmatprep.subr.mxu0 0.0
      %1711 = vmatpush1.msra.mxu0 0.0
      %1712 = vmatprep.mubr.f32.mxu0 0.0
      %1713 = vmatmul.mubr.f32.gmra.mrb[0].mxu0 %v1550
      %v1714 = vpop.f32.mrb[0].mxu0
      %v1715 = vadd.f32 0.0, %v1714
      %v1716 = vpop.f32.mrb[0].mxu0
      %1717 = vmatprep.mubr.f32.mxu0 0.0
      %1718 = vmatmul.mubr.f32.gmra.mrb[0].mxu0 %v1553
      %v1719 = vpop.f32.mrb[0].mxu0
      %v1720 = vadd.f32 0.0, %v1719
      %v1721 = vpop.f32.mrb[0].mxu0
      %1722 = vmatprep.mubr.f32.mxu0 0.0
      %1723 = vmatmul.mubr.f32.gmra.mrb[0].mxu0 %v1556
      %v1724 = vpop.f32.mrb[0].mxu0
      %v1725 = vadd.f32 0.0, %v1724
      %v1726 = vpop.f32.mrb[0].mxu0
      %1727 = vmatprep.mubr.f32.mxu0 0.0
      %1728 = vmatmul.mubr.f32.gmra.mrb[0].mxu0 %v1559
      %v1729 = vpop.f32.mrb[0].mxu0
      %v1730 = vadd.f32 0.0, %v1729
      %v1731 = vpop.f32.mrb[0].mxu0
      %1732 = vmatprep.mubr.f32.mxu0 0.0
      %1733 = vmatmul.mubr.f32.gmra.mrb[0].mxu0 %v1562
      %v1734 = vpop.f32.mrb[0].mxu0
      %v1735 = vadd.f32 0.0, %v1734
      %v1736 = vpop.f32.mrb[0].mxu0
      %1737 = vmatprep.mubr.f32.mxu0 0.0
      %1738 = vmatmul.mubr.f32.gmra.mrb[0].mxu0 %v1565
      %v1739 = vpop.f32.mrb[0].mxu0
      %v1740 = vadd.f32 0.0, %v1739
      %v1741 = vpop.f32.mrb[0].mxu0
      %1742 = vmatprep.mubr.f32.mxu0 0.0
      %1743 = vmatmul.mubr.f32.gmra.mrb[0].mxu0 %v1568
      %v1744 = vpop.f32.mrb[0].mxu0
      %v1745 = vadd.f32 0.0, %v1744
      %v1746 = vpop.f32.mrb[0].mxu0
      %1747 = vmatprep.mubr.f32.mxu0 0.0
      %1748 = vmatmul.mubr.f32.gmra.mrb[0].mxu0 %v1571
      %v1749 = vpop.f32.mrb[0].mxu0
      %v1750 = vadd.f32 0.0, %v1749
      %v1751 = vpop.f32.mrb[0].mxu0
      %1752 = vmatprep.mubr.f32.mxu0 0.0
      %1753 = vmatmul.mubr.f32.gmra.mrb[0].mxu0 %v1574
      %v1754 = vpop.f32.mrb[0].mxu0
      %v1755 = vadd.f32 0.0, %v1754
      %v1756 = vpop.f32.mrb[0].mxu0
      %1757 = vmatprep.mubr.f32.mxu0 0.0
      %1758 = vmatmul.mubr.f32.gmra.mrb[0].mxu0 %v1577
      %v1759 = vpop.f32.mrb[0].mxu0
      %v1760 = vadd.f32 0.0, %v1759
      %v1761 = vpop.f32.mrb[0].mxu0
      %1762 = vmatprep.mubr.f32.mxu0 0.0
      %1763 = vmatmul.mubr.f32.gmra.mrb[0].mxu0 %v1580
      %v1764 = vpop.f32.mrb[0].mxu0
      %v1765 = vadd.f32 0.0, %v1764
      %v1766 = vpop.f32.mrb[0].mxu0
      %1767 = vmatprep.mubr.f32.mxu0 0.0
      %1768 = vmatmul.mubr.f32.gmra.mrb[0].mxu0 %v1583
      %v1769 = vpop.f32.mrb[0].mxu0
      %v1770 = vadd.f32 0.0, %v1769
      %v1771 = vpop.f32.mrb[0].mxu0
      %1772 = vmatprep.mubr.f32.mxu0 0.0
      %1773 = vmatmul.mubr.f32.gmra.mrb[0].mxu0 %v1586
      %v1774 = vpop.f32.mrb[0].mxu0
      %v1775 = vadd.f32 0.0, %v1774
      %v1776 = vpop.f32.mrb[0].mxu0
      %1777 = vmatprep.mubr.f32.mxu0 0.0
      %1778 = vmatmul.mubr.f32.gmra.mrb[0].mxu0 %v1589
      %v1779 = vpop.f32.mrb[0].mxu0
      %v1780 = vadd.f32 0.0, %v1779
      %v1781 = vpop.f32.mrb[0].mxu0
      %1782 = vmatprep.mubr.f32.mxu0 0.0
      %1783 = vmatmul.mubr.f32.gmra.mrb[0].mxu0 %v1592
      %v1784 = vpop.f32.mrb[0].mxu0
      %v1785 = vadd.f32 0.0, %v1784
      %v1786 = vpop.f32.mrb[0].mxu0
      %1787 = vmatprep.mubr.f32.mxu0 0.0
      %1788 = vmatmul.mubr.f32.gmra.mrb[0].mxu0 %v1595
      %v1789 = vpop.f32.mrb[0].mxu0
      %v1790 = vadd.f32 0.0, %v1789
      %v1791 = vpop.f32.mrb[0].mxu0
      %1792 = vmatprep.mubr.f32.mxu0 0.0
      %1793 = vmatmul.mubr.f32.gmra.mrb[0].mxu0 %v1598
      %v1794 = vpop.f32.mrb[0].mxu0
      %v1795 = vadd.f32 0.0, %v1794
      %v1796 = vpop.f32.mrb[0].mxu0
      %1797 = vmatprep.mubr.f32.mxu0 0.0
      %1798 = vmatmul.mubr.f32.gmra.mrb[0].mxu0 %v1601
      %v1799 = vpop.f32.mrb[0].mxu0
      %v1800 = vadd.f32 0.0, %v1799
      %v1801 = vpop.f32.mrb[0].mxu0
      %1802 = vmatprep.mubr.f32.mxu0 0.0
      %1803 = vmatmul.mubr.f32.gmra.mrb[0].mxu0 %v1604
      %v1804 = vpop.f32.mrb[0].mxu0
      %v1805 = vadd.f32 0.0, %v1804
      %v1806 = vpop.f32.mrb[0].mxu0
      %1807 = vmatprep.mubr.f32.mxu0 0.0
      %1808 = vmatmul.mubr.f32.gmra.mrb[0].mxu0 %v1607
      %v1809 = vpop.f32.mrb[0].mxu0
      %v1810 = vadd.f32 0.0, %v1809
      %v1811 = vpop.f32.mrb[0].mxu0
      %1812 = vmatprep.mubr.f32.mxu0 0.0
      %1813 = vmatmul.mubr.f32.gmra.mrb[0].mxu0 %v1610
      %v1814 = vpop.f32.mrb[0].mxu0
      %v1815 = vadd.f32 0.0, %v1814
      %v1816 = vpop.f32.mrb[0].mxu0
      %1817 = vmatprep.mubr.f32.mxu0 0.0
      %1818 = vmatmul.mubr.f32.gmra.mrb[0].mxu0 %v1613
      %v1819 = vpop.f32.mrb[0].mxu0
      %v1820 = vadd.f32 0.0, %v1819
      %v1821 = vpop.f32.mrb[0].mxu0
      %1822 = vmatprep.mubr.f32.mxu0 0.0
      %1823 = vmatmul.mubr.f32.gmra.mrb[0].mxu0 %v1616
      %v1824 = vpop.f32.mrb[0].mxu0
      %v1825 = vadd.f32 0.0, %v1824
      %v1826 = vpop.f32.mrb[0].mxu0
      %1827 = vmatprep.mubr.f32.mxu0 0.0
      %1828 = vmatmul.mubr.f32.gmra.mrb[0].mxu0 %v1619
      %v1829 = vpop.f32.mrb[0].mxu0
      %v1830 = vadd.f32 0.0, %v1829
      %v1831 = vpop.f32.mrb[0].mxu0
      %1832 = vmatprep.mubr.f32.mxu0 0.0
      %1833 = vmatmul.mubr.f32.gmra.mrb[0].mxu0 %v1622
      %v1834 = vpop.f32.mrb[0].mxu0
      %v1835 = vadd.f32 0.0, %v1834
      %v1836 = vpop.f32.mrb[0].mxu0
      %1837 = vmatprep.mubr.f32.mxu0 0.0
      %1838 = vmatmul.mubr.f32.gmra.mrb[0].mxu0 %v1625
      %v1839 = vpop.f32.mrb[0].mxu0
      %v1840 = vadd.f32 0.0, %v1839
      %v1841 = vpop.f32.mrb[0].mxu0
      %1842 = vmatprep.mubr.f32.mxu0 0.0
      %1843 = vmatmul.mubr.f32.gmra.mrb[0].mxu0 %v1628
      %v1844 = vpop.f32.mrb[0].mxu0
      %v1845 = vadd.f32 0.0, %v1844
      %v1846 = vpop.f32.mrb[0].mxu0
      %1847 = vmatprep.mubr.f32.mxu0 0.0
      %1848 = vmatmul.mubr.f32.gmra.mrb[0].mxu0 %v1631
      %v1849 = vpop.f32.mrb[0].mxu0
      %v1850 = vadd.f32 0.0, %v1849
      %v1851 = vpop.f32.mrb[0].mxu0
      %1852 = vmatprep.mubr.f32.mxu0 0.0
      %1853 = vmatmul.mubr.f32.gmra.mrb[0].mxu0 %v1634
      %v1854 = vpop.f32.mrb[0].mxu0
      %v1855 = vadd.f32 0.0, %v1854
      %v1856 = vpop.f32.mrb[0].mxu0
      %1857 = vmatprep.mubr.f32.mxu0 0.0
      %1858 = vmatmul.mubr.f32.gmra.mrb[0].mxu0 %v1637
      %v1859 = vpop.f32.mrb[0].mxu0
      %v1860 = vadd.f32 0.0, %v1859
      %v1861 = vpop.f32.mrb[0].mxu0
      %1862 = vmatprep.mubr.f32.mxu0 0.0
      %1863 = vmatmul.mubr.f32.gmra.mrb[0].mxu0 %v1640
      %v1864 = vpop.f32.mrb[0].mxu0
      %v1865 = vadd.f32 0.0, %v1864
      %v1866 = vpop.f32.mrb[0].mxu0
      %1867 = vmatprep.mubr.f32.mxu0 0.0
      %1868 = vmatmul.mubr.f32.gmra.mrb[0].mxu0 %v1643
      %v1869 = vpop.f32.mrb[0].mxu0
      %v1870 = vadd.f32 0.0, %v1869
      %v1871 = vpop.f32.mrb[0].mxu0
      %1872 = vdwg.mxu0
      %v1873 = vld [vmem:[%s208] sm:$0xff]
      %v1874 = vld [vmem:[%s208 + $0x8] sm:$0xff]
      %v1875 = vld [vmem:[%s208 + $0x10] sm:$0xff]
      %v1876 = vld [vmem:[%s208 + $0x18] sm:$0xff]
      %v1877 = vld [vmem:[%s208 + $0x20] sm:$0xff]
      %v1878 = vld [vmem:[%s208 + $0x28] sm:$0xff]
      %v1879 = vld [vmem:[%s208 + $0x30] sm:$0xff]
      %v1880 = vld [vmem:[%s208 + $0x38] sm:$0xff]
      %v1881 = vld [vmem:[%s208 + $0x40] sm:$0xff]
      %v1882 = vld [vmem:[%s208 + $0x48] sm:$0xff]
      %v1883 = vld [vmem:[%s208 + $0x50] sm:$0xff]
      %v1884 = vld [vmem:[%s208 + $0x58] sm:$0xff]
      %v1885 = vld [vmem:[%s208 + $0x60] sm:$0xff]
      %v1886 = vld [vmem:[%s208 + $0x68] sm:$0xff]
      %v1887 = vld [vmem:[%s208 + $0x70] sm:$0xff]
      %v1888 = vld [vmem:[%s208 + $0x78] sm:$0xff]
      %v1889 = vld [vmem:[%s208 + $0x80] sm:$0xff]
      %v1890 = vld [vmem:[%s208 + $0x88] sm:$0xff]
      %v1891 = vld [vmem:[%s208 + $0x90] sm:$0xff]
      %v1892 = vld [vmem:[%s208 + $0x98] sm:$0xff]
      %v1893 = vld [vmem:[%s208 + $0xa0] sm:$0xff]
      %v1894 = vld [vmem:[%s208 + $0xa8] sm:$0xff]
      %v1895 = vld [vmem:[%s208 + $0xb0] sm:$0xff]
      %v1896 = vld [vmem:[%s208 + $0xb8] sm:$0xff]
      %v1897 = vld [vmem:[%s208 + $0xc0] sm:$0xff]
      %v1898 = vld [vmem:[%s208 + $0xc8] sm:$0xff]
      %v1899 = vld [vmem:[%s208 + $0xd0] sm:$0xff]
      %v1900 = vld [vmem:[%s208 + $0xd8] sm:$0xff]
      %v1901 = vld [vmem:[%s208 + $0xe0] sm:$0xff]
      %v1902 = vld [vmem:[%s208 + $0xe8] sm:$0xff]
      %v1903 = vld [vmem:[%s208 + $0xf0] sm:$0xff]
      %v1904 = vld [vmem:[%s208 + $0xf8] sm:$0xff]
      %v1905 = vadd.f32 %v1873, %v1715
      %v1906 = vadd.f32 %v1874, %v1720
      %v1907 = vadd.f32 %v1875, %v1725
      %v1908 = vadd.f32 %v1876, %v1730
      %v1909 = vadd.f32 %v1877, %v1735
      %v1910 = vadd.f32 %v1878, %v1740
      %v1911 = vadd.f32 %v1879, %v1745
      %v1912 = vadd.f32 %v1880, %v1750
      %v1913 = vadd.f32 %v1881, %v1755
      %v1914 = vadd.f32 %v1882, %v1760
      %v1915 = vadd.f32 %v1883, %v1765
      %v1916 = vadd.f32 %v1884, %v1770
      %v1917 = vadd.f32 %v1885, %v1775
      %v1918 = vadd.f32 %v1886, %v1780
      %v1919 = vadd.f32 %v1887, %v1785
      %v1920 = vadd.f32 %v1888, %v1790
      %v1921 = vadd.f32 %v1889, %v1795
      %v1922 = vadd.f32 %v1890, %v1800
      %v1923 = vadd.f32 %v1891, %v1805
      %v1924 = vadd.f32 %v1892, %v1810
      %v1925 = vadd.f32 %v1893, %v1815
      %v1926 = vadd.f32 %v1894, %v1820
      %v1927 = vadd.f32 %v1895, %v1825
      %v1928 = vadd.f32 %v1896, %v1830
      %v1929 = vadd.f32 %v1897, %v1835
      %v1930 = vadd.f32 %v1898, %v1840
      %v1931 = vadd.f32 %v1899, %v1845
      %v1932 = vadd.f32 %v1900, %v1850
      %v1933 = vadd.f32 %v1901, %v1855
      %v1934 = vadd.f32 %v1902, %v1860
      %v1935 = vadd.f32 %v1903, %v1865
      %v1936 = vadd.f32 %v1904, %v1870
      %1937 = vst [vmem:[%s208] sm:$0xff] %v1905
      %1938 = vst [vmem:[%s208 + $0x8] sm:$0xff] %v1906
      %1939 = vst [vmem:[%s208 + $0x10] sm:$0xff] %v1907
      %1940 = vst [vmem:[%s208 + $0x18] sm:$0xff] %v1908
      %1941 = vst [vmem:[%s208 + $0x20] sm:$0xff] %v1909
      %1942 = vst [vmem:[%s208 + $0x28] sm:$0xff] %v1910
      %1943 = vst [vmem:[%s208 + $0x30] sm:$0xff] %v1911
      %1944 = vst [vmem:[%s208 + $0x38] sm:$0xff] %v1912
      %1945 = vst [vmem:[%s208 + $0x40] sm:$0xff] %v1913
      %1946 = vst [vmem:[%s208 + $0x48] sm:$0xff] %v1914
      %1947 = vst [vmem:[%s208 + $0x50] sm:$0xff] %v1915
      %1948 = vst [vmem:[%s208 + $0x58] sm:$0xff] %v1916
      %1949 = vst [vmem:[%s208 + $0x60] sm:$0xff] %v1917
      %1950 = vst [vmem:[%s208 + $0x68] sm:$0xff] %v1918
      %1951 = vst [vmem:[%s208 + $0x70] sm:$0xff] %v1919
      %1952 = vst [vmem:[%s208 + $0x78] sm:$0xff] %v1920
      %1953 = vst [vmem:[%s208 + $0x80] sm:$0xff] %v1921
      %1954 = vst [vmem:[%s208 + $0x88] sm:$0xff] %v1922
      %1955 = vst [vmem:[%s208 + $0x90] sm:$0xff] %v1923
      %1956 = vst [vmem:[%s208 + $0x98] sm:$0xff] %v1924
      %1957 = vst [vmem:[%s208 + $0xa0] sm:$0xff] %v1925
      %1958 = vst [vmem:[%s208 + $0xa8] sm:$0xff] %v1926
      %1959 = vst [vmem:[%s208 + $0xb0] sm:$0xff] %v1927
      %1960 = vst [vmem:[%s208 + $0xb8] sm:$0xff] %v1928
      %1961 = vst [vmem:[%s208 + $0xc0] sm:$0xff] %v1929
      %1962 = vst [vmem:[%s208 + $0xc8] sm:$0xff] %v1930
      %1963 = vst [vmem:[%s208 + $0xd0] sm:$0xff] %v1931
      %1964 = vst [vmem:[%s208 + $0xd8] sm:$0xff] %v1932
      %1965 = vst [vmem:[%s208 + $0xe0] sm:$0xff] %v1933
      %1966 = vst [vmem:[%s208 + $0xe8] sm:$0xff] %v1934
      %1967 = vst [vmem:[%s208 + $0xf0] sm:$0xff] %v1935
      %1968 = vst [vmem:[%s208 + $0xf8] sm:$0xff] %v1936
      %v1969 = vld [vmem:[%s1514 + $0x1] sm:$0xff]
      %v1970 = vld [vmem:[%s1514 + $0x9] sm:$0xff]
      %v1971 = vld [vmem:[%s1514 + $0x19] sm:$0xff]
      %v1972 = vld [vmem:[%s1514 + $0x21] sm:$0xff]
      %v1973 = vld [vmem:[%s1514 + $0x31] sm:$0xff]
      %v1974 = vld [vmem:[%s1514 + $0x39] sm:$0xff]
      %v1975 = vld [vmem:[%s1514 + $0x49] sm:$0xff]
      %v1976 = vld [vmem:[%s1514 + $0x51] sm:$0xff]
      %v1977 = vld [vmem:[%s1514 + $0x61] sm:$0xff]
      %v1978 = vld [vmem:[%s1514 + $0x69] sm:$0xff]
      %v1979 = vld [vmem:[%s1514 + $0x79] sm:$0xff]
      %v1980 = vld [vmem:[%s1514 + $0x81] sm:$0xff]
      %v1981 = vld [vmem:[%s1514 + $0x91] sm:$0xff]
      %v1982 = vld [vmem:[%s1514 + $0x99] sm:$0xff]
      %v1983 = vld [vmem:[%s1514 + $0xa9] sm:$0xff]
      %v1984 = vld [vmem:[%s1514 + $0xb1] sm:$0xff]
      %v1985 = vld [vmem:[%s1514 + $0xc1] sm:$0xff]
      %v1986 = vld [vmem:[%s1514 + $0xc9] sm:$0xff]
      %v1987 = vld [vmem:[%s1514 + $0xd9] sm:$0xff]
      %v1988 = vld [vmem:[%s1514 + $0xe1] sm:$0xff]
      %v1989 = vld [vmem:[%s1514 + $0xf1] sm:$0xff]
      %v1990 = vld [vmem:[%s1514 + $0xf9] sm:$0xff]
      %v1991 = vld [vmem:[%s1514 + $0x109] sm:$0xff]
      %v1992 = vld [vmem:[%s1514 + $0x111] sm:$0xff]
      %v1993 = vld [vmem:[%s1514 + $0x121] sm:$0xff]
      %v1994 = vld [vmem:[%s1514 + $0x129] sm:$0xff]
      %v1995 = vld [vmem:[%s1514 + $0x139] sm:$0xff]
      %v1996 = vld [vmem:[%s1514 + $0x141] sm:$0xff]
      %v1997 = vld [vmem:[%s1514 + $0x151] sm:$0xff]
      %v1998 = vld [vmem:[%s1514 + $0x159] sm:$0xff]
      %v1999 = vld [vmem:[%s1514 + $0x169] sm:$0xff]
      %v2000 = vld [vmem:[%s1514 + $0x171] sm:$0xff]
      %s2001 = scalar_lea.vmem %s1, 16
      %v2002 = vld [vmem:[%s2001] sm:$0xf]
      %v2004 = vsel %vm248, %v1969, 0
      %v2007 = vsel %vm248, %v1970, 0
      %v2010 = vsel %vm248, %v1971, 0
      %v2013 = vsel %vm248, %v1972, 0
      %v2016 = vsel %vm248, %v1973, 0
      %v2019 = vsel %vm248, %v1974, 0
      %v2022 = vsel %vm248, %v1975, 0
      %v2025 = vsel %vm248, %v1976, 0
      %v2028 = vsel %vm248, %v1977, 0
      %v2031 = vsel %vm248, %v1978, 0
      %v2034 = vsel %vm248, %v1979, 0
      %v2037 = vsel %vm248, %v1980, 0
      %v2040 = vsel %vm248, %v1981, 0
      %v2043 = vsel %vm248, %v1982, 0
      %v2046 = vsel %vm248, %v1983, 0
      %v2049 = vsel %vm248, %v1984, 0
      %v2052 = vsel %vm248, %v1985, 0
      %v2055 = vsel %vm248, %v1986, 0
      %v2058 = vsel %vm248, %v1987, 0
      %v2061 = vsel %vm248, %v1988, 0
      %v2064 = vsel %vm248, %v1989, 0
      %v2067 = vsel %vm248, %v1990, 0
      %v2070 = vsel %vm248, %v1991, 0
      %v2073 = vsel %vm248, %v1992, 0
      %v2076 = vsel %vm248, %v1993, 0
      %v2079 = vsel %vm248, %v1994, 0
      %v2082 = vsel %vm248, %v1995, 0
      %v2085 = vsel %vm248, %v1996, 0
      %v2088 = vsel %vm248, %v1997, 0
      %v2091 = vsel %vm248, %v1998, 0
      %v2094 = vsel %vm248, %v1999, 0
      %v2097 = vsel %vm248, %v2000, 0
      %v2100 = vsel %vm345, %v2002, 0
      %2102 = vmatprep.subr.mxu0 0.0
      %2103 = vmatpush1.msra.mxu0 %v2100
      %2104 = vmatprep.subr.mxu0 0.0
      %2105 = vmatpush1.msra.mxu0 0.0
      %2106 = vmatprep.subr.mxu0 0.0
      %2107 = vmatpush1.msra.mxu0 0.0
      %2108 = vmatprep.subr.mxu0 0.0
      %2109 = vmatpush1.msra.mxu0 0.0
      %2110 = vmatprep.subr.mxu0 0.0
      %2111 = vmatpush1.msra.mxu0 0.0
      %2112 = vmatprep.subr.mxu0 0.0
      %2113 = vmatpush1.msra.mxu0 0.0
      %2114 = vmatprep.subr.mxu0 0.0
      %2115 = vmatpush1.msra.mxu0 0.0
      %2116 = vmatprep.subr.mxu0 0.0
      %2117 = vmatpush1.msra.mxu0 0.0
      %2118 = vmatprep.subr.mxu0 0.0
      %2119 = vmatpush1.msra.mxu0 0.0
      %2120 = vmatprep.subr.mxu0 0.0
      %2121 = vmatpush1.msra.mxu0 0.0
      %2122 = vmatprep.subr.mxu0 0.0
      %2123 = vmatpush1.msra.mxu0 0.0
      %2124 = vmatprep.subr.mxu0 0.0
      %2125 = vmatpush1.msra.mxu0 0.0
      %2126 = vmatprep.subr.mxu0 0.0
      %2127 = vmatpush1.msra.mxu0 0.0
      %2128 = vmatprep.subr.mxu0 0.0
      %2129 = vmatpush1.msra.mxu0 0.0
      %2130 = vmatprep.subr.mxu0 0.0
      %2131 = vmatpush1.msra.mxu0 0.0
      %2132 = vmatprep.subr.mxu0 0.0
      %2133 = vmatpush1.msra.mxu0 0.0
      %2134 = vmatprep.subr.mxu0 0.0
      %2135 = vmatpush1.msra.mxu0 0.0
      %2136 = vmatprep.subr.mxu0 0.0
      %2137 = vmatpush1.msra.mxu0 0.0
      %2138 = vmatprep.subr.mxu0 0.0
      %2139 = vmatpush1.msra.mxu0 0.0
      %2140 = vmatprep.subr.mxu0 0.0
      %2141 = vmatpush1.msra.mxu0 0.0
      %2142 = vmatprep.subr.mxu0 0.0
      %2143 = vmatpush1.msra.mxu0 0.0
      %2144 = vmatprep.subr.mxu0 0.0
      %2145 = vmatpush1.msra.mxu0 0.0
      %2146 = vmatprep.subr.mxu0 0.0
      %2147 = vmatpush1.msra.mxu0 0.0
      %2148 = vmatprep.subr.mxu0 0.0
      %2149 = vmatpush1.msra.mxu0 0.0
      %2150 = vmatprep.subr.mxu0 0.0
      %2151 = vmatpush1.msra.mxu0 0.0
      %2152 = vmatprep.subr.mxu0 0.0
      %2153 = vmatpush1.msra.mxu0 0.0
      %2154 = vmatprep.subr.mxu0 0.0
      %2155 = vmatpush1.msra.mxu0 0.0
      %2156 = vmatprep.subr.mxu0 0.0
      %2157 = vmatpush1.msra.mxu0 0.0
      %2158 = vmatprep.subr.mxu0 0.0
      %2159 = vmatpush1.msra.mxu0 0.0
      %2160 = vmatprep.subr.mxu0 0.0
      %2161 = vmatpush1.msra.mxu0 0.0
      %2162 = vmatprep.subr.mxu0 0.0
      %2163 = vmatpush1.msra.mxu0 0.0
      %2164 = vmatprep.subr.mxu0 0.0
      %2165 = vmatpush1.msra.mxu0 0.0
      %2166 = vmatprep.mubr.f32.mxu0 0.0
      %2167 = vmatmul.mubr.f32.gmra.mrb[0].mxu0 %v2004
      %v2168 = vpop.f32.mrb[0].mxu0
      %v2169 = vadd.f32 0.0, %v2168
      %v2170 = vpop.f32.mrb[0].mxu0
      %2171 = vmatprep.mubr.f32.mxu0 0.0
      %2172 = vmatmul.mubr.f32.gmra.mrb[0].mxu0 %v2007
      %v2173 = vpop.f32.mrb[0].mxu0
      %v2174 = vadd.f32 0.0, %v2173
      %v2175 = vpop.f32.mrb[0].mxu0
      %2176 = vmatprep.mubr.f32.mxu0 0.0
      %2177 = vmatmul.mubr.f32.gmra.mrb[0].mxu0 %v2010
      %v2178 = vpop.f32.mrb[0].mxu0
      %v2179 = vadd.f32 0.0, %v2178
      %v2180 = vpop.f32.mrb[0].mxu0
      %2181 = vmatprep.mubr.f32.mxu0 0.0
      %2182 = vmatmul.mubr.f32.gmra.mrb[0].mxu0 %v2013
      %v2183 = vpop.f32.mrb[0].mxu0
      %v2184 = vadd.f32 0.0, %v2183
      %v2185 = vpop.f32.mrb[0].mxu0
      %2186 = vmatprep.mubr.f32.mxu0 0.0
      %2187 = vmatmul.mubr.f32.gmra.mrb[0].mxu0 %v2016
      %v2188 = vpop.f32.mrb[0].mxu0
      %v2189 = vadd.f32 0.0, %v2188
      %v2190 = vpop.f32.mrb[0].mxu0
      %2191 = vmatprep.mubr.f32.mxu0 0.0
      %2192 = vmatmul.mubr.f32.gmra.mrb[0].mxu0 %v2019
      %v2193 = vpop.f32.mrb[0].mxu0
      %v2194 = vadd.f32 0.0, %v2193
      %v2195 = vpop.f32.mrb[0].mxu0
      %2196 = vmatprep.mubr.f32.mxu0 0.0
      %2197 = vmatmul.mubr.f32.gmra.mrb[0].mxu0 %v2022
      %v2198 = vpop.f32.mrb[0].mxu0
      %v2199 = vadd.f32 0.0, %v2198
      %v2200 = vpop.f32.mrb[0].mxu0
      %2201 = vmatprep.mubr.f32.mxu0 0.0
      %2202 = vmatmul.mubr.f32.gmra.mrb[0].mxu0 %v2025
      %v2203 = vpop.f32.mrb[0].mxu0
      %v2204 = vadd.f32 0.0, %v2203
      %v2205 = vpop.f32.mrb[0].mxu0
      %2206 = vmatprep.mubr.f32.mxu0 0.0
      %2207 = vmatmul.mubr.f32.gmra.mrb[0].mxu0 %v2028
      %v2208 = vpop.f32.mrb[0].mxu0
      %v2209 = vadd.f32 0.0, %v2208
      %v2210 = vpop.f32.mrb[0].mxu0
      %2211 = vmatprep.mubr.f32.mxu0 0.0
      %2212 = vmatmul.mubr.f32.gmra.mrb[0].mxu0 %v2031
      %v2213 = vpop.f32.mrb[0].mxu0
      %v2214 = vadd.f32 0.0, %v2213
      %v2215 = vpop.f32.mrb[0].mxu0
      %2216 = vmatprep.mubr.f32.mxu0 0.0
      %2217 = vmatmul.mubr.f32.gmra.mrb[0].mxu0 %v2034
      %v2218 = vpop.f32.mrb[0].mxu0
      %v2219 = vadd.f32 0.0, %v2218
      %v2220 = vpop.f32.mrb[0].mxu0
      %2221 = vmatprep.mubr.f32.mxu0 0.0
      %2222 = vmatmul.mubr.f32.gmra.mrb[0].mxu0 %v2037
      %v2223 = vpop.f32.mrb[0].mxu0
      %v2224 = vadd.f32 0.0, %v2223
      %v2225 = vpop.f32.mrb[0].mxu0
      %2226 = vmatprep.mubr.f32.mxu0 0.0
      %2227 = vmatmul.mubr.f32.gmra.mrb[0].mxu0 %v2040
      %v2228 = vpop.f32.mrb[0].mxu0
      %v2229 = vadd.f32 0.0, %v2228
      %v2230 = vpop.f32.mrb[0].mxu0
      %2231 = vmatprep.mubr.f32.mxu0 0.0
      %2232 = vmatmul.mubr.f32.gmra.mrb[0].mxu0 %v2043
      %v2233 = vpop.f32.mrb[0].mxu0
      %v2234 = vadd.f32 0.0, %v2233
      %v2235 = vpop.f32.mrb[0].mxu0
      %2236 = vmatprep.mubr.f32.mxu0 0.0
      %2237 = vmatmul.mubr.f32.gmra.mrb[0].mxu0 %v2046
      %v2238 = vpop.f32.mrb[0].mxu0
      %v2239 = vadd.f32 0.0, %v2238
      %v2240 = vpop.f32.mrb[0].mxu0
      %2241 = vmatprep.mubr.f32.mxu0 0.0
      %2242 = vmatmul.mubr.f32.gmra.mrb[0].mxu0 %v2049
      %v2243 = vpop.f32.mrb[0].mxu0
      %v2244 = vadd.f32 0.0, %v2243
      %v2245 = vpop.f32.mrb[0].mxu0
      %2246 = vmatprep.mubr.f32.mxu0 0.0
      %2247 = vmatmul.mubr.f32.gmra.mrb[0].mxu0 %v2052
      %v2248 = vpop.f32.mrb[0].mxu0
      %v2249 = vadd.f32 0.0, %v2248
      %v2250 = vpop.f32.mrb[0].mxu0
      %2251 = vmatprep.mubr.f32.mxu0 0.0
      %2252 = vmatmul.mubr.f32.gmra.mrb[0].mxu0 %v2055
      %v2253 = vpop.f32.mrb[0].mxu0
      %v2254 = vadd.f32 0.0, %v2253
      %v2255 = vpop.f32.mrb[0].mxu0
      %2256 = vmatprep.mubr.f32.mxu0 0.0
      %2257 = vmatmul.mubr.f32.gmra.mrb[0].mxu0 %v2058
      %v2258 = vpop.f32.mrb[0].mxu0
      %v2259 = vadd.f32 0.0, %v2258
      %v2260 = vpop.f32.mrb[0].mxu0
      %2261 = vmatprep.mubr.f32.mxu0 0.0
      %2262 = vmatmul.mubr.f32.gmra.mrb[0].mxu0 %v2061
      %v2263 = vpop.f32.mrb[0].mxu0
      %v2264 = vadd.f32 0.0, %v2263
      %v2265 = vpop.f32.mrb[0].mxu0
      %2266 = vmatprep.mubr.f32.mxu0 0.0
      %2267 = vmatmul.mubr.f32.gmra.mrb[0].mxu0 %v2064
      %v2268 = vpop.f32.mrb[0].mxu0
      %v2269 = vadd.f32 0.0, %v2268
      %v2270 = vpop.f32.mrb[0].mxu0
      %2271 = vmatprep.mubr.f32.mxu0 0.0
      %2272 = vmatmul.mubr.f32.gmra.mrb[0].mxu0 %v2067
      %v2273 = vpop.f32.mrb[0].mxu0
      %v2274 = vadd.f32 0.0, %v2273
      %v2275 = vpop.f32.mrb[0].mxu0
      %2276 = vmatprep.mubr.f32.mxu0 0.0
      %2277 = vmatmul.mubr.f32.gmra.mrb[0].mxu0 %v2070
      %v2278 = vpop.f32.mrb[0].mxu0
      %v2279 = vadd.f32 0.0, %v2278
      %v2280 = vpop.f32.mrb[0].mxu0
      %2281 = vmatprep.mubr.f32.mxu0 0.0
      %2282 = vmatmul.mubr.f32.gmra.mrb[0].mxu0 %v2073
      %v2283 = vpop.f32.mrb[0].mxu0
      %v2284 = vadd.f32 0.0, %v2283
      %v2285 = vpop.f32.mrb[0].mxu0
      %2286 = vmatprep.mubr.f32.mxu0 0.0
      %2287 = vmatmul.mubr.f32.gmra.mrb[0].mxu0 %v2076
      %v2288 = vpop.f32.mrb[0].mxu0
      %v2289 = vadd.f32 0.0, %v2288
      %v2290 = vpop.f32.mrb[0].mxu0
      %2291 = vmatprep.mubr.f32.mxu0 0.0
      %2292 = vmatmul.mubr.f32.gmra.mrb[0].mxu0 %v2079
      %v2293 = vpop.f32.mrb[0].mxu0
      %v2294 = vadd.f32 0.0, %v2293
      %v2295 = vpop.f32.mrb[0].mxu0
      %2296 = vmatprep.mubr.f32.mxu0 0.0
      %2297 = vmatmul.mubr.f32.gmra.mrb[0].mxu0 %v2082
      %v2298 = vpop.f32.mrb[0].mxu0
      %v2299 = vadd.f32 0.0, %v2298
      %v2300 = vpop.f32.mrb[0].mxu0
      %2301 = vmatprep.mubr.f32.mxu0 0.0
      %2302 = vmatmul.mubr.f32.gmra.mrb[0].mxu0 %v2085
      %v2303 = vpop.f32.mrb[0].mxu0
      %v2304 = vadd.f32 0.0, %v2303
      %v2305 = vpop.f32.mrb[0].mxu0
      %2306 = vmatprep.mubr.f32.mxu0 0.0
      %2307 = vmatmul.mubr.f32.gmra.mrb[0].mxu0 %v2088
      %v2308 = vpop.f32.mrb[0].mxu0
      %v2309 = vadd.f32 0.0, %v2308
      %v2310 = vpop.f32.mrb[0].mxu0
      %2311 = vmatprep.mubr.f32.mxu0 0.0
      %2312 = vmatmul.mubr.f32.gmra.mrb[0].mxu0 %v2091
      %v2313 = vpop.f32.mrb[0].mxu0
      %v2314 = vadd.f32 0.0, %v2313
      %v2315 = vpop.f32.mrb[0].mxu0
      %2316 = vmatprep.mubr.f32.mxu0 0.0
      %2317 = vmatmul.mubr.f32.gmra.mrb[0].mxu0 %v2094
      %v2318 = vpop.f32.mrb[0].mxu0
      %v2319 = vadd.f32 0.0, %v2318
      %v2320 = vpop.f32.mrb[0].mxu0
      %2321 = vmatprep.mubr.f32.mxu0 0.0
      %2322 = vmatmul.mubr.f32.gmra.mrb[0].mxu0 %v2097
      %v2323 = vpop.f32.mrb[0].mxu0
      %v2324 = vadd.f32 0.0, %v2323
      %v2325 = vpop.f32.mrb[0].mxu0
      %2326 = vdwg.mxu0
      %v2327 = vld [vmem:[%s208] sm:$0xff]
      %v2328 = vld [vmem:[%s208 + $0x8] sm:$0xff]
      %v2329 = vld [vmem:[%s208 + $0x10] sm:$0xff]
      %v2330 = vld [vmem:[%s208 + $0x18] sm:$0xff]
      %v2331 = vld [vmem:[%s208 + $0x20] sm:$0xff]
      %v2332 = vld [vmem:[%s208 + $0x28] sm:$0xff]
      %v2333 = vld [vmem:[%s208 + $0x30] sm:$0xff]
      %v2334 = vld [vmem:[%s208 + $0x38] sm:$0xff]
      %v2335 = vld [vmem:[%s208 + $0x40] sm:$0xff]
      %v2336 = vld [vmem:[%s208 + $0x48] sm:$0xff]
      %v2337 = vld [vmem:[%s208 + $0x50] sm:$0xff]
      %v2338 = vld [vmem:[%s208 + $0x58] sm:$0xff]
      %v2339 = vld [vmem:[%s208 + $0x60] sm:$0xff]
      %v2340 = vld [vmem:[%s208 + $0x68] sm:$0xff]
      %v2341 = vld [vmem:[%s208 + $0x70] sm:$0xff]
      %v2342 = vld [vmem:[%s208 + $0x78] sm:$0xff]
      %v2343 = vld [vmem:[%s208 + $0x80] sm:$0xff]
      %v2344 = vld [vmem:[%s208 + $0x88] sm:$0xff]
      %v2345 = vld [vmem:[%s208 + $0x90] sm:$0xff]
      %v2346 = vld [vmem:[%s208 + $0x98] sm:$0xff]
      %v2347 = vld [vmem:[%s208 + $0xa0] sm:$0xff]
      %v2348 = vld [vmem:[%s208 + $0xa8] sm:$0xff]
      %v2349 = vld [vmem:[%s208 + $0xb0] sm:$0xff]
      %v2350 = vld [vmem:[%s208 + $0xb8] sm:$0xff]
      %v2351 = vld [vmem:[%s208 + $0xc0] sm:$0xff]
      %v2352 = vld [vmem:[%s208 + $0xc8] sm:$0xff]
      %v2353 = vld [vmem:[%s208 + $0xd0] sm:$0xff]
      %v2354 = vld [vmem:[%s208 + $0xd8] sm:$0xff]
      %v2355 = vld [vmem:[%s208 + $0xe0] sm:$0xff]
      %v2356 = vld [vmem:[%s208 + $0xe8] sm:$0xff]
      %v2357 = vld [vmem:[%s208 + $0xf0] sm:$0xff]
      %v2358 = vld [vmem:[%s208 + $0xf8] sm:$0xff]
      %v2359 = vadd.f32 %v2327, %v2169
      %v2360 = vadd.f32 %v2328, %v2174
      %v2361 = vadd.f32 %v2329, %v2179
      %v2362 = vadd.f32 %v2330, %v2184
      %v2363 = vadd.f32 %v2331, %v2189
      %v2364 = vadd.f32 %v2332, %v2194
      %v2365 = vadd.f32 %v2333, %v2199
      %v2366 = vadd.f32 %v2334, %v2204
      %v2367 = vadd.f32 %v2335, %v2209
      %v2368 = vadd.f32 %v2336, %v2214
      %v2369 = vadd.f32 %v2337, %v2219
      %v2370 = vadd.f32 %v2338, %v2224
      %v2371 = vadd.f32 %v2339, %v2229
      %v2372 = vadd.f32 %v2340, %v2234
      %v2373 = vadd.f32 %v2341, %v2239
      %v2374 = vadd.f32 %v2342, %v2244
      %v2375 = vadd.f32 %v2343, %v2249
      %v2376 = vadd.f32 %v2344, %v2254
      %v2377 = vadd.f32 %v2345, %v2259
      %v2378 = vadd.f32 %v2346, %v2264
      %v2379 = vadd.f32 %v2347, %v2269
      %v2380 = vadd.f32 %v2348, %v2274
      %v2381 = vadd.f32 %v2349, %v2279
      %v2382 = vadd.f32 %v2350, %v2284
      %v2383 = vadd.f32 %v2351, %v2289
      %v2384 = vadd.f32 %v2352, %v2294
      %v2385 = vadd.f32 %v2353, %v2299
      %v2386 = vadd.f32 %v2354, %v2304
      %v2387 = vadd.f32 %v2355, %v2309
      %v2388 = vadd.f32 %v2356, %v2314
      %v2389 = vadd.f32 %v2357, %v2319
      %v2390 = vadd.f32 %v2358, %v2324
      %2391 = vst [vmem:[%s208] sm:$0xff] %v2359
      %2392 = vst [vmem:[%s208 + $0x8] sm:$0xff] %v2360
      %2393 = vst [vmem:[%s208 + $0x10] sm:$0xff] %v2361
      %2394 = vst [vmem:[%s208 + $0x18] sm:$0xff] %v2362
      %2395 = vst [vmem:[%s208 + $0x20] sm:$0xff] %v2363
      %2396 = vst [vmem:[%s208 + $0x28] sm:$0xff] %v2364
      %2397 = vst [vmem:[%s208 + $0x30] sm:$0xff] %v2365
      %2398 = vst [vmem:[%s208 + $0x38] sm:$0xff] %v2366
      %2399 = vst [vmem:[%s208 + $0x40] sm:$0xff] %v2367
      %2400 = vst [vmem:[%s208 + $0x48] sm:$0xff] %v2368
      %2401 = vst [vmem:[%s208 + $0x50] sm:$0xff] %v2369
      %2402 = vst [vmem:[%s208 + $0x58] sm:$0xff] %v2370
      %2403 = vst [vmem:[%s208 + $0x60] sm:$0xff] %v2371
      %2404 = vst [vmem:[%s208 + $0x68] sm:$0xff] %v2372
      %2405 = vst [vmem:[%s208 + $0x70] sm:$0xff] %v2373
      %2406 = vst [vmem:[%s208 + $0x78] sm:$0xff] %v2374
      %2407 = vst [vmem:[%s208 + $0x80] sm:$0xff] %v2375
      %2408 = vst [vmem:[%s208 + $0x88] sm:$0xff] %v2376
      %2409 = vst [vmem:[%s208 + $0x90] sm:$0xff] %v2377
      %2410 = vst [vmem:[%s208 + $0x98] sm:$0xff] %v2378
      %2411 = vst [vmem:[%s208 + $0xa0] sm:$0xff] %v2379
      %2412 = vst [vmem:[%s208 + $0xa8] sm:$0xff] %v2380
      %2413 = vst [vmem:[%s208 + $0xb0] sm:$0xff] %v2381
      %2414 = vst [vmem:[%s208 + $0xb8] sm:$0xff] %v2382
      %2415 = vst [vmem:[%s208 + $0xc0] sm:$0xff] %v2383
      %2416 = vst [vmem:[%s208 + $0xc8] sm:$0xff] %v2384
      %2417 = vst [vmem:[%s208 + $0xd0] sm:$0xff] %v2385
      %2418 = vst [vmem:[%s208 + $0xd8] sm:$0xff] %v2386
      %2419 = vst [vmem:[%s208 + $0xe0] sm:$0xff] %v2387
      %2420 = vst [vmem:[%s208 + $0xe8] sm:$0xff] %v2388
      %2421 = vst [vmem:[%s208 + $0xf0] sm:$0xff] %v2389
      %2422 = vst [vmem:[%s208 + $0xf8] sm:$0xff] %v2390
      %v2423 = vld [vmem:[%s1514 + $0x2] sm:$0xff]
      %v2424 = vld [vmem:[%s1514 + $0xa] sm:$0xff]
      %v2425 = vld [vmem:[%s1514 + $0x1a] sm:$0xff]
      %v2426 = vld [vmem:[%s1514 + $0x22] sm:$0xff]
      %v2427 = vld [vmem:[%s1514 + $0x32] sm:$0xff]
      %v2428 = vld [vmem:[%s1514 + $0x3a] sm:$0xff]
      %v2429 = vld [vmem:[%s1514 + $0x4a] sm:$0xff]
      %v2430 = vld [vmem:[%s1514 + $0x52] sm:$0xff]
      %v2431 = vld [vmem:[%s1514 + $0x62] sm:$0xff]
      %v2432 = vld [vmem:[%s1514 + $0x6a] sm:$0xff]
      %v2433 = vld [vmem:[%s1514 + $0x7a] sm:$0xff]
      %v2434 = vld [vmem:[%s1514 + $0x82] sm:$0xff]
      %v2435 = vld [vmem:[%s1514 + $0x92] sm:$0xff]
      %v2436 = vld [vmem:[%s1514 + $0x9a] sm:$0xff]
      %v2437 = vld [vmem:[%s1514 + $0xaa] sm:$0xff]
      %v2438 = vld [vmem:[%s1514 + $0xb2] sm:$0xff]
      %v2439 = vld [vmem:[%s1514 + $0xc2] sm:$0xff]
      %v2440 = vld [vmem:[%s1514 + $0xca] sm:$0xff]
      %v2441 = vld [vmem:[%s1514 + $0xda] sm:$0xff]
      %v2442 = vld [vmem:[%s1514 + $0xe2] sm:$0xff]
      %v2443 = vld [vmem:[%s1514 + $0xf2] sm:$0xff]
      %v2444 = vld [vmem:[%s1514 + $0xfa] sm:$0xff]
      %v2445 = vld [vmem:[%s1514 + $0x10a] sm:$0xff]
      %v2446 = vld [vmem:[%s1514 + $0x112] sm:$0xff]
      %v2447 = vld [vmem:[%s1514 + $0x122] sm:$0xff]
      %v2448 = vld [vmem:[%s1514 + $0x12a] sm:$0xff]
      %v2449 = vld [vmem:[%s1514 + $0x13a] sm:$0xff]
      %v2450 = vld [vmem:[%s1514 + $0x142] sm:$0xff]
      %v2451 = vld [vmem:[%s1514 + $0x152] sm:$0xff]
      %v2452 = vld [vmem:[%s1514 + $0x15a] sm:$0xff]
      %v2453 = vld [vmem:[%s1514 + $0x16a] sm:$0xff]
      %v2454 = vld [vmem:[%s1514 + $0x172] sm:$0xff]
      %s2455 = scalar_lea.vmem %s1, 20
      %v2456 = vld [vmem:[%s2455] sm:$0xf]
      %v2458 = vsel %vm248, %v2423, 0
      %v2461 = vsel %vm248, %v2424, 0
      %v2464 = vsel %vm248, %v2425, 0
      %v2467 = vsel %vm248, %v2426, 0
      %v2470 = vsel %vm248, %v2427, 0
      %v2473 = vsel %vm248, %v2428, 0
      %v2476 = vsel %vm248, %v2429, 0
      %v2479 = vsel %vm248, %v2430, 0
      %v2482 = vsel %vm248, %v2431, 0
      %v2485 = vsel %vm248, %v2432, 0
      %v2488 = vsel %vm248, %v2433, 0
      %v2491 = vsel %vm248, %v2434, 0
      %v2494 = vsel %vm248, %v2435, 0
      %v2497 = vsel %vm248, %v2436, 0
      %v2500 = vsel %vm248, %v2437, 0
      %v2503 = vsel %vm248, %v2438, 0
      %v2506 = vsel %vm248, %v2439, 0
      %v2509 = vsel %vm248, %v2440, 0
      %v2512 = vsel %vm248, %v2441, 0
      %v2515 = vsel %vm248, %v2442, 0
      %v2518 = vsel %vm248, %v2443, 0
      %v2521 = vsel %vm248, %v2444, 0
      %v2524 = vsel %vm248, %v2445, 0
      %v2527 = vsel %vm248, %v2446, 0
      %v2530 = vsel %vm248, %v2447, 0
      %v2533 = vsel %vm248, %v2448, 0
      %v2536 = vsel %vm248, %v2449, 0
      %v2539 = vsel %vm248, %v2450, 0
      %v2542 = vsel %vm248, %v2451, 0
      %v2545 = vsel %vm248, %v2452, 0
      %v2548 = vsel %vm248, %v2453, 0
      %v2551 = vsel %vm248, %v2454, 0
      %v2554 = vsel %vm345, %v2456, 0
      %2556 = vmatprep.subr.mxu0 0.0
      %2557 = vmatpush1.msra.mxu0 %v2554
      %2558 = vmatprep.subr.mxu0 0.0
      %2559 = vmatpush1.msra.mxu0 0.0
      %2560 = vmatprep.subr.mxu0 0.0
      %2561 = vmatpush1.msra.mxu0 0.0
      %2562 = vmatprep.subr.mxu0 0.0
      %2563 = vmatpush1.msra.mxu0 0.0
      %2564 = vmatprep.subr.mxu0 0.0
      %2565 = vmatpush1.msra.mxu0 0.0
      %2566 = vmatprep.subr.mxu0 0.0
      %2567 = vmatpush1.msra.mxu0 0.0
      %2568 = vmatprep.subr.mxu0 0.0
      %2569 = vmatpush1.msra.mxu0 0.0
      %2570 = vmatprep.subr.mxu0 0.0
      %2571 = vmatpush1.msra.mxu0 0.0
      %2572 = vmatprep.subr.mxu0 0.0
      %2573 = vmatpush1.msra.mxu0 0.0
      %2574 = vmatprep.subr.mxu0 0.0
      %2575 = vmatpush1.msra.mxu0 0.0
      %2576 = vmatprep.subr.mxu0 0.0
      %2577 = vmatpush1.msra.mxu0 0.0
      %2578 = vmatprep.subr.mxu0 0.0
      %2579 = vmatpush1.msra.mxu0 0.0
      %2580 = vmatprep.subr.mxu0 0.0
      %2581 = vmatpush1.msra.mxu0 0.0
      %2582 = vmatprep.subr.mxu0 0.0
      %2583 = vmatpush1.msra.mxu0 0.0
      %2584 = vmatprep.subr.mxu0 0.0
      %2585 = vmatpush1.msra.mxu0 0.0
      %2586 = vmatprep.subr.mxu0 0.0
      %2587 = vmatpush1.msra.mxu0 0.0
      %2588 = vmatprep.subr.mxu0 0.0
      %2589 = vmatpush1.msra.mxu0 0.0
      %2590 = vmatprep.subr.mxu0 0.0
      %2591 = vmatpush1.msra.mxu0 0.0
      %2592 = vmatprep.subr.mxu0 0.0
      %2593 = vmatpush1.msra.mxu0 0.0
      %2594 = vmatprep.subr.mxu0 0.0
      %2595 = vmatpush1.msra.mxu0 0.0
      %2596 = vmatprep.subr.mxu0 0.0
      %2597 = vmatpush1.msra.mxu0 0.0
      %2598 = vmatprep.subr.mxu0 0.0
      %2599 = vmatpush1.msra.mxu0 0.0
      %2600 = vmatprep.subr.mxu0 0.0
      %2601 = vmatpush1.msra.mxu0 0.0
      %2602 = vmatprep.subr.mxu0 0.0
      %2603 = vmatpush1.msra.mxu0 0.0
      %2604 = vmatprep.subr.mxu0 0.0
      %2605 = vmatpush1.msra.mxu0 0.0
      %2606 = vmatprep.subr.mxu0 0.0
      %2607 = vmatpush1.msra.mxu0 0.0
      %2608 = vmatprep.subr.mxu0 0.0
      %2609 = vmatpush1.msra.mxu0 0.0
      %2610 = vmatprep.subr.mxu0 0.0
      %2611 = vmatpush1.msra.mxu0 0.0
      %2612 = vmatprep.subr.mxu0 0.0
      %2613 = vmatpush1.msra.mxu0 0.0
      %2614 = vmatprep.subr.mxu0 0.0
      %2615 = vmatpush1.msra.mxu0 0.0
      %2616 = vmatprep.subr.mxu0 0.0
      %2617 = vmatpush1.msra.mxu0 0.0
      %2618 = vmatprep.subr.mxu0 0.0
      %2619 = vmatpush1.msra.mxu0 0.0
      %2620 = vmatprep.mubr.f32.mxu0 0.0
      %2621 = vmatmul.mubr.f32.gmra.mrb[0].mxu0 %v2458
      %v2622 = vpop.f32.mrb[0].mxu0
      %v2623 = vadd.f32 0.0, %v2622
      %v2624 = vpop.f32.mrb[0].mxu0
      %2625 = vmatprep.mubr.f32.mxu0 0.0
      %2626 = vmatmul.mubr.f32.gmra.mrb[0].mxu0 %v2461
      %v2627 = vpop.f32.mrb[0].mxu0
      %v2628 = vadd.f32 0.0, %v2627
      %v2629 = vpop.f32.mrb[0].mxu0
      %2630 = vmatprep.mubr.f32.mxu0 0.0
      %2631 = vmatmul.mubr.f32.gmra.mrb[0].mxu0 %v2464
      %v2632 = vpop.f32.mrb[0].mxu0
      %v2633 = vadd.f32 0.0, %v2632
      %v2634 = vpop.f32.mrb[0].mxu0
      %2635 = vmatprep.mubr.f32.mxu0 0.0
      %2636 = vmatmul.mubr.f32.gmra.mrb[0].mxu0 %v2467
      %v2637 = vpop.f32.mrb[0].mxu0
      %v2638 = vadd.f32 0.0, %v2637
      %v2639 = vpop.f32.mrb[0].mxu0
      %2640 = vmatprep.mubr.f32.mxu0 0.0
      %2641 = vmatmul.mubr.f32.gmra.mrb[0].mxu0 %v2470
      %v2642 = vpop.f32.mrb[0].mxu0
      %v2643 = vadd.f32 0.0, %v2642
      %v2644 = vpop.f32.mrb[0].mxu0
      %2645 = vmatprep.mubr.f32.mxu0 0.0
      %2646 = vmatmul.mubr.f32.gmra.mrb[0].mxu0 %v2473
      %v2647 = vpop.f32.mrb[0].mxu0
      %v2648 = vadd.f32 0.0, %v2647
      %v2649 = vpop.f32.mrb[0].mxu0
      %2650 = vmatprep.mubr.f32.mxu0 0.0
      %2651 = vmatmul.mubr.f32.gmra.mrb[0].mxu0 %v2476
      %v2652 = vpop.f32.mrb[0].mxu0
      %v2653 = vadd.f32 0.0, %v2652
      %v2654 = vpop.f32.mrb[0].mxu0
      %2655 = vmatprep.mubr.f32.mxu0 0.0
      %2656 = vmatmul.mubr.f32.gmra.mrb[0].mxu0 %v2479
      %v2657 = vpop.f32.mrb[0].mxu0
      %v2658 = vadd.f32 0.0, %v2657
      %v2659 = vpop.f32.mrb[0].mxu0
      %2660 = vmatprep.mubr.f32.mxu0 0.0
      %2661 = vmatmul.mubr.f32.gmra.mrb[0].mxu0 %v2482
      %v2662 = vpop.f32.mrb[0].mxu0
      %v2663 = vadd.f32 0.0, %v2662
      %v2664 = vpop.f32.mrb[0].mxu0
      %2665 = vmatprep.mubr.f32.mxu0 0.0
      %2666 = vmatmul.mubr.f32.gmra.mrb[0].mxu0 %v2485
      %v2667 = vpop.f32.mrb[0].mxu0
      %v2668 = vadd.f32 0.0, %v2667
      %v2669 = vpop.f32.mrb[0].mxu0
      %2670 = vmatprep.mubr.f32.mxu0 0.0
      %2671 = vmatmul.mubr.f32.gmra.mrb[0].mxu0 %v2488
      %v2672 = vpop.f32.mrb[0].mxu0
      %v2673 = vadd.f32 0.0, %v2672
      %v2674 = vpop.f32.mrb[0].mxu0
      %2675 = vmatprep.mubr.f32.mxu0 0.0
      %2676 = vmatmul.mubr.f32.gmra.mrb[0].mxu0 %v2491
      %v2677 = vpop.f32.mrb[0].mxu0
      %v2678 = vadd.f32 0.0, %v2677
      %v2679 = vpop.f32.mrb[0].mxu0
      %2680 = vmatprep.mubr.f32.mxu0 0.0
      %2681 = vmatmul.mubr.f32.gmra.mrb[0].mxu0 %v2494
      %v2682 = vpop.f32.mrb[0].mxu0
      %v2683 = vadd.f32 0.0, %v2682
      %v2684 = vpop.f32.mrb[0].mxu0
      %2685 = vmatprep.mubr.f32.mxu0 0.0
      %2686 = vmatmul.mubr.f32.gmra.mrb[0].mxu0 %v2497
      %v2687 = vpop.f32.mrb[0].mxu0
      %v2688 = vadd.f32 0.0, %v2687
      %v2689 = vpop.f32.mrb[0].mxu0
      %2690 = vmatprep.mubr.f32.mxu0 0.0
      %2691 = vmatmul.mubr.f32.gmra.mrb[0].mxu0 %v2500
      %v2692 = vpop.f32.mrb[0].mxu0
      %v2693 = vadd.f32 0.0, %v2692
      %v2694 = vpop.f32.mrb[0].mxu0
      %2695 = vmatprep.mubr.f32.mxu0 0.0
      %2696 = vmatmul.mubr.f32.gmra.mrb[0].mxu0 %v2503
      %v2697 = vpop.f32.mrb[0].mxu0
      %v2698 = vadd.f32 0.0, %v2697
      %v2699 = vpop.f32.mrb[0].mxu0
      %2700 = vmatprep.mubr.f32.mxu0 0.0
      %2701 = vmatmul.mubr.f32.gmra.mrb[0].mxu0 %v2506
      %v2702 = vpop.f32.mrb[0].mxu0
      %v2703 = vadd.f32 0.0, %v2702
      %v2704 = vpop.f32.mrb[0].mxu0
      %2705 = vmatprep.mubr.f32.mxu0 0.0
      %2706 = vmatmul.mubr.f32.gmra.mrb[0].mxu0 %v2509
      %v2707 = vpop.f32.mrb[0].mxu0
      %v2708 = vadd.f32 0.0, %v2707
      %v2709 = vpop.f32.mrb[0].mxu0
      %2710 = vmatprep.mubr.f32.mxu0 0.0
      %2711 = vmatmul.mubr.f32.gmra.mrb[0].mxu0 %v2512
      %v2712 = vpop.f32.mrb[0].mxu0
      %v2713 = vadd.f32 0.0, %v2712
      %v2714 = vpop.f32.mrb[0].mxu0
      %2715 = vmatprep.mubr.f32.mxu0 0.0
      %2716 = vmatmul.mubr.f32.gmra.mrb[0].mxu0 %v2515
      %v2717 = vpop.f32.mrb[0].mxu0
      %v2718 = vadd.f32 0.0, %v2717
      %v2719 = vpop.f32.mrb[0].mxu0
      %2720 = vmatprep.mubr.f32.mxu0 0.0
      %2721 = vmatmul.mubr.f32.gmra.mrb[0].mxu0 %v2518
      %v2722 = vpop.f32.mrb[0].mxu0
      %v2723 = vadd.f32 0.0, %v2722
      %v2724 = vpop.f32.mrb[0].mxu0
      %2725 = vmatprep.mubr.f32.mxu0 0.0
      %2726 = vmatmul.mubr.f32.gmra.mrb[0].mxu0 %v2521
      %v2727 = vpop.f32.mrb[0].mxu0
      %v2728 = vadd.f32 0.0, %v2727
      %v2729 = vpop.f32.mrb[0].mxu0
      %2730 = vmatprep.mubr.f32.mxu0 0.0
      %2731 = vmatmul.mubr.f32.gmra.mrb[0].mxu0 %v2524
      %v2732 = vpop.f32.mrb[0].mxu0
      %v2733 = vadd.f32 0.0, %v2732
      %v2734 = vpop.f32.mrb[0].mxu0
      %2735 = vmatprep.mubr.f32.mxu0 0.0
      %2736 = vmatmul.mubr.f32.gmra.mrb[0].mxu0 %v2527
      %v2737 = vpop.f32.mrb[0].mxu0
      %v2738 = vadd.f32 0.0, %v2737
      %v2739 = vpop.f32.mrb[0].mxu0
      %2740 = vmatprep.mubr.f32.mxu0 0.0
      %2741 = vmatmul.mubr.f32.gmra.mrb[0].mxu0 %v2530
      %v2742 = vpop.f32.mrb[0].mxu0
      %v2743 = vadd.f32 0.0, %v2742
      %v2744 = vpop.f32.mrb[0].mxu0
      %2745 = vmatprep.mubr.f32.mxu0 0.0
      %2746 = vmatmul.mubr.f32.gmra.mrb[0].mxu0 %v2533
      %v2747 = vpop.f32.mrb[0].mxu0
      %v2748 = vadd.f32 0.0, %v2747
      %v2749 = vpop.f32.mrb[0].mxu0
      %2750 = vmatprep.mubr.f32.mxu0 0.0
      %2751 = vmatmul.mubr.f32.gmra.mrb[0].mxu0 %v2536
      %v2752 = vpop.f32.mrb[0].mxu0
      %v2753 = vadd.f32 0.0, %v2752
      %v2754 = vpop.f32.mrb[0].mxu0
      %2755 = vmatprep.mubr.f32.mxu0 0.0
      %2756 = vmatmul.mubr.f32.gmra.mrb[0].mxu0 %v2539
      %v2757 = vpop.f32.mrb[0].mxu0
      %v2758 = vadd.f32 0.0, %v2757
      %v2759 = vpop.f32.mrb[0].mxu0
      %2760 = vmatprep.mubr.f32.mxu0 0.0
      %2761 = vmatmul.mubr.f32.gmra.mrb[0].mxu0 %v2542
      %v2762 = vpop.f32.mrb[0].mxu0
      %v2763 = vadd.f32 0.0, %v2762
      %v2764 = vpop.f32.mrb[0].mxu0
      %2765 = vmatprep.mubr.f32.mxu0 0.0
      %2766 = vmatmul.mubr.f32.gmra.mrb[0].mxu0 %v2545
      %v2767 = vpop.f32.mrb[0].mxu0
      %v2768 = vadd.f32 0.0, %v2767
      %v2769 = vpop.f32.mrb[0].mxu0
      %2770 = vmatprep.mubr.f32.mxu0 0.0
      %2771 = vmatmul.mubr.f32.gmra.mrb[0].mxu0 %v2548
      %v2772 = vpop.f32.mrb[0].mxu0
      %v2773 = vadd.f32 0.0, %v2772
      %v2774 = vpop.f32.mrb[0].mxu0
      %2775 = vmatprep.mubr.f32.mxu0 0.0
      %2776 = vmatmul.mubr.f32.gmra.mrb[0].mxu0 %v2551
      %v2777 = vpop.f32.mrb[0].mxu0
      %v2778 = vadd.f32 0.0, %v2777
      %v2779 = vpop.f32.mrb[0].mxu0
      %2780 = vdwg.mxu0
      %v2781 = vld [vmem:[%s208] sm:$0xff]
      %v2782 = vld [vmem:[%s208 + $0x8] sm:$0xff]
      %v2783 = vld [vmem:[%s208 + $0x10] sm:$0xff]
      %v2784 = vld [vmem:[%s208 + $0x18] sm:$0xff]
      %v2785 = vld [vmem:[%s208 + $0x20] sm:$0xff]
      %v2786 = vld [vmem:[%s208 + $0x28] sm:$0xff]
      %v2787 = vld [vmem:[%s208 + $0x30] sm:$0xff]
      %v2788 = vld [vmem:[%s208 + $0x38] sm:$0xff]
      %v2789 = vld [vmem:[%s208 + $0x40] sm:$0xff]
      %v2790 = vld [vmem:[%s208 + $0x48] sm:$0xff]
      %v2791 = vld [vmem:[%s208 + $0x50] sm:$0xff]
      %v2792 = vld [vmem:[%s208 + $0x58] sm:$0xff]
      %v2793 = vld [vmem:[%s208 + $0x60] sm:$0xff]
      %v2794 = vld [vmem:[%s208 + $0x68] sm:$0xff]
      %v2795 = vld [vmem:[%s208 + $0x70] sm:$0xff]
      %v2796 = vld [vmem:[%s208 + $0x78] sm:$0xff]
      %v2797 = vld [vmem:[%s208 + $0x80] sm:$0xff]
      %v2798 = vld [vmem:[%s208 + $0x88] sm:$0xff]
      %v2799 = vld [vmem:[%s208 + $0x90] sm:$0xff]
      %v2800 = vld [vmem:[%s208 + $0x98] sm:$0xff]
      %v2801 = vld [vmem:[%s208 + $0xa0] sm:$0xff]
      %v2802 = vld [vmem:[%s208 + $0xa8] sm:$0xff]
      %v2803 = vld [vmem:[%s208 + $0xb0] sm:$0xff]
      %v2804 = vld [vmem:[%s208 + $0xb8] sm:$0xff]
      %v2805 = vld [vmem:[%s208 + $0xc0] sm:$0xff]
      %v2806 = vld [vmem:[%s208 + $0xc8] sm:$0xff]
      %v2807 = vld [vmem:[%s208 + $0xd0] sm:$0xff]
      %v2808 = vld [vmem:[%s208 + $0xd8] sm:$0xff]
      %v2809 = vld [vmem:[%s208 + $0xe0] sm:$0xff]
      %v2810 = vld [vmem:[%s208 + $0xe8] sm:$0xff]
      %v2811 = vld [vmem:[%s208 + $0xf0] sm:$0xff]
      %v2812 = vld [vmem:[%s208 + $0xf8] sm:$0xff]
      %v2813 = vadd.f32 %v2781, %v2623
      %v2814 = vadd.f32 %v2782, %v2628
      %v2815 = vadd.f32 %v2783, %v2633
      %v2816 = vadd.f32 %v2784, %v2638
      %v2817 = vadd.f32 %v2785, %v2643
      %v2818 = vadd.f32 %v2786, %v2648
      %v2819 = vadd.f32 %v2787, %v2653
      %v2820 = vadd.f32 %v2788, %v2658
      %v2821 = vadd.f32 %v2789, %v2663
      %v2822 = vadd.f32 %v2790, %v2668
      %v2823 = vadd.f32 %v2791, %v2673
      %v2824 = vadd.f32 %v2792, %v2678
      %v2825 = vadd.f32 %v2793, %v2683
      %v2826 = vadd.f32 %v2794, %v2688
      %v2827 = vadd.f32 %v2795, %v2693
      %v2828 = vadd.f32 %v2796, %v2698
      %v2829 = vadd.f32 %v2797, %v2703
      %v2830 = vadd.f32 %v2798, %v2708
      %v2831 = vadd.f32 %v2799, %v2713
      %v2832 = vadd.f32 %v2800, %v2718
      %v2833 = vadd.f32 %v2801, %v2723
      %v2834 = vadd.f32 %v2802, %v2728
      %v2835 = vadd.f32 %v2803, %v2733
      %v2836 = vadd.f32 %v2804, %v2738
      %v2837 = vadd.f32 %v2805, %v2743
      %v2838 = vadd.f32 %v2806, %v2748
      %v2839 = vadd.f32 %v2807, %v2753
      %v2840 = vadd.f32 %v2808, %v2758
      %v2841 = vadd.f32 %v2809, %v2763
      %v2842 = vadd.f32 %v2810, %v2768
      %v2843 = vadd.f32 %v2811, %v2773
      %v2844 = vadd.f32 %v2812, %v2778
      %2845 = vst [vmem:[%s208] sm:$0xff] %v2813
      %2846 = vst [vmem:[%s208 + $0x8] sm:$0xff] %v2814
      %2847 = vst [vmem:[%s208 + $0x10] sm:$0xff] %v2815
      %2848 = vst [vmem:[%s208 + $0x18] sm:$0xff] %v2816
      %2849 = vst [vmem:[%s208 + $0x20] sm:$0xff] %v2817
      %2850 = vst [vmem:[%s208 + $0x28] sm:$0xff] %v2818
      %2851 = vst [vmem:[%s208 + $0x30] sm:$0xff] %v2819
      %2852 = vst [vmem:[%s208 + $0x38] sm:$0xff] %v2820
      %2853 = vst [vmem:[%s208 + $0x40] sm:$0xff] %v2821
      %2854 = vst [vmem:[%s208 + $0x48] sm:$0xff] %v2822
      %2855 = vst [vmem:[%s208 + $0x50] sm:$0xff] %v2823
      %2856 = vst [vmem:[%s208 + $0x58] sm:$0xff] %v2824
      %2857 = vst [vmem:[%s208 + $0x60] sm:$0xff] %v2825
      %2858 = vst [vmem:[%s208 + $0x68] sm:$0xff] %v2826
      %2859 = vst [vmem:[%s208 + $0x70] sm:$0xff] %v2827
      %2860 = vst [vmem:[%s208 + $0x78] sm:$0xff] %v2828
      %2861 = vst [vmem:[%s208 + $0x80] sm:$0xff] %v2829
      %2862 = vst [vmem:[%s208 + $0x88] sm:$0xff] %v2830
      %2863 = vst [vmem:[%s208 + $0x90] sm:$0xff] %v2831
      %2864 = vst [vmem:[%s208 + $0x98] sm:$0xff] %v2832
      %2865 = vst [vmem:[%s208 + $0xa0] sm:$0xff] %v2833
      %2866 = vst [vmem:[%s208 + $0xa8] sm:$0xff] %v2834
      %2867 = vst [vmem:[%s208 + $0xb0] sm:$0xff] %v2835
      %2868 = vst [vmem:[%s208 + $0xb8] sm:$0xff] %v2836
      %2869 = vst [vmem:[%s208 + $0xc0] sm:$0xff] %v2837
      %2870 = vst [vmem:[%s208 + $0xc8] sm:$0xff] %v2838
      %2871 = vst [vmem:[%s208 + $0xd0] sm:$0xff] %v2839
      %2872 = vst [vmem:[%s208 + $0xd8] sm:$0xff] %v2840
      %2873 = vst [vmem:[%s208 + $0xe0] sm:$0xff] %v2841
      %2874 = vst [vmem:[%s208 + $0xe8] sm:$0xff] %v2842
      %2875 = vst [vmem:[%s208 + $0xf0] sm:$0xff] %v2843
      %2876 = vst [vmem:[%s208 + $0xf8] sm:$0xff] %v2844
      %s2877 = scalar_lea.vmem %s203, 48
      %v2878 = vld [vmem:[%s2877] sm:$0xff]
      %v2879 = vld [vmem:[%s2877 + $0x8] sm:$0xff]
      %v2880 = vld [vmem:[%s2877 + $0x18] sm:$0xff]
      %v2881 = vld [vmem:[%s2877 + $0x20] sm:$0xff]
      %v2882 = vld [vmem:[%s2877 + $0x30] sm:$0xff]
      %v2883 = vld [vmem:[%s2877 + $0x38] sm:$0xff]
      %v2884 = vld [vmem:[%s2877 + $0x48] sm:$0xff]
      %v2885 = vld [vmem:[%s2877 + $0x50] sm:$0xff]
      %v2886 = vld [vmem:[%s2877 + $0x60] sm:$0xff]
      %v2887 = vld [vmem:[%s2877 + $0x68] sm:$0xff]
      %v2888 = vld [vmem:[%s2877 + $0x78] sm:$0xff]
      %v2889 = vld [vmem:[%s2877 + $0x80] sm:$0xff]
      %v2890 = vld [vmem:[%s2877 + $0x90] sm:$0xff]
      %v2891 = vld [vmem:[%s2877 + $0x98] sm:$0xff]
      %v2892 = vld [vmem:[%s2877 + $0xa8] sm:$0xff]
      %v2893 = vld [vmem:[%s2877 + $0xb0] sm:$0xff]
      %v2894 = vld [vmem:[%s2877 + $0xc0] sm:$0xff]
      %v2895 = vld [vmem:[%s2877 + $0xc8] sm:$0xff]
      %v2896 = vld [vmem:[%s2877 + $0xd8] sm:$0xff]
      %v2897 = vld [vmem:[%s2877 + $0xe0] sm:$0xff]
      %v2898 = vld [vmem:[%s2877 + $0xf0] sm:$0xff]
      %v2899 = vld [vmem:[%s2877 + $0xf8] sm:$0xff]
      %v2900 = vld [vmem:[%s2877 + $0x108] sm:$0xff]
      %v2901 = vld [vmem:[%s2877 + $0x110] sm:$0xff]
      %v2902 = vld [vmem:[%s2877 + $0x120] sm:$0xff]
      %v2903 = vld [vmem:[%s2877 + $0x128] sm:$0xff]
      %v2904 = vld [vmem:[%s2877 + $0x138] sm:$0xff]
      %v2905 = vld [vmem:[%s2877 + $0x140] sm:$0xff]
      %v2906 = vld [vmem:[%s2877 + $0x150] sm:$0xff]
      %v2907 = vld [vmem:[%s2877 + $0x158] sm:$0xff]
      %v2908 = vld [vmem:[%s2877 + $0x168] sm:$0xff]
      %v2909 = vld [vmem:[%s2877 + $0x170] sm:$0xff]
      %s2910 = scalar_lea.vmem %s1, 24
      %v2911 = vld [vmem:[%s2910] sm:$0xf]
      %v2913 = vsel %vm248, %v2878, 0
      %v2916 = vsel %vm248, %v2879, 0
      %v2919 = vsel %vm248, %v2880, 0
      %v2922 = vsel %vm248, %v2881, 0
      %v2925 = vsel %vm248, %v2882, 0
      %v2928 = vsel %vm248, %v2883, 0
      %v2931 = vsel %vm248, %v2884, 0
      %v2934 = vsel %vm248, %v2885, 0
      %v2937 = vsel %vm248, %v2886, 0
      %v2940 = vsel %vm248, %v2887, 0
      %v2943 = vsel %vm248, %v2888, 0
      %v2946 = vsel %vm248, %v2889, 0
      %v2949 = vsel %vm248, %v2890, 0
      %v2952 = vsel %vm248, %v2891, 0
      %v2955 = vsel %vm248, %v2892, 0
      %v2958 = vsel %vm248, %v2893, 0
      %v2961 = vsel %vm248, %v2894, 0
      %v2964 = vsel %vm248, %v2895, 0
      %v2967 = vsel %vm248, %v2896, 0
      %v2970 = vsel %vm248, %v2897, 0
      %v2973 = vsel %vm248, %v2898, 0
      %v2976 = vsel %vm248, %v2899, 0
      %v2979 = vsel %vm248, %v2900, 0
      %v2982 = vsel %vm248, %v2901, 0
      %v2985 = vsel %vm248, %v2902, 0
      %v2988 = vsel %vm248, %v2903, 0
      %v2991 = vsel %vm248, %v2904, 0
      %v2994 = vsel %vm248, %v2905, 0
      %v2997 = vsel %vm248, %v2906, 0
      %v3000 = vsel %vm248, %v2907, 0
      %v3003 = vsel %vm248, %v2908, 0
      %v3006 = vsel %vm248, %v2909, 0
      %v3009 = vsel %vm345, %v2911, 0
      %3011 = vmatprep.subr.mxu0 0.0
      %3012 = vmatpush1.msra.mxu0 %v3009
      %3013 = vmatprep.subr.mxu0 0.0
      %3014 = vmatpush1.msra.mxu0 0.0
      %3015 = vmatprep.subr.mxu0 0.0
      %3016 = vmatpush1.msra.mxu0 0.0
      %3017 = vmatprep.subr.mxu0 0.0
      %3018 = vmatpush1.msra.mxu0 0.0
      %3019 = vmatprep.subr.mxu0 0.0
      %3020 = vmatpush1.msra.mxu0 0.0
      %3021 = vmatprep.subr.mxu0 0.0
      %3022 = vmatpush1.msra.mxu0 0.0
      %3023 = vmatprep.subr.mxu0 0.0
      %3024 = vmatpush1.msra.mxu0 0.0
      %3025 = vmatprep.subr.mxu0 0.0
      %3026 = vmatpush1.msra.mxu0 0.0
      %3027 = vmatprep.subr.mxu0 0.0
      %3028 = vmatpush1.msra.mxu0 0.0
      %3029 = vmatprep.subr.mxu0 0.0
      %3030 = vmatpush1.msra.mxu0 0.0
      %3031 = vmatprep.subr.mxu0 0.0
      %3032 = vmatpush1.msra.mxu0 0.0
      %3033 = vmatprep.subr.mxu0 0.0
      %3034 = vmatpush1.msra.mxu0 0.0
      %3035 = vmatprep.subr.mxu0 0.0
      %3036 = vmatpush1.msra.mxu0 0.0
      %3037 = vmatprep.subr.mxu0 0.0
      %3038 = vmatpush1.msra.mxu0 0.0
      %3039 = vmatprep.subr.mxu0 0.0
      %3040 = vmatpush1.msra.mxu0 0.0
      %3041 = vmatprep.subr.mxu0 0.0
      %3042 = vmatpush1.msra.mxu0 0.0
      %3043 = vmatprep.subr.mxu0 0.0
      %3044 = vmatpush1.msra.mxu0 0.0
      %3045 = vmatprep.subr.mxu0 0.0
      %3046 = vmatpush1.msra.mxu0 0.0
      %3047 = vmatprep.subr.mxu0 0.0
      %3048 = vmatpush1.msra.mxu0 0.0
      %3049 = vmatprep.subr.mxu0 0.0
      %3050 = vmatpush1.msra.mxu0 0.0
      %3051 = vmatprep.subr.mxu0 0.0
      %3052 = vmatpush1.msra.mxu0 0.0
      %3053 = vmatprep.subr.mxu0 0.0
      %3054 = vmatpush1.msra.mxu0 0.0
      %3055 = vmatprep.subr.mxu0 0.0
      %3056 = vmatpush1.msra.mxu0 0.0
      %3057 = vmatprep.subr.mxu0 0.0
      %3058 = vmatpush1.msra.mxu0 0.0
      %3059 = vmatprep.subr.mxu0 0.0
      %3060 = vmatpush1.msra.mxu0 0.0
      %3061 = vmatprep.subr.mxu0 0.0
      %3062 = vmatpush1.msra.mxu0 0.0
      %3063 = vmatprep.subr.mxu0 0.0
      %3064 = vmatpush1.msra.mxu0 0.0
      %3065 = vmatprep.subr.mxu0 0.0
      %3066 = vmatpush1.msra.mxu0 0.0
      %3067 = vmatprep.subr.mxu0 0.0
      %3068 = vmatpush1.msra.mxu0 0.0
      %3069 = vmatprep.subr.mxu0 0.0
      %3070 = vmatpush1.msra.mxu0 0.0
      %3071 = vmatprep.subr.mxu0 0.0
      %3072 = vmatpush1.msra.mxu0 0.0
      %3073 = vmatprep.subr.mxu0 0.0
      %3074 = vmatpush1.msra.mxu0 0.0
      %3075 = vmatprep.mubr.f32.mxu0 0.0
      %3076 = vmatmul.mubr.f32.gmra.mrb[0].mxu0 %v2913
      %v3077 = vpop.f32.mrb[0].mxu0
      %v3078 = vadd.f32 0.0, %v3077
      %v3079 = vpop.f32.mrb[0].mxu0
      %3080 = vmatprep.mubr.f32.mxu0 0.0
      %3081 = vmatmul.mubr.f32.gmra.mrb[0].mxu0 %v2916
      %v3082 = vpop.f32.mrb[0].mxu0
      %v3083 = vadd.f32 0.0, %v3082
      %v3084 = vpop.f32.mrb[0].mxu0
      %3085 = vmatprep.mubr.f32.mxu0 0.0
      %3086 = vmatmul.mubr.f32.gmra.mrb[0].mxu0 %v2919
      %v3087 = vpop.f32.mrb[0].mxu0
      %v3088 = vadd.f32 0.0, %v3087
      %v3089 = vpop.f32.mrb[0].mxu0
      %3090 = vmatprep.mubr.f32.mxu0 0.0
      %3091 = vmatmul.mubr.f32.gmra.mrb[0].mxu0 %v2922
      %v3092 = vpop.f32.mrb[0].mxu0
      %v3093 = vadd.f32 0.0, %v3092
      %v3094 = vpop.f32.mrb[0].mxu0
      %3095 = vmatprep.mubr.f32.mxu0 0.0
      %3096 = vmatmul.mubr.f32.gmra.mrb[0].mxu0 %v2925
      %v3097 = vpop.f32.mrb[0].mxu0
      %v3098 = vadd.f32 0.0, %v3097
      %v3099 = vpop.f32.mrb[0].mxu0
      %3100 = vmatprep.mubr.f32.mxu0 0.0
      %3101 = vmatmul.mubr.f32.gmra.mrb[0].mxu0 %v2928
      %v3102 = vpop.f32.mrb[0].mxu0
      %v3103 = vadd.f32 0.0, %v3102
      %v3104 = vpop.f32.mrb[0].mxu0
      %3105 = vmatprep.mubr.f32.mxu0 0.0
      %3106 = vmatmul.mubr.f32.gmra.mrb[0].mxu0 %v2931
      %v3107 = vpop.f32.mrb[0].mxu0
      %v3108 = vadd.f32 0.0, %v3107
      %v3109 = vpop.f32.mrb[0].mxu0
      %3110 = vmatprep.mubr.f32.mxu0 0.0
      %3111 = vmatmul.mubr.f32.gmra.mrb[0].mxu0 %v2934
      %v3112 = vpop.f32.mrb[0].mxu0
      %v3113 = vadd.f32 0.0, %v3112
      %v3114 = vpop.f32.mrb[0].mxu0
      %3115 = vmatprep.mubr.f32.mxu0 0.0
      %3116 = vmatmul.mubr.f32.gmra.mrb[0].mxu0 %v2937
      %v3117 = vpop.f32.mrb[0].mxu0
      %v3118 = vadd.f32 0.0, %v3117
      %v3119 = vpop.f32.mrb[0].mxu0
      %3120 = vmatprep.mubr.f32.mxu0 0.0
      %3121 = vmatmul.mubr.f32.gmra.mrb[0].mxu0 %v2940
      %v3122 = vpop.f32.mrb[0].mxu0
      %v3123 = vadd.f32 0.0, %v3122
      %v3124 = vpop.f32.mrb[0].mxu0
      %3125 = vmatprep.mubr.f32.mxu0 0.0
      %3126 = vmatmul.mubr.f32.gmra.mrb[0].mxu0 %v2943
      %v3127 = vpop.f32.mrb[0].mxu0
      %v3128 = vadd.f32 0.0, %v3127
      %v3129 = vpop.f32.mrb[0].mxu0
      %3130 = vmatprep.mubr.f32.mxu0 0.0
      %3131 = vmatmul.mubr.f32.gmra.mrb[0].mxu0 %v2946
      %v3132 = vpop.f32.mrb[0].mxu0
      %v3133 = vadd.f32 0.0, %v3132
      %v3134 = vpop.f32.mrb[0].mxu0
      %3135 = vmatprep.mubr.f32.mxu0 0.0
      %3136 = vmatmul.mubr.f32.gmra.mrb[0].mxu0 %v2949
      %v3137 = vpop.f32.mrb[0].mxu0
      %v3138 = vadd.f32 0.0, %v3137
      %v3139 = vpop.f32.mrb[0].mxu0
      %3140 = vmatprep.mubr.f32.mxu0 0.0
      %3141 = vmatmul.mubr.f32.gmra.mrb[0].mxu0 %v2952
      %v3142 = vpop.f32.mrb[0].mxu0
      %v3143 = vadd.f32 0.0, %v3142
      %v3144 = vpop.f32.mrb[0].mxu0
      %3145 = vmatprep.mubr.f32.mxu0 0.0
      %3146 = vmatmul.mubr.f32.gmra.mrb[0].mxu0 %v2955
      %v3147 = vpop.f32.mrb[0].mxu0
      %v3148 = vadd.f32 0.0, %v3147
      %v3149 = vpop.f32.mrb[0].mxu0
      %3150 = vmatprep.mubr.f32.mxu0 0.0
      %3151 = vmatmul.mubr.f32.gmra.mrb[0].mxu0 %v2958
      %v3152 = vpop.f32.mrb[0].mxu0
      %v3153 = vadd.f32 0.0, %v3152
      %v3154 = vpop.f32.mrb[0].mxu0
      %3155 = vmatprep.mubr.f32.mxu0 0.0
      %3156 = vmatmul.mubr.f32.gmra.mrb[0].mxu0 %v2961
      %v3157 = vpop.f32.mrb[0].mxu0
      %v3158 = vadd.f32 0.0, %v3157
      %v3159 = vpop.f32.mrb[0].mxu0
      %3160 = vmatprep.mubr.f32.mxu0 0.0
      %3161 = vmatmul.mubr.f32.gmra.mrb[0].mxu0 %v2964
      %v3162 = vpop.f32.mrb[0].mxu0
      %v3163 = vadd.f32 0.0, %v3162
      %v3164 = vpop.f32.mrb[0].mxu0
      %3165 = vmatprep.mubr.f32.mxu0 0.0
      %3166 = vmatmul.mubr.f32.gmra.mrb[0].mxu0 %v2967
      %v3167 = vpop.f32.mrb[0].mxu0
      %v3168 = vadd.f32 0.0, %v3167
      %v3169 = vpop.f32.mrb[0].mxu0
      %3170 = vmatprep.mubr.f32.mxu0 0.0
      %3171 = vmatmul.mubr.f32.gmra.mrb[0].mxu0 %v2970
      %v3172 = vpop.f32.mrb[0].mxu0
      %v3173 = vadd.f32 0.0, %v3172
      %v3174 = vpop.f32.mrb[0].mxu0
      %3175 = vmatprep.mubr.f32.mxu0 0.0
      %3176 = vmatmul.mubr.f32.gmra.mrb[0].mxu0 %v2973
      %v3177 = vpop.f32.mrb[0].mxu0
      %v3178 = vadd.f32 0.0, %v3177
      %v3179 = vpop.f32.mrb[0].mxu0
      %3180 = vmatprep.mubr.f32.mxu0 0.0
      %3181 = vmatmul.mubr.f32.gmra.mrb[0].mxu0 %v2976
      %v3182 = vpop.f32.mrb[0].mxu0
      %v3183 = vadd.f32 0.0, %v3182
      %v3184 = vpop.f32.mrb[0].mxu0
      %3185 = vmatprep.mubr.f32.mxu0 0.0
      %3186 = vmatmul.mubr.f32.gmra.mrb[0].mxu0 %v2979
      %v3187 = vpop.f32.mrb[0].mxu0
      %v3188 = vadd.f32 0.0, %v3187
      %v3189 = vpop.f32.mrb[0].mxu0
      %3190 = vmatprep.mubr.f32.mxu0 0.0
      %3191 = vmatmul.mubr.f32.gmra.mrb[0].mxu0 %v2982
      %v3192 = vpop.f32.mrb[0].mxu0
      %v3193 = vadd.f32 0.0, %v3192
      %v3194 = vpop.f32.mrb[0].mxu0
      %3195 = vmatprep.mubr.f32.mxu0 0.0
      %3196 = vmatmul.mubr.f32.gmra.mrb[0].mxu0 %v2985
      %v3197 = vpop.f32.mrb[0].mxu0
      %v3198 = vadd.f32 0.0, %v3197
      %v3199 = vpop.f32.mrb[0].mxu0
      %3200 = vmatprep.mubr.f32.mxu0 0.0
      %3201 = vmatmul.mubr.f32.gmra.mrb[0].mxu0 %v2988
      %v3202 = vpop.f32.mrb[0].mxu0
      %v3203 = vadd.f32 0.0, %v3202
      %v3204 = vpop.f32.mrb[0].mxu0
      %3205 = vmatprep.mubr.f32.mxu0 0.0
      %3206 = vmatmul.mubr.f32.gmra.mrb[0].mxu0 %v2991
      %v3207 = vpop.f32.mrb[0].mxu0
      %v3208 = vadd.f32 0.0, %v3207
      %v3209 = vpop.f32.mrb[0].mxu0
      %3210 = vmatprep.mubr.f32.mxu0 0.0
      %3211 = vmatmul.mubr.f32.gmra.mrb[0].mxu0 %v2994
      %v3212 = vpop.f32.mrb[0].mxu0
      %v3213 = vadd.f32 0.0, %v3212
      %v3214 = vpop.f32.mrb[0].mxu0
      %3215 = vmatprep.mubr.f32.mxu0 0.0
      %3216 = vmatmul.mubr.f32.gmra.mrb[0].mxu0 %v2997
      %v3217 = vpop.f32.mrb[0].mxu0
      %v3218 = vadd.f32 0.0, %v3217
      %v3219 = vpop.f32.mrb[0].mxu0
      %3220 = vmatprep.mubr.f32.mxu0 0.0
      %3221 = vmatmul.mubr.f32.gmra.mrb[0].mxu0 %v3000
      %v3222 = vpop.f32.mrb[0].mxu0
      %v3223 = vadd.f32 0.0, %v3222
      %v3224 = vpop.f32.mrb[0].mxu0
      %3225 = vmatprep.mubr.f32.mxu0 0.0
      %3226 = vmatmul.mubr.f32.gmra.mrb[0].mxu0 %v3003
      %v3227 = vpop.f32.mrb[0].mxu0
      %v3228 = vadd.f32 0.0, %v3227
      %v3229 = vpop.f32.mrb[0].mxu0
      %3230 = vmatprep.mubr.f32.mxu0 0.0
      %3231 = vmatmul.mubr.f32.gmra.mrb[0].mxu0 %v3006
      %v3232 = vpop.f32.mrb[0].mxu0
      %v3233 = vadd.f32 0.0, %v3232
      %v3234 = vpop.f32.mrb[0].mxu0
      %3235 = vdwg.mxu0
      %v3236 = vld [vmem:[%s208] sm:$0xff]
      %v3237 = vld [vmem:[%s208 + $0x8] sm:$0xff]
      %v3238 = vld [vmem:[%s208 + $0x10] sm:$0xff]
      %v3239 = vld [vmem:[%s208 + $0x18] sm:$0xff]
      %v3240 = vld [vmem:[%s208 + $0x20] sm:$0xff]
      %v3241 = vld [vmem:[%s208 + $0x28] sm:$0xff]
      %v3242 = vld [vmem:[%s208 + $0x30] sm:$0xff]
      %v3243 = vld [vmem:[%s208 + $0x38] sm:$0xff]
      %v3244 = vld [vmem:[%s208 + $0x40] sm:$0xff]
      %v3245 = vld [vmem:[%s208 + $0x48] sm:$0xff]
      %v3246 = vld [vmem:[%s208 + $0x50] sm:$0xff]
      %v3247 = vld [vmem:[%s208 + $0x58] sm:$0xff]
      %v3248 = vld [vmem:[%s208 + $0x60] sm:$0xff]
      %v3249 = vld [vmem:[%s208 + $0x68] sm:$0xff]
      %v3250 = vld [vmem:[%s208 + $0x70] sm:$0xff]
      %v3251 = vld [vmem:[%s208 + $0x78] sm:$0xff]
      %v3252 = vld [vmem:[%s208 + $0x80] sm:$0xff]
      %v3253 = vld [vmem:[%s208 + $0x88] sm:$0xff]
      %v3254 = vld [vmem:[%s208 + $0x90] sm:$0xff]
      %v3255 = vld [vmem:[%s208 + $0x98] sm:$0xff]
      %v3256 = vld [vmem:[%s208 + $0xa0] sm:$0xff]
      %v3257 = vld [vmem:[%s208 + $0xa8] sm:$0xff]
      %v3258 = vld [vmem:[%s208 + $0xb0] sm:$0xff]
      %v3259 = vld [vmem:[%s208 + $0xb8] sm:$0xff]
      %v3260 = vld [vmem:[%s208 + $0xc0] sm:$0xff]
      %v3261 = vld [vmem:[%s208 + $0xc8] sm:$0xff]
      %v3262 = vld [vmem:[%s208 + $0xd0] sm:$0xff]
      %v3263 = vld [vmem:[%s208 + $0xd8] sm:$0xff]
      %v3264 = vld [vmem:[%s208 + $0xe0] sm:$0xff]
      %v3265 = vld [vmem:[%s208 + $0xe8] sm:$0xff]
      %v3266 = vld [vmem:[%s208 + $0xf0] sm:$0xff]
      %v3267 = vld [vmem:[%s208 + $0xf8] sm:$0xff]
      %v3268 = vadd.f32 %v3236, %v3078
      %v3269 = vadd.f32 %v3237, %v3083
      %v3270 = vadd.f32 %v3238, %v3088
      %v3271 = vadd.f32 %v3239, %v3093
      %v3272 = vadd.f32 %v3240, %v3098
      %v3273 = vadd.f32 %v3241, %v3103
      %v3274 = vadd.f32 %v3242, %v3108
      %v3275 = vadd.f32 %v3243, %v3113
      %v3276 = vadd.f32 %v3244, %v3118
      %v3277 = vadd.f32 %v3245, %v3123
      %v3278 = vadd.f32 %v3246, %v3128
      %v3279 = vadd.f32 %v3247, %v3133
      %v3280 = vadd.f32 %v3248, %v3138
      %v3281 = vadd.f32 %v3249, %v3143
      %v3282 = vadd.f32 %v3250, %v3148
      %v3283 = vadd.f32 %v3251, %v3153
      %v3284 = vadd.f32 %v3252, %v3158
      %v3285 = vadd.f32 %v3253, %v3163
      %v3286 = vadd.f32 %v3254, %v3168
      %v3287 = vadd.f32 %v3255, %v3173
      %v3288 = vadd.f32 %v3256, %v3178
      %v3289 = vadd.f32 %v3257, %v3183
      %v3290 = vadd.f32 %v3258, %v3188
      %v3291 = vadd.f32 %v3259, %v3193
      %v3292 = vadd.f32 %v3260, %v3198
      %v3293 = vadd.f32 %v3261, %v3203
      %v3294 = vadd.f32 %v3262, %v3208
      %v3295 = vadd.f32 %v3263, %v3213
      %v3296 = vadd.f32 %v3264, %v3218
      %v3297 = vadd.f32 %v3265, %v3223
      %v3298 = vadd.f32 %v3266, %v3228
      %v3299 = vadd.f32 %v3267, %v3233
      %3300 = vst [vmem:[%s208] sm:$0xff] %v3268
      %3301 = vst [vmem:[%s208 + $0x8] sm:$0xff] %v3269
      %3302 = vst [vmem:[%s208 + $0x10] sm:$0xff] %v3270
      %3303 = vst [vmem:[%s208 + $0x18] sm:$0xff] %v3271
      %3304 = vst [vmem:[%s208 + $0x20] sm:$0xff] %v3272
      %3305 = vst [vmem:[%s208 + $0x28] sm:$0xff] %v3273
      %3306 = vst [vmem:[%s208 + $0x30] sm:$0xff] %v3274
      %3307 = vst [vmem:[%s208 + $0x38] sm:$0xff] %v3275
      %3308 = vst [vmem:[%s208 + $0x40] sm:$0xff] %v3276
      %3309 = vst [vmem:[%s208 + $0x48] sm:$0xff] %v3277
      %3310 = vst [vmem:[%s208 + $0x50] sm:$0xff] %v3278
      %3311 = vst [vmem:[%s208 + $0x58] sm:$0xff] %v3279
      %3312 = vst [vmem:[%s208 + $0x60] sm:$0xff] %v3280
      %3313 = vst [vmem:[%s208 + $0x68] sm:$0xff] %v3281
      %3314 = vst [vmem:[%s208 + $0x70] sm:$0xff] %v3282
      %3315 = vst [vmem:[%s208 + $0x78] sm:$0xff] %v3283
      %3316 = vst [vmem:[%s208 + $0x80] sm:$0xff] %v3284
      %3317 = vst [vmem:[%s208 + $0x88] sm:$0xff] %v3285
      %3318 = vst [vmem:[%s208 + $0x90] sm:$0xff] %v3286
      %3319 = vst [vmem:[%s208 + $0x98] sm:$0xff] %v3287
      %3320 = vst [vmem:[%s208 + $0xa0] sm:$0xff] %v3288
      %3321 = vst [vmem:[%s208 + $0xa8] sm:$0xff] %v3289
      %3322 = vst [vmem:[%s208 + $0xb0] sm:$0xff] %v3290
      %3323 = vst [vmem:[%s208 + $0xb8] sm:$0xff] %v3291
      %3324 = vst [vmem:[%s208 + $0xc0] sm:$0xff] %v3292
      %3325 = vst [vmem:[%s208 + $0xc8] sm:$0xff] %v3293
      %3326 = vst [vmem:[%s208 + $0xd0] sm:$0xff] %v3294
      %3327 = vst [vmem:[%s208 + $0xd8] sm:$0xff] %v3295
      %3328 = vst [vmem:[%s208 + $0xe0] sm:$0xff] %v3296
      %3329 = vst [vmem:[%s208 + $0xe8] sm:$0xff] %v3297
      %3330 = vst [vmem:[%s208 + $0xf0] sm:$0xff] %v3298
      %3331 = vst [vmem:[%s208 + $0xf8] sm:$0xff] %v3299
      %v3332 = vld [vmem:[%s2877 + $0x1] sm:$0xff]
      %v3333 = vld [vmem:[%s2877 + $0x9] sm:$0xff]
      %v3334 = vld [vmem:[%s2877 + $0x19] sm:$0xff]
      %v3335 = vld [vmem:[%s2877 + $0x21] sm:$0xff]
      %v3336 = vld [vmem:[%s2877 + $0x31] sm:$0xff]
      %v3337 = vld [vmem:[%s2877 + $0x39] sm:$0xff]
      %v3338 = vld [vmem:[%s2877 + $0x49] sm:$0xff]
      %v3339 = vld [vmem:[%s2877 + $0x51] sm:$0xff]
      %v3340 = vld [vmem:[%s2877 + $0x61] sm:$0xff]
      %v3341 = vld [vmem:[%s2877 + $0x69] sm:$0xff]
      %v3342 = vld [vmem:[%s2877 + $0x79] sm:$0xff]
      %v3343 = vld [vmem:[%s2877 + $0x81] sm:$0xff]
      %v3344 = vld [vmem:[%s2877 + $0x91] sm:$0xff]
      %v3345 = vld [vmem:[%s2877 + $0x99] sm:$0xff]
      %v3346 = vld [vmem:[%s2877 + $0xa9] sm:$0xff]
      %v3347 = vld [vmem:[%s2877 + $0xb1] sm:$0xff]
      %v3348 = vld [vmem:[%s2877 + $0xc1] sm:$0xff]
      %v3349 = vld [vmem:[%s2877 + $0xc9] sm:$0xff]
      %v3350 = vld [vmem:[%s2877 + $0xd9] sm:$0xff]
      %v3351 = vld [vmem:[%s2877 + $0xe1] sm:$0xff]
      %v3352 = vld [vmem:[%s2877 + $0xf1] sm:$0xff]
      %v3353 = vld [vmem:[%s2877 + $0xf9] sm:$0xff]
      %v3354 = vld [vmem:[%s2877 + $0x109] sm:$0xff]
      %v3355 = vld [vmem:[%s2877 + $0x111] sm:$0xff]
      %v3356 = vld [vmem:[%s2877 + $0x121] sm:$0xff]
      %v3357 = vld [vmem:[%s2877 + $0x129] sm:$0xff]
      %v3358 = vld [vmem:[%s2877 + $0x139] sm:$0xff]
      %v3359 = vld [vmem:[%s2877 + $0x141] sm:$0xff]
      %v3360 = vld [vmem:[%s2877 + $0x151] sm:$0xff]
      %v3361 = vld [vmem:[%s2877 + $0x159] sm:$0xff]
      %v3362 = vld [vmem:[%s2877 + $0x169] sm:$0xff]
      %v3363 = vld [vmem:[%s2877 + $0x171] sm:$0xff]
      %s3364 = scalar_lea.vmem %s1, 28
      %v3365 = vld [vmem:[%s3364] sm:$0xf]
      %v3367 = vsel %vm248, %v3332, 0
      %v3370 = vsel %vm248, %v3333, 0
      %v3373 = vsel %vm248, %v3334, 0
      %v3376 = vsel %vm248, %v3335, 0
      %v3379 = vsel %vm248, %v3336, 0
      %v3382 = vsel %vm248, %v3337, 0
      %v3385 = vsel %vm248, %v3338, 0
      %v3388 = vsel %vm248, %v3339, 0
      %v3391 = vsel %vm248, %v3340, 0
      %v3394 = vsel %vm248, %v3341, 0
      %v3397 = vsel %vm248, %v3342, 0
      %v3400 = vsel %vm248, %v3343, 0
      %v3403 = vsel %vm248, %v3344, 0
      %v3406 = vsel %vm248, %v3345, 0
      %v3409 = vsel %vm248, %v3346, 0
      %v3412 = vsel %vm248, %v3347, 0
      %v3415 = vsel %vm248, %v3348, 0
      %v3418 = vsel %vm248, %v3349, 0
      %v3421 = vsel %vm248, %v3350, 0
      %v3424 = vsel %vm248, %v3351, 0
      %v3427 = vsel %vm248, %v3352, 0
      %v3430 = vsel %vm248, %v3353, 0
      %v3433 = vsel %vm248, %v3354, 0
      %v3436 = vsel %vm248, %v3355, 0
      %v3439 = vsel %vm248, %v3356, 0
      %v3442 = vsel %vm248, %v3357, 0
      %v3445 = vsel %vm248, %v3358, 0
      %v3448 = vsel %vm248, %v3359, 0
      %v3451 = vsel %vm248, %v3360, 0
      %v3454 = vsel %vm248, %v3361, 0
      %v3457 = vsel %vm248, %v3362, 0
      %v3460 = vsel %vm248, %v3363, 0
      %v3463 = vsel %vm345, %v3365, 0
      %3465 = vmatprep.subr.mxu0 0.0
      %3466 = vmatpush1.msra.mxu0 %v3463
      %3467 = vmatprep.subr.mxu0 0.0
      %3468 = vmatpush1.msra.mxu0 0.0
      %3469 = vmatprep.subr.mxu0 0.0
      %3470 = vmatpush1.msra.mxu0 0.0
      %3471 = vmatprep.subr.mxu0 0.0
      %3472 = vmatpush1.msra.mxu0 0.0
      %3473 = vmatprep.subr.mxu0 0.0
      %3474 = vmatpush1.msra.mxu0 0.0
      %3475 = vmatprep.subr.mxu0 0.0
      %3476 = vmatpush1.msra.mxu0 0.0
      %3477 = vmatprep.subr.mxu0 0.0
      %3478 = vmatpush1.msra.mxu0 0.0
      %3479 = vmatprep.subr.mxu0 0.0
      %3480 = vmatpush1.msra.mxu0 0.0
      %3481 = vmatprep.subr.mxu0 0.0
      %3482 = vmatpush1.msra.mxu0 0.0
      %3483 = vmatprep.subr.mxu0 0.0
      %3484 = vmatpush1.msra.mxu0 0.0
      %3485 = vmatprep.subr.mxu0 0.0
      %3486 = vmatpush1.msra.mxu0 0.0
      %3487 = vmatprep.subr.mxu0 0.0
      %3488 = vmatpush1.msra.mxu0 0.0
      %3489 = vmatprep.subr.mxu0 0.0
      %3490 = vmatpush1.msra.mxu0 0.0
      %3491 = vmatprep.subr.mxu0 0.0
      %3492 = vmatpush1.msra.mxu0 0.0
      %3493 = vmatprep.subr.mxu0 0.0
      %3494 = vmatpush1.msra.mxu0 0.0
      %3495 = vmatprep.subr.mxu0 0.0
      %3496 = vmatpush1.msra.mxu0 0.0
      %3497 = vmatprep.subr.mxu0 0.0
      %3498 = vmatpush1.msra.mxu0 0.0
      %3499 = vmatprep.subr.mxu0 0.0
      %3500 = vmatpush1.msra.mxu0 0.0
      %3501 = vmatprep.subr.mxu0 0.0
      %3502 = vmatpush1.msra.mxu0 0.0
      %3503 = vmatprep.subr.mxu0 0.0
      %3504 = vmatpush1.msra.mxu0 0.0
      %3505 = vmatprep.subr.mxu0 0.0
      %3506 = vmatpush1.msra.mxu0 0.0
      %3507 = vmatprep.subr.mxu0 0.0
      %3508 = vmatpush1.msra.mxu0 0.0
      %3509 = vmatprep.subr.mxu0 0.0
      %3510 = vmatpush1.msra.mxu0 0.0
      %3511 = vmatprep.subr.mxu0 0.0
      %3512 = vmatpush1.msra.mxu0 0.0
      %3513 = vmatprep.subr.mxu0 0.0
      %3514 = vmatpush1.msra.mxu0 0.0
      %3515 = vmatprep.subr.mxu0 0.0
      %3516 = vmatpush1.msra.mxu0 0.0
      %3517 = vmatprep.subr.mxu0 0.0
      %3518 = vmatpush1.msra.mxu0 0.0
      %3519 = vmatprep.subr.mxu0 0.0
      %3520 = vmatpush1.msra.mxu0 0.0
      %3521 = vmatprep.subr.mxu0 0.0
      %3522 = vmatpush1.msra.mxu0 0.0
      %3523 = vmatprep.subr.mxu0 0.0
      %3524 = vmatpush1.msra.mxu0 0.0
      %3525 = vmatprep.subr.mxu0 0.0
      %3526 = vmatpush1.msra.mxu0 0.0
      %3527 = vmatprep.subr.mxu0 0.0
      %3528 = vmatpush1.msra.mxu0 0.0
      %3529 = vmatprep.mubr.f32.mxu0 0.0
      %3530 = vmatmul.mubr.f32.gmra.mrb[0].mxu0 %v3367
      %v3531 = vpop.f32.mrb[0].mxu0
      %v3532 = vadd.f32 0.0, %v3531
      %v3533 = vpop.f32.mrb[0].mxu0
      %3534 = vmatprep.mubr.f32.mxu0 0.0
      %3535 = vmatmul.mubr.f32.gmra.mrb[0].mxu0 %v3370
      %v3536 = vpop.f32.mrb[0].mxu0
      %v3537 = vadd.f32 0.0, %v3536
      %v3538 = vpop.f32.mrb[0].mxu0
      %3539 = vmatprep.mubr.f32.mxu0 0.0
      %3540 = vmatmul.mubr.f32.gmra.mrb[0].mxu0 %v3373
      %v3541 = vpop.f32.mrb[0].mxu0
      %v3542 = vadd.f32 0.0, %v3541
      %v3543 = vpop.f32.mrb[0].mxu0
      %3544 = vmatprep.mubr.f32.mxu0 0.0
      %3545 = vmatmul.mubr.f32.gmra.mrb[0].mxu0 %v3376
      %v3546 = vpop.f32.mrb[0].mxu0
      %v3547 = vadd.f32 0.0, %v3546
      %v3548 = vpop.f32.mrb[0].mxu0
      %3549 = vmatprep.mubr.f32.mxu0 0.0
      %3550 = vmatmul.mubr.f32.gmra.mrb[0].mxu0 %v3379
      %v3551 = vpop.f32.mrb[0].mxu0
      %v3552 = vadd.f32 0.0, %v3551
      %v3553 = vpop.f32.mrb[0].mxu0
      %3554 = vmatprep.mubr.f32.mxu0 0.0
      %3555 = vmatmul.mubr.f32.gmra.mrb[0].mxu0 %v3382
      %v3556 = vpop.f32.mrb[0].mxu0
      %v3557 = vadd.f32 0.0, %v3556
      %v3558 = vpop.f32.mrb[0].mxu0
      %3559 = vmatprep.mubr.f32.mxu0 0.0
      %3560 = vmatmul.mubr.f32.gmra.mrb[0].mxu0 %v3385
      %v3561 = vpop.f32.mrb[0].mxu0
      %v3562 = vadd.f32 0.0, %v3561
      %v3563 = vpop.f32.mrb[0].mxu0
      %3564 = vmatprep.mubr.f32.mxu0 0.0
      %3565 = vmatmul.mubr.f32.gmra.mrb[0].mxu0 %v3388
      %v3566 = vpop.f32.mrb[0].mxu0
      %v3567 = vadd.f32 0.0, %v3566
      %v3568 = vpop.f32.mrb[0].mxu0
      %3569 = vmatprep.mubr.f32.mxu0 0.0
      %3570 = vmatmul.mubr.f32.gmra.mrb[0].mxu0 %v3391
      %v3571 = vpop.f32.mrb[0].mxu0
      %v3572 = vadd.f32 0.0, %v3571
      %v3573 = vpop.f32.mrb[0].mxu0
      %3574 = vmatprep.mubr.f32.mxu0 0.0
      %3575 = vmatmul.mubr.f32.gmra.mrb[0].mxu0 %v3394
      %v3576 = vpop.f32.mrb[0].mxu0
      %v3577 = vadd.f32 0.0, %v3576
      %v3578 = vpop.f32.mrb[0].mxu0
      %3579 = vmatprep.mubr.f32.mxu0 0.0
      %3580 = vmatmul.mubr.f32.gmra.mrb[0].mxu0 %v3397
      %v3581 = vpop.f32.mrb[0].mxu0
      %v3582 = vadd.f32 0.0, %v3581
      %v3583 = vpop.f32.mrb[0].mxu0
      %3584 = vmatprep.mubr.f32.mxu0 0.0
      %3585 = vmatmul.mubr.f32.gmra.mrb[0].mxu0 %v3400
      %v3586 = vpop.f32.mrb[0].mxu0
      %v3587 = vadd.f32 0.0, %v3586
      %v3588 = vpop.f32.mrb[0].mxu0
      %3589 = vmatprep.mubr.f32.mxu0 0.0
      %3590 = vmatmul.mubr.f32.gmra.mrb[0].mxu0 %v3403
      %v3591 = vpop.f32.mrb[0].mxu0
      %v3592 = vadd.f32 0.0, %v3591
      %v3593 = vpop.f32.mrb[0].mxu0
      %3594 = vmatprep.mubr.f32.mxu0 0.0
      %3595 = vmatmul.mubr.f32.gmra.mrb[0].mxu0 %v3406
      %v3596 = vpop.f32.mrb[0].mxu0
      %v3597 = vadd.f32 0.0, %v3596
      %v3598 = vpop.f32.mrb[0].mxu0
      %3599 = vmatprep.mubr.f32.mxu0 0.0
      %3600 = vmatmul.mubr.f32.gmra.mrb[0].mxu0 %v3409
      %v3601 = vpop.f32.mrb[0].mxu0
      %v3602 = vadd.f32 0.0, %v3601
      %v3603 = vpop.f32.mrb[0].mxu0
      %3604 = vmatprep.mubr.f32.mxu0 0.0
      %3605 = vmatmul.mubr.f32.gmra.mrb[0].mxu0 %v3412
      %v3606 = vpop.f32.mrb[0].mxu0
      %v3607 = vadd.f32 0.0, %v3606
      %v3608 = vpop.f32.mrb[0].mxu0
      %3609 = vmatprep.mubr.f32.mxu0 0.0
      %3610 = vmatmul.mubr.f32.gmra.mrb[0].mxu0 %v3415
      %v3611 = vpop.f32.mrb[0].mxu0
      %v3612 = vadd.f32 0.0, %v3611
      %v3613 = vpop.f32.mrb[0].mxu0
      %3614 = vmatprep.mubr.f32.mxu0 0.0
      %3615 = vmatmul.mubr.f32.gmra.mrb[0].mxu0 %v3418
      %v3616 = vpop.f32.mrb[0].mxu0
      %v3617 = vadd.f32 0.0, %v3616
      %v3618 = vpop.f32.mrb[0].mxu0
      %3619 = vmatprep.mubr.f32.mxu0 0.0
      %3620 = vmatmul.mubr.f32.gmra.mrb[0].mxu0 %v3421
      %v3621 = vpop.f32.mrb[0].mxu0
      %v3622 = vadd.f32 0.0, %v3621
      %v3623 = vpop.f32.mrb[0].mxu0
      %3624 = vmatprep.mubr.f32.mxu0 0.0
      %3625 = vmatmul.mubr.f32.gmra.mrb[0].mxu0 %v3424
      %v3626 = vpop.f32.mrb[0].mxu0
      %v3627 = vadd.f32 0.0, %v3626
      %v3628 = vpop.f32.mrb[0].mxu0
      %3629 = vmatprep.mubr.f32.mxu0 0.0
      %3630 = vmatmul.mubr.f32.gmra.mrb[0].mxu0 %v3427
      %v3631 = vpop.f32.mrb[0].mxu0
      %v3632 = vadd.f32 0.0, %v3631
      %v3633 = vpop.f32.mrb[0].mxu0
      %3634 = vmatprep.mubr.f32.mxu0 0.0
      %3635 = vmatmul.mubr.f32.gmra.mrb[0].mxu0 %v3430
      %v3636 = vpop.f32.mrb[0].mxu0
      %v3637 = vadd.f32 0.0, %v3636
      %v3638 = vpop.f32.mrb[0].mxu0
      %3639 = vmatprep.mubr.f32.mxu0 0.0
      %3640 = vmatmul.mubr.f32.gmra.mrb[0].mxu0 %v3433
      %v3641 = vpop.f32.mrb[0].mxu0
      %v3642 = vadd.f32 0.0, %v3641
      %v3643 = vpop.f32.mrb[0].mxu0
      %3644 = vmatprep.mubr.f32.mxu0 0.0
      %3645 = vmatmul.mubr.f32.gmra.mrb[0].mxu0 %v3436
      %v3646 = vpop.f32.mrb[0].mxu0
      %v3647 = vadd.f32 0.0, %v3646
      %v3648 = vpop.f32.mrb[0].mxu0
      %3649 = vmatprep.mubr.f32.mxu0 0.0
      %3650 = vmatmul.mubr.f32.gmra.mrb[0].mxu0 %v3439
      %v3651 = vpop.f32.mrb[0].mxu0
      %v3652 = vadd.f32 0.0, %v3651
      %v3653 = vpop.f32.mrb[0].mxu0
      %3654 = vmatprep.mubr.f32.mxu0 0.0
      %3655 = vmatmul.mubr.f32.gmra.mrb[0].mxu0 %v3442
      %v3656 = vpop.f32.mrb[0].mxu0
      %v3657 = vadd.f32 0.0, %v3656
      %v3658 = vpop.f32.mrb[0].mxu0
      %3659 = vmatprep.mubr.f32.mxu0 0.0
      %3660 = vmatmul.mubr.f32.gmra.mrb[0].mxu0 %v3445
      %v3661 = vpop.f32.mrb[0].mxu0
      %v3662 = vadd.f32 0.0, %v3661
      %v3663 = vpop.f32.mrb[0].mxu0
      %3664 = vmatprep.mubr.f32.mxu0 0.0
      %3665 = vmatmul.mubr.f32.gmra.mrb[0].mxu0 %v3448
      %v3666 = vpop.f32.mrb[0].mxu0
      %v3667 = vadd.f32 0.0, %v3666
      %v3668 = vpop.f32.mrb[0].mxu0
      %3669 = vmatprep.mubr.f32.mxu0 0.0
      %3670 = vmatmul.mubr.f32.gmra.mrb[0].mxu0 %v3451
      %v3671 = vpop.f32.mrb[0].mxu0
      %v3672 = vadd.f32 0.0, %v3671
      %v3673 = vpop.f32.mrb[0].mxu0
      %3674 = vmatprep.mubr.f32.mxu0 0.0
      %3675 = vmatmul.mubr.f32.gmra.mrb[0].mxu0 %v3454
      %v3676 = vpop.f32.mrb[0].mxu0
      %v3677 = vadd.f32 0.0, %v3676
      %v3678 = vpop.f32.mrb[0].mxu0
      %3679 = vmatprep.mubr.f32.mxu0 0.0
      %3680 = vmatmul.mubr.f32.gmra.mrb[0].mxu0 %v3457
      %v3681 = vpop.f32.mrb[0].mxu0
      %v3682 = vadd.f32 0.0, %v3681
      %v3683 = vpop.f32.mrb[0].mxu0
      %3684 = vmatprep.mubr.f32.mxu0 0.0
      %3685 = vmatmul.mubr.f32.gmra.mrb[0].mxu0 %v3460
      %v3686 = vpop.f32.mrb[0].mxu0
      %v3687 = vadd.f32 0.0, %v3686
      %v3688 = vpop.f32.mrb[0].mxu0
      %3689 = vdwg.mxu0
      %v3690 = vld [vmem:[%s208] sm:$0xff]
      %v3691 = vld [vmem:[%s208 + $0x8] sm:$0xff]
      %v3692 = vld [vmem:[%s208 + $0x10] sm:$0xff]
      %v3693 = vld [vmem:[%s208 + $0x18] sm:$0xff]
      %v3694 = vld [vmem:[%s208 + $0x20] sm:$0xff]
      %v3695 = vld [vmem:[%s208 + $0x28] sm:$0xff]
      %v3696 = vld [vmem:[%s208 + $0x30] sm:$0xff]
      %v3697 = vld [vmem:[%s208 + $0x38] sm:$0xff]
      %v3698 = vld [vmem:[%s208 + $0x40] sm:$0xff]
      %v3699 = vld [vmem:[%s208 + $0x48] sm:$0xff]
      %v3700 = vld [vmem:[%s208 + $0x50] sm:$0xff]
      %v3701 = vld [vmem:[%s208 + $0x58] sm:$0xff]
      %v3702 = vld [vmem:[%s208 + $0x60] sm:$0xff]
      %v3703 = vld [vmem:[%s208 + $0x68] sm:$0xff]
      %v3704 = vld [vmem:[%s208 + $0x70] sm:$0xff]
      %v3705 = vld [vmem:[%s208 + $0x78] sm:$0xff]
      %v3706 = vld [vmem:[%s208 + $0x80] sm:$0xff]
      %v3707 = vld [vmem:[%s208 + $0x88] sm:$0xff]
      %v3708 = vld [vmem:[%s208 + $0x90] sm:$0xff]
      %v3709 = vld [vmem:[%s208 + $0x98] sm:$0xff]
      %v3710 = vld [vmem:[%s208 + $0xa0] sm:$0xff]
      %v3711 = vld [vmem:[%s208 + $0xa8] sm:$0xff]
      %v3712 = vld [vmem:[%s208 + $0xb0] sm:$0xff]
      %v3713 = vld [vmem:[%s208 + $0xb8] sm:$0xff]
      %v3714 = vld [vmem:[%s208 + $0xc0] sm:$0xff]
      %v3715 = vld [vmem:[%s208 + $0xc8] sm:$0xff]
      %v3716 = vld [vmem:[%s208 + $0xd0] sm:$0xff]
      %v3717 = vld [vmem:[%s208 + $0xd8] sm:$0xff]
      %v3718 = vld [vmem:[%s208 + $0xe0] sm:$0xff]
      %v3719 = vld [vmem:[%s208 + $0xe8] sm:$0xff]
      %v3720 = vld [vmem:[%s208 + $0xf0] sm:$0xff]
      %v3721 = vld [vmem:[%s208 + $0xf8] sm:$0xff]
      %v3722 = vadd.f32 %v3690, %v3532
      %v3723 = vadd.f32 %v3691, %v3537
      %v3724 = vadd.f32 %v3692, %v3542
      %v3725 = vadd.f32 %v3693, %v3547
      %v3726 = vadd.f32 %v3694, %v3552
      %v3727 = vadd.f32 %v3695, %v3557
      %v3728 = vadd.f32 %v3696, %v3562
      %v3729 = vadd.f32 %v3697, %v3567
      %v3730 = vadd.f32 %v3698, %v3572
      %v3731 = vadd.f32 %v3699, %v3577
      %v3732 = vadd.f32 %v3700, %v3582
      %v3733 = vadd.f32 %v3701, %v3587
      %v3734 = vadd.f32 %v3702, %v3592
      %v3735 = vadd.f32 %v3703, %v3597
      %v3736 = vadd.f32 %v3704, %v3602
      %v3737 = vadd.f32 %v3705, %v3607
      %v3738 = vadd.f32 %v3706, %v3612
      %v3739 = vadd.f32 %v3707, %v3617
      %v3740 = vadd.f32 %v3708, %v3622
      %v3741 = vadd.f32 %v3709, %v3627
      %v3742 = vadd.f32 %v3710, %v3632
      %v3743 = vadd.f32 %v3711, %v3637
      %v3744 = vadd.f32 %v3712, %v3642
      %v3745 = vadd.f32 %v3713, %v3647
      %v3746 = vadd.f32 %v3714, %v3652
      %v3747 = vadd.f32 %v3715, %v3657
      %v3748 = vadd.f32 %v3716, %v3662
      %v3749 = vadd.f32 %v3717, %v3667
      %v3750 = vadd.f32 %v3718, %v3672
      %v3751 = vadd.f32 %v3719, %v3677
      %v3752 = vadd.f32 %v3720, %v3682
      %v3753 = vadd.f32 %v3721, %v3687
      %3754 = vst [vmem:[%s208] sm:$0xff] %v3722
      %3755 = vst [vmem:[%s208 + $0x8] sm:$0xff] %v3723
      %3756 = vst [vmem:[%s208 + $0x10] sm:$0xff] %v3724
      %3757 = vst [vmem:[%s208 + $0x18] sm:$0xff] %v3725
      %3758 = vst [vmem:[%s208 + $0x20] sm:$0xff] %v3726
      %3759 = vst [vmem:[%s208 + $0x28] sm:$0xff] %v3727
      %3760 = vst [vmem:[%s208 + $0x30] sm:$0xff] %v3728
      %3761 = vst [vmem:[%s208 + $0x38] sm:$0xff] %v3729
      %3762 = vst [vmem:[%s208 + $0x40] sm:$0xff] %v3730
      %3763 = vst [vmem:[%s208 + $0x48] sm:$0xff] %v3731
      %3764 = vst [vmem:[%s208 + $0x50] sm:$0xff] %v3732
      %3765 = vst [vmem:[%s208 + $0x58] sm:$0xff] %v3733
      %3766 = vst [vmem:[%s208 + $0x60] sm:$0xff] %v3734
      %3767 = vst [vmem:[%s208 + $0x68] sm:$0xff] %v3735
      %3768 = vst [vmem:[%s208 + $0x70] sm:$0xff] %v3736
      %3769 = vst [vmem:[%s208 + $0x78] sm:$0xff] %v3737
      %3770 = vst [vmem:[%s208 + $0x80] sm:$0xff] %v3738
      %3771 = vst [vmem:[%s208 + $0x88] sm:$0xff] %v3739
      %3772 = vst [vmem:[%s208 + $0x90] sm:$0xff] %v3740
      %3773 = vst [vmem:[%s208 + $0x98] sm:$0xff] %v3741
      %3774 = vst [vmem:[%s208 + $0xa0] sm:$0xff] %v3742
      %3775 = vst [vmem:[%s208 + $0xa8] sm:$0xff] %v3743
      %3776 = vst [vmem:[%s208 + $0xb0] sm:$0xff] %v3744
      %3777 = vst [vmem:[%s208 + $0xb8] sm:$0xff] %v3745
      %3778 = vst [vmem:[%s208 + $0xc0] sm:$0xff] %v3746
      %3779 = vst [vmem:[%s208 + $0xc8] sm:$0xff] %v3747
      %3780 = vst [vmem:[%s208 + $0xd0] sm:$0xff] %v3748
      %3781 = vst [vmem:[%s208 + $0xd8] sm:$0xff] %v3749
      %3782 = vst [vmem:[%s208 + $0xe0] sm:$0xff] %v3750
      %3783 = vst [vmem:[%s208 + $0xe8] sm:$0xff] %v3751
      %3784 = vst [vmem:[%s208 + $0xf0] sm:$0xff] %v3752
      %3785 = vst [vmem:[%s208 + $0xf8] sm:$0xff] %v3753
      %v3786 = vld [vmem:[%s2877 + $0x2] sm:$0xff]
      %v3787 = vld [vmem:[%s2877 + $0xa] sm:$0xff]
      %v3788 = vld [vmem:[%s2877 + $0x1a] sm:$0xff]
      %v3789 = vld [vmem:[%s2877 + $0x22] sm:$0xff]
      %v3790 = vld [vmem:[%s2877 + $0x32] sm:$0xff]
      %v3791 = vld [vmem:[%s2877 + $0x3a] sm:$0xff]
      %v3792 = vld [vmem:[%s2877 + $0x4a] sm:$0xff]
      %v3793 = vld [vmem:[%s2877 + $0x52] sm:$0xff]
      %v3794 = vld [vmem:[%s2877 + $0x62] sm:$0xff]
      %v3795 = vld [vmem:[%s2877 + $0x6a] sm:$0xff]
      %v3796 = vld [vmem:[%s2877 + $0x7a] sm:$0xff]
      %v3797 = vld [vmem:[%s2877 + $0x82] sm:$0xff]
      %v3798 = vld [vmem:[%s2877 + $0x92] sm:$0xff]
      %v3799 = vld [vmem:[%s2877 + $0x9a] sm:$0xff]
      %v3800 = vld [vmem:[%s2877 + $0xaa] sm:$0xff]
      %v3801 = vld [vmem:[%s2877 + $0xb2] sm:$0xff]
      %v3802 = vld [vmem:[%s2877 + $0xc2] sm:$0xff]
      %v3803 = vld [vmem:[%s2877 + $0xca] sm:$0xff]
      %v3804 = vld [vmem:[%s2877 + $0xda] sm:$0xff]
      %v3805 = vld [vmem:[%s2877 + $0xe2] sm:$0xff]
      %v3806 = vld [vmem:[%s2877 + $0xf2] sm:$0xff]
      %v3807 = vld [vmem:[%s2877 + $0xfa] sm:$0xff]
      %v3808 = vld [vmem:[%s2877 + $0x10a] sm:$0xff]
      %v3809 = vld [vmem:[%s2877 + $0x112] sm:$0xff]
      %v3810 = vld [vmem:[%s2877 + $0x122] sm:$0xff]
      %v3811 = vld [vmem:[%s2877 + $0x12a] sm:$0xff]
      %v3812 = vld [vmem:[%s2877 + $0x13a] sm:$0xff]
      %v3813 = vld [vmem:[%s2877 + $0x142] sm:$0xff]
      %v3814 = vld [vmem:[%s2877 + $0x152] sm:$0xff]
      %v3815 = vld [vmem:[%s2877 + $0x15a] sm:$0xff]
      %v3816 = vld [vmem:[%s2877 + $0x16a] sm:$0xff]
      %v3817 = vld [vmem:[%s2877 + $0x172] sm:$0xff]
      %s3818 = scalar_lea.vmem %s1, 32
      %v3819 = vld [vmem:[%s3818] sm:$0xf]
      %v3821 = vsel %vm248, %v3786, 0
      %v3824 = vsel %vm248, %v3787, 0
      %v3827 = vsel %vm248, %v3788, 0
      %v3830 = vsel %vm248, %v3789, 0
      %v3833 = vsel %vm248, %v3790, 0
      %v3836 = vsel %vm248, %v3791, 0
      %v3839 = vsel %vm248, %v3792, 0
      %v3842 = vsel %vm248, %v3793, 0
      %v3845 = vsel %vm248, %v3794, 0
      %v3848 = vsel %vm248, %v3795, 0
      %v3851 = vsel %vm248, %v3796, 0
      %v3854 = vsel %vm248, %v3797, 0
      %v3857 = vsel %vm248, %v3798, 0
      %v3860 = vsel %vm248, %v3799, 0
      %v3863 = vsel %vm248, %v3800, 0
      %v3866 = vsel %vm248, %v3801, 0
      %v3869 = vsel %vm248, %v3802, 0
      %v3872 = vsel %vm248, %v3803, 0
      %v3875 = vsel %vm248, %v3804, 0
      %v3878 = vsel %vm248, %v3805, 0
      %v3881 = vsel %vm248, %v3806, 0
      %v3884 = vsel %vm248, %v3807, 0
      %v3887 = vsel %vm248, %v3808, 0
      %v3890 = vsel %vm248, %v3809, 0
      %v3893 = vsel %vm248, %v3810, 0
      %v3896 = vsel %vm248, %v3811, 0
      %v3899 = vsel %vm248, %v3812, 0
      %v3902 = vsel %vm248, %v3813, 0
      %v3905 = vsel %vm248, %v3814, 0
      %v3908 = vsel %vm248, %v3815, 0
      %v3911 = vsel %vm248, %v3816, 0
      %v3914 = vsel %vm248, %v3817, 0
      %v3917 = vsel %vm345, %v3819, 0
      %3919 = vmatprep.subr.mxu0 0.0
      %3920 = vmatpush1.msra.mxu0 %v3917
      %3921 = vmatprep.subr.mxu0 0.0
      %3922 = vmatpush1.msra.mxu0 0.0
      %3923 = vmatprep.subr.mxu0 0.0
      %3924 = vmatpush1.msra.mxu0 0.0
      %3925 = vmatprep.subr.mxu0 0.0
      %3926 = vmatpush1.msra.mxu0 0.0
      %3927 = vmatprep.subr.mxu0 0.0
      %3928 = vmatpush1.msra.mxu0 0.0
      %3929 = vmatprep.subr.mxu0 0.0
      %3930 = vmatpush1.msra.mxu0 0.0
      %3931 = vmatprep.subr.mxu0 0.0
      %3932 = vmatpush1.msra.mxu0 0.0
      %3933 = vmatprep.subr.mxu0 0.0
      %3934 = vmatpush1.msra.mxu0 0.0
      %3935 = vmatprep.subr.mxu0 0.0
      %3936 = vmatpush1.msra.mxu0 0.0
      %3937 = vmatprep.subr.mxu0 0.0
      %3938 = vmatpush1.msra.mxu0 0.0
      %3939 = vmatprep.subr.mxu0 0.0
      %3940 = vmatpush1.msra.mxu0 0.0
      %3941 = vmatprep.subr.mxu0 0.0
      %3942 = vmatpush1.msra.mxu0 0.0
      %3943 = vmatprep.subr.mxu0 0.0
      %3944 = vmatpush1.msra.mxu0 0.0
      %3945 = vmatprep.subr.mxu0 0.0
      %3946 = vmatpush1.msra.mxu0 0.0
      %3947 = vmatprep.subr.mxu0 0.0
      %3948 = vmatpush1.msra.mxu0 0.0
      %3949 = vmatprep.subr.mxu0 0.0
      %3950 = vmatpush1.msra.mxu0 0.0
      %3951 = vmatprep.subr.mxu0 0.0
      %3952 = vmatpush1.msra.mxu0 0.0
      %3953 = vmatprep.subr.mxu0 0.0
      %3954 = vmatpush1.msra.mxu0 0.0
      %3955 = vmatprep.subr.mxu0 0.0
      %3956 = vmatpush1.msra.mxu0 0.0
      %3957 = vmatprep.subr.mxu0 0.0
      %3958 = vmatpush1.msra.mxu0 0.0
      %3959 = vmatprep.subr.mxu0 0.0
      %3960 = vmatpush1.msra.mxu0 0.0
      %3961 = vmatprep.subr.mxu0 0.0
      %3962 = vmatpush1.msra.mxu0 0.0
      %3963 = vmatprep.subr.mxu0 0.0
      %3964 = vmatpush1.msra.mxu0 0.0
      %3965 = vmatprep.subr.mxu0 0.0
      %3966 = vmatpush1.msra.mxu0 0.0
      %3967 = vmatprep.subr.mxu0 0.0
      %3968 = vmatpush1.msra.mxu0 0.0
      %3969 = vmatprep.subr.mxu0 0.0
      %3970 = vmatpush1.msra.mxu0 0.0
      %3971 = vmatprep.subr.mxu0 0.0
      %3972 = vmatpush1.msra.mxu0 0.0
      %3973 = vmatprep.subr.mxu0 0.0
      %3974 = vmatpush1.msra.mxu0 0.0
      %3975 = vmatprep.subr.mxu0 0.0
      %3976 = vmatpush1.msra.mxu0 0.0
      %3977 = vmatprep.subr.mxu0 0.0
      %3978 = vmatpush1.msra.mxu0 0.0
      %3979 = vmatprep.subr.mxu0 0.0
      %3980 = vmatpush1.msra.mxu0 0.0
      %3981 = vmatprep.subr.mxu0 0.0
      %3982 = vmatpush1.msra.mxu0 0.0
      %3983 = vmatprep.mubr.f32.mxu0 0.0
      %3984 = vmatmul.mubr.f32.gmra.mrb[0].mxu0 %v3821
      %v3985 = vpop.f32.mrb[0].mxu0
      %v3986 = vadd.f32 0.0, %v3985
      %v3987 = vpop.f32.mrb[0].mxu0
      %3988 = vmatprep.mubr.f32.mxu0 0.0
      %3989 = vmatmul.mubr.f32.gmra.mrb[0].mxu0 %v3824
      %v3990 = vpop.f32.mrb[0].mxu0
      %v3991 = vadd.f32 0.0, %v3990
      %v3992 = vpop.f32.mrb[0].mxu0
      %3993 = vmatprep.mubr.f32.mxu0 0.0
      %3994 = vmatmul.mubr.f32.gmra.mrb[0].mxu0 %v3827
      %v3995 = vpop.f32.mrb[0].mxu0
      %v3996 = vadd.f32 0.0, %v3995
      %v3997 = vpop.f32.mrb[0].mxu0
      %3998 = vmatprep.mubr.f32.mxu0 0.0
      %3999 = vmatmul.mubr.f32.gmra.mrb[0].mxu0 %v3830
      %v4000 = vpop.f32.mrb[0].mxu0
      %v4001 = vadd.f32 0.0, %v4000
      %v4002 = vpop.f32.mrb[0].mxu0
      %4003 = vmatprep.mubr.f32.mxu0 0.0
      %4004 = vmatmul.mubr.f32.gmra.mrb[0].mxu0 %v3833
      %v4005 = vpop.f32.mrb[0].mxu0
      %v4006 = vadd.f32 0.0, %v4005
      %v4007 = vpop.f32.mrb[0].mxu0
      %4008 = vmatprep.mubr.f32.mxu0 0.0
      %4009 = vmatmul.mubr.f32.gmra.mrb[0].mxu0 %v3836
      %v4010 = vpop.f32.mrb[0].mxu0
      %v4011 = vadd.f32 0.0, %v4010
      %v4012 = vpop.f32.mrb[0].mxu0
      %4013 = vmatprep.mubr.f32.mxu0 0.0
      %4014 = vmatmul.mubr.f32.gmra.mrb[0].mxu0 %v3839
      %v4015 = vpop.f32.mrb[0].mxu0
      %v4016 = vadd.f32 0.0, %v4015
      %v4017 = vpop.f32.mrb[0].mxu0
      %4018 = vmatprep.mubr.f32.mxu0 0.0
      %4019 = vmatmul.mubr.f32.gmra.mrb[0].mxu0 %v3842
      %v4020 = vpop.f32.mrb[0].mxu0
      %v4021 = vadd.f32 0.0, %v4020
      %v4022 = vpop.f32.mrb[0].mxu0
      %4023 = vmatprep.mubr.f32.mxu0 0.0
      %4024 = vmatmul.mubr.f32.gmra.mrb[0].mxu0 %v3845
      %v4025 = vpop.f32.mrb[0].mxu0
      %v4026 = vadd.f32 0.0, %v4025
      %v4027 = vpop.f32.mrb[0].mxu0
      %4028 = vmatprep.mubr.f32.mxu0 0.0
      %4029 = vmatmul.mubr.f32.gmra.mrb[0].mxu0 %v3848
      %v4030 = vpop.f32.mrb[0].mxu0
      %v4031 = vadd.f32 0.0, %v4030
      %v4032 = vpop.f32.mrb[0].mxu0
      %4033 = vmatprep.mubr.f32.mxu0 0.0
      %4034 = vmatmul.mubr.f32.gmra.mrb[0].mxu0 %v3851
      %v4035 = vpop.f32.mrb[0].mxu0
      %v4036 = vadd.f32 0.0, %v4035
      %v4037 = vpop.f32.mrb[0].mxu0
      %4038 = vmatprep.mubr.f32.mxu0 0.0
      %4039 = vmatmul.mubr.f32.gmra.mrb[0].mxu0 %v3854
      %v4040 = vpop.f32.mrb[0].mxu0
      %v4041 = vadd.f32 0.0, %v4040
      %v4042 = vpop.f32.mrb[0].mxu0
      %4043 = vmatprep.mubr.f32.mxu0 0.0
      %4044 = vmatmul.mubr.f32.gmra.mrb[0].mxu0 %v3857
      %v4045 = vpop.f32.mrb[0].mxu0
      %v4046 = vadd.f32 0.0, %v4045
      %v4047 = vpop.f32.mrb[0].mxu0
      %4048 = vmatprep.mubr.f32.mxu0 0.0
      %4049 = vmatmul.mubr.f32.gmra.mrb[0].mxu0 %v3860
      %v4050 = vpop.f32.mrb[0].mxu0
      %v4051 = vadd.f32 0.0, %v4050
      %v4052 = vpop.f32.mrb[0].mxu0
      %4053 = vmatprep.mubr.f32.mxu0 0.0
      %4054 = vmatmul.mubr.f32.gmra.mrb[0].mxu0 %v3863
      %v4055 = vpop.f32.mrb[0].mxu0
      %v4056 = vadd.f32 0.0, %v4055
      %v4057 = vpop.f32.mrb[0].mxu0
      %4058 = vmatprep.mubr.f32.mxu0 0.0
      %4059 = vmatmul.mubr.f32.gmra.mrb[0].mxu0 %v3866
      %v4060 = vpop.f32.mrb[0].mxu0
      %v4061 = vadd.f32 0.0, %v4060
      %v4062 = vpop.f32.mrb[0].mxu0
      %4063 = vmatprep.mubr.f32.mxu0 0.0
      %4064 = vmatmul.mubr.f32.gmra.mrb[0].mxu0 %v3869
      %v4065 = vpop.f32.mrb[0].mxu0
      %v4066 = vadd.f32 0.0, %v4065
      %v4067 = vpop.f32.mrb[0].mxu0
      %4068 = vmatprep.mubr.f32.mxu0 0.0
      %4069 = vmatmul.mubr.f32.gmra.mrb[0].mxu0 %v3872
      %v4070 = vpop.f32.mrb[0].mxu0
      %v4071 = vadd.f32 0.0, %v4070
      %v4072 = vpop.f32.mrb[0].mxu0
      %4073 = vmatprep.mubr.f32.mxu0 0.0
      %4074 = vmatmul.mubr.f32.gmra.mrb[0].mxu0 %v3875
      %v4075 = vpop.f32.mrb[0].mxu0
      %v4076 = vadd.f32 0.0, %v4075
      %v4077 = vpop.f32.mrb[0].mxu0
      %4078 = vmatprep.mubr.f32.mxu0 0.0
      %4079 = vmatmul.mubr.f32.gmra.mrb[0].mxu0 %v3878
      %v4080 = vpop.f32.mrb[0].mxu0
      %v4081 = vadd.f32 0.0, %v4080
      %v4082 = vpop.f32.mrb[0].mxu0
      %4083 = vmatprep.mubr.f32.mxu0 0.0
      %4084 = vmatmul.mubr.f32.gmra.mrb[0].mxu0 %v3881
      %v4085 = vpop.f32.mrb[0].mxu0
      %v4086 = vadd.f32 0.0, %v4085
      %v4087 = vpop.f32.mrb[0].mxu0
      %4088 = vmatprep.mubr.f32.mxu0 0.0
      %4089 = vmatmul.mubr.f32.gmra.mrb[0].mxu0 %v3884
      %v4090 = vpop.f32.mrb[0].mxu0
      %v4091 = vadd.f32 0.0, %v4090
      %v4092 = vpop.f32.mrb[0].mxu0
      %4093 = vmatprep.mubr.f32.mxu0 0.0
      %4094 = vmatmul.mubr.f32.gmra.mrb[0].mxu0 %v3887
      %v4095 = vpop.f32.mrb[0].mxu0
      %v4096 = vadd.f32 0.0, %v4095
      %v4097 = vpop.f32.mrb[0].mxu0
      %4098 = vmatprep.mubr.f32.mxu0 0.0
      %4099 = vmatmul.mubr.f32.gmra.mrb[0].mxu0 %v3890
      %v4100 = vpop.f32.mrb[0].mxu0
      %v4101 = vadd.f32 0.0, %v4100
      %v4102 = vpop.f32.mrb[0].mxu0
      %4103 = vmatprep.mubr.f32.mxu0 0.0
      %4104 = vmatmul.mubr.f32.gmra.mrb[0].mxu0 %v3893
      %v4105 = vpop.f32.mrb[0].mxu0
      %v4106 = vadd.f32 0.0, %v4105
      %v4107 = vpop.f32.mrb[0].mxu0
      %4108 = vmatprep.mubr.f32.mxu0 0.0
      %4109 = vmatmul.mubr.f32.gmra.mrb[0].mxu0 %v3896
      %v4110 = vpop.f32.mrb[0].mxu0
      %v4111 = vadd.f32 0.0, %v4110
      %v4112 = vpop.f32.mrb[0].mxu0
      %4113 = vmatprep.mubr.f32.mxu0 0.0
      %4114 = vmatmul.mubr.f32.gmra.mrb[0].mxu0 %v3899
      %v4115 = vpop.f32.mrb[0].mxu0
      %v4116 = vadd.f32 0.0, %v4115
      %v4117 = vpop.f32.mrb[0].mxu0
      %4118 = vmatprep.mubr.f32.mxu0 0.0
      %4119 = vmatmul.mubr.f32.gmra.mrb[0].mxu0 %v3902
      %v4120 = vpop.f32.mrb[0].mxu0
      %v4121 = vadd.f32 0.0, %v4120
      %v4122 = vpop.f32.mrb[0].mxu0
      %4123 = vmatprep.mubr.f32.mxu0 0.0
      %4124 = vmatmul.mubr.f32.gmra.mrb[0].mxu0 %v3905
      %v4125 = vpop.f32.mrb[0].mxu0
      %v4126 = vadd.f32 0.0, %v4125
      %v4127 = vpop.f32.mrb[0].mxu0
      %4128 = vmatprep.mubr.f32.mxu0 0.0
      %4129 = vmatmul.mubr.f32.gmra.mrb[0].mxu0 %v3908
      %v4130 = vpop.f32.mrb[0].mxu0
      %v4131 = vadd.f32 0.0, %v4130
      %v4132 = vpop.f32.mrb[0].mxu0
      %4133 = vmatprep.mubr.f32.mxu0 0.0
      %4134 = vmatmul.mubr.f32.gmra.mrb[0].mxu0 %v3911
      %v4135 = vpop.f32.mrb[0].mxu0
      %v4136 = vadd.f32 0.0, %v4135
      %v4137 = vpop.f32.mrb[0].mxu0
      %4138 = vmatprep.mubr.f32.mxu0 0.0
      %4139 = vmatmul.mubr.f32.gmra.mrb[0].mxu0 %v3914
      %v4140 = vpop.f32.mrb[0].mxu0
      %v4141 = vadd.f32 0.0, %v4140
      %v4142 = vpop.f32.mrb[0].mxu0
      %4143 = vdwg.mxu0
      %v4144 = vld [vmem:[%s208] sm:$0xff]
      %v4145 = vld [vmem:[%s208 + $0x8] sm:$0xff]
      %v4146 = vld [vmem:[%s208 + $0x10] sm:$0xff]
      %v4147 = vld [vmem:[%s208 + $0x18] sm:$0xff]
      %v4148 = vld [vmem:[%s208 + $0x20] sm:$0xff]
      %v4149 = vld [vmem:[%s208 + $0x28] sm:$0xff]
      %v4150 = vld [vmem:[%s208 + $0x30] sm:$0xff]
      %v4151 = vld [vmem:[%s208 + $0x38] sm:$0xff]
      %v4152 = vld [vmem:[%s208 + $0x40] sm:$0xff]
      %v4153 = vld [vmem:[%s208 + $0x48] sm:$0xff]
      %v4154 = vld [vmem:[%s208 + $0x50] sm:$0xff]
      %v4155 = vld [vmem:[%s208 + $0x58] sm:$0xff]
      %v4156 = vld [vmem:[%s208 + $0x60] sm:$0xff]
      %v4157 = vld [vmem:[%s208 + $0x68] sm:$0xff]
      %v4158 = vld [vmem:[%s208 + $0x70] sm:$0xff]
      %v4159 = vld [vmem:[%s208 + $0x78] sm:$0xff]
      %v4160 = vld [vmem:[%s208 + $0x80] sm:$0xff]
      %v4161 = vld [vmem:[%s208 + $0x88] sm:$0xff]
      %v4162 = vld [vmem:[%s208 + $0x90] sm:$0xff]
      %v4163 = vld [vmem:[%s208 + $0x98] sm:$0xff]
      %v4164 = vld [vmem:[%s208 + $0xa0] sm:$0xff]
      %v4165 = vld [vmem:[%s208 + $0xa8] sm:$0xff]
      %v4166 = vld [vmem:[%s208 + $0xb0] sm:$0xff]
      %v4167 = vld [vmem:[%s208 + $0xb8] sm:$0xff]
      %v4168 = vld [vmem:[%s208 + $0xc0] sm:$0xff]
      %v4169 = vld [vmem:[%s208 + $0xc8] sm:$0xff]
      %v4170 = vld [vmem:[%s208 + $0xd0] sm:$0xff]
      %v4171 = vld [vmem:[%s208 + $0xd8] sm:$0xff]
      %v4172 = vld [vmem:[%s208 + $0xe0] sm:$0xff]
      %v4173 = vld [vmem:[%s208 + $0xe8] sm:$0xff]
      %v4174 = vld [vmem:[%s208 + $0xf0] sm:$0xff]
      %v4175 = vld [vmem:[%s208 + $0xf8] sm:$0xff]
      %v4176 = vadd.f32 %v4144, %v3986
      %v4177 = vadd.f32 %v4145, %v3991
      %v4178 = vadd.f32 %v4146, %v3996
      %v4179 = vadd.f32 %v4147, %v4001
      %v4180 = vadd.f32 %v4148, %v4006
      %v4181 = vadd.f32 %v4149, %v4011
      %v4182 = vadd.f32 %v4150, %v4016
      %v4183 = vadd.f32 %v4151, %v4021
      %v4184 = vadd.f32 %v4152, %v4026
      %v4185 = vadd.f32 %v4153, %v4031
      %v4186 = vadd.f32 %v4154, %v4036
      %v4187 = vadd.f32 %v4155, %v4041
      %v4188 = vadd.f32 %v4156, %v4046
      %v4189 = vadd.f32 %v4157, %v4051
      %v4190 = vadd.f32 %v4158, %v4056
      %v4191 = vadd.f32 %v4159, %v4061
      %v4192 = vadd.f32 %v4160, %v4066
      %v4193 = vadd.f32 %v4161, %v4071
      %v4194 = vadd.f32 %v4162, %v4076
      %v4195 = vadd.f32 %v4163, %v4081
      %v4196 = vadd.f32 %v4164, %v4086
      %v4197 = vadd.f32 %v4165, %v4091
      %v4198 = vadd.f32 %v4166, %v4096
      %v4199 = vadd.f32 %v4167, %v4101
      %v4200 = vadd.f32 %v4168, %v4106
      %v4201 = vadd.f32 %v4169, %v4111
      %v4202 = vadd.f32 %v4170, %v4116
      %v4203 = vadd.f32 %v4171, %v4121
      %v4204 = vadd.f32 %v4172, %v4126
      %v4205 = vadd.f32 %v4173, %v4131
      %v4206 = vadd.f32 %v4174, %v4136
      %v4207 = vadd.f32 %v4175, %v4141
      %4208 = vst [vmem:[%s208] sm:$0xff] %v4176
      %4209 = vst [vmem:[%s208 + $0x8] sm:$0xff] %v4177
      %4210 = vst [vmem:[%s208 + $0x10] sm:$0xff] %v4178
      %4211 = vst [vmem:[%s208 + $0x18] sm:$0xff] %v4179
      %4212 = vst [vmem:[%s208 + $0x20] sm:$0xff] %v4180
      %4213 = vst [vmem:[%s208 + $0x28] sm:$0xff] %v4181
      %4214 = vst [vmem:[%s208 + $0x30] sm:$0xff] %v4182
      %4215 = vst [vmem:[%s208 + $0x38] sm:$0xff] %v4183
      %4216 = vst [vmem:[%s208 + $0x40] sm:$0xff] %v4184
      %4217 = vst [vmem:[%s208 + $0x48] sm:$0xff] %v4185
      %4218 = vst [vmem:[%s208 + $0x50] sm:$0xff] %v4186
      %4219 = vst [vmem:[%s208 + $0x58] sm:$0xff] %v4187
      %4220 = vst [vmem:[%s208 + $0x60] sm:$0xff] %v4188
      %4221 = vst [vmem:[%s208 + $0x68] sm:$0xff] %v4189
      %4222 = vst [vmem:[%s208 + $0x70] sm:$0xff] %v4190
      %4223 = vst [vmem:[%s208 + $0x78] sm:$0xff] %v4191
      %4224 = vst [vmem:[%s208 + $0x80] sm:$0xff] %v4192
      %4225 = vst [vmem:[%s208 + $0x88] sm:$0xff] %v4193
      %4226 = vst [vmem:[%s208 + $0x90] sm:$0xff] %v4194
      %4227 = vst [vmem:[%s208 + $0x98] sm:$0xff] %v4195
      %4228 = vst [vmem:[%s208 + $0xa0] sm:$0xff] %v4196
      %4229 = vst [vmem:[%s208 + $0xa8] sm:$0xff] %v4197
      %4230 = vst [vmem:[%s208 + $0xb0] sm:$0xff] %v4198
      %4231 = vst [vmem:[%s208 + $0xb8] sm:$0xff] %v4199
      %4232 = vst [vmem:[%s208 + $0xc0] sm:$0xff] %v4200
      %4233 = vst [vmem:[%s208 + $0xc8] sm:$0xff] %v4201
      %4234 = vst [vmem:[%s208 + $0xd0] sm:$0xff] %v4202
      %4235 = vst [vmem:[%s208 + $0xd8] sm:$0xff] %v4203
      %4236 = vst [vmem:[%s208 + $0xe0] sm:$0xff] %v4204
      %4237 = vst [vmem:[%s208 + $0xe8] sm:$0xff] %v4205
      %4238 = vst [vmem:[%s208 + $0xf0] sm:$0xff] %v4206
      %4239 = vst [vmem:[%s208 + $0xf8] sm:$0xff] %v4207
      %v4240 = vld [vmem:[%s208] sm:$0xff]
      %v4241 = vld [vmem:[%s208 + $0x8] sm:$0xff]
      %v4242 = vld [vmem:[%s208 + $0x10] sm:$0xff]
      %v4243 = vld [vmem:[%s208 + $0x18] sm:$0xff]
      %v4244 = vld [vmem:[%s208 + $0x20] sm:$0xff]
      %v4245 = vld [vmem:[%s208 + $0x28] sm:$0xff]
      %v4246 = vld [vmem:[%s208 + $0x30] sm:$0xff]
      %v4247 = vld [vmem:[%s208 + $0x38] sm:$0xff]
      %v4248 = vld [vmem:[%s208 + $0x40] sm:$0xff]
      %v4249 = vld [vmem:[%s208 + $0x48] sm:$0xff]
      %v4250 = vld [vmem:[%s208 + $0x50] sm:$0xff]
      %v4251 = vld [vmem:[%s208 + $0x58] sm:$0xff]
      %v4252 = vld [vmem:[%s208 + $0x60] sm:$0xff]
      %v4253 = vld [vmem:[%s208 + $0x68] sm:$0xff]
      %v4254 = vld [vmem:[%s208 + $0x70] sm:$0xff]
      %v4255 = vld [vmem:[%s208 + $0x78] sm:$0xff]
      %v4256 = vld [vmem:[%s208 + $0x80] sm:$0xff]
      %v4257 = vld [vmem:[%s208 + $0x88] sm:$0xff]
      %v4258 = vld [vmem:[%s208 + $0x90] sm:$0xff]
      %v4259 = vld [vmem:[%s208 + $0x98] sm:$0xff]
      %v4260 = vld [vmem:[%s208 + $0xa0] sm:$0xff]
      %v4261 = vld [vmem:[%s208 + $0xa8] sm:$0xff]
      %v4262 = vld [vmem:[%s208 + $0xb0] sm:$0xff]
      %v4263 = vld [vmem:[%s208 + $0xb8] sm:$0xff]
      %v4264 = vld [vmem:[%s208 + $0xc0] sm:$0xff]
      %v4265 = vld [vmem:[%s208 + $0xc8] sm:$0xff]
      %v4266 = vld [vmem:[%s208 + $0xd0] sm:$0xff]
      %v4267 = vld [vmem:[%s208 + $0xd8] sm:$0xff]
      %v4268 = vld [vmem:[%s208 + $0xe0] sm:$0xff]
      %v4269 = vld [vmem:[%s208 + $0xe8] sm:$0xff]
      %v4270 = vld [vmem:[%s208 + $0xf0] sm:$0xff]
      %v4271 = vld [vmem:[%s208 + $0xf8] sm:$0xff]
      %v4272 = vadd.f32 %v4240, %v4241
      %v4273 = vadd.f32 %v4272, %v4242
      %v4274 = vadd.f32 %v4273, %v4243
      %v4275 = vadd.f32 %v4274, %v4244
      %v4276 = vadd.f32 %v4275, %v4245
      %v4277 = vadd.f32 %v4276, %v4246
      %v4278 = vadd.f32 %v4277, %v4247
      %v4279 = vadd.f32 %v4278, %v4248
      %v4280 = vadd.f32 %v4279, %v4249
      %v4281 = vadd.f32 %v4280, %v4250
      %v4282 = vadd.f32 %v4281, %v4251
      %v4283 = vadd.f32 %v4282, %v4252
      %v4284 = vadd.f32 %v4283, %v4253
      %v4285 = vadd.f32 %v4284, %v4254
      %v4286 = vadd.f32 %v4285, %v4255
      %v4287 = vadd.f32 %v4286, %v4256
      %v4288 = vadd.f32 %v4287, %v4257
      %v4289 = vadd.f32 %v4288, %v4258
      %v4290 = vadd.f32 %v4289, %v4259
      %v4291 = vadd.f32 %v4290, %v4260
      %v4292 = vadd.f32 %v4291, %v4261
      %v4293 = vadd.f32 %v4292, %v4262
      %v4294 = vadd.f32 %v4293, %v4263
      %v4295 = vadd.f32 %v4294, %v4264
      %v4296 = vadd.f32 %v4295, %v4265
      %v4297 = vadd.f32 %v4296, %v4266
      %v4298 = vadd.f32 %v4297, %v4267
      %v4299 = vadd.f32 %v4298, %v4268
      %v4300 = vadd.f32 %v4299, %v4269
      %v4301 = vadd.f32 %v4300, %v4270
      %v4302 = vadd.f32 %v4301, %v4271
      %v4303 = vrot.slane %v4302, 4
      %v4304 = vadd.f32 %v4302, %v4303
      %v4305 = vrot.slane %v4304, 2
      %v4306 = vadd.f32 %v4304, %v4305
      %v4307 = vrot.slane %v4306, 1
      %v4308 = vadd.f32 %v4306, %v4307
      %4309 = vst [vmem:[%s211] sm:$0x1] %v4308
      %v4310 = vmul.f32 %v4240, %v4240
      %v4311 = vmul.f32 %v4241, %v4241
      %v4312 = vmul.f32 %v4242, %v4242
      %v4313 = vmul.f32 %v4243, %v4243
      %v4314 = vmul.f32 %v4244, %v4244
      %v4315 = vmul.f32 %v4245, %v4245
      %v4316 = vmul.f32 %v4246, %v4246
      %v4317 = vmul.f32 %v4247, %v4247
      %v4318 = vmul.f32 %v4248, %v4248
      %v4319 = vmul.f32 %v4249, %v4249
      %v4320 = vmul.f32 %v4250, %v4250
      %v4321 = vmul.f32 %v4251, %v4251
      %v4322 = vmul.f32 %v4252, %v4252
      %v4323 = vmul.f32 %v4253, %v4253
      %v4324 = vmul.f32 %v4254, %v4254
      %v4325 = vmul.f32 %v4255, %v4255
      %v4326 = vmul.f32 %v4256, %v4256
      %v4327 = vmul.f32 %v4257, %v4257
      %v4328 = vmul.f32 %v4258, %v4258
      %v4329 = vmul.f32 %v4259, %v4259
      %v4330 = vmul.f32 %v4260, %v4260
      %v4331 = vmul.f32 %v4261, %v4261
      %v4332 = vmul.f32 %v4262, %v4262
      %v4333 = vmul.f32 %v4263, %v4263
      %v4334 = vmul.f32 %v4264, %v4264
      %v4335 = vmul.f32 %v4265, %v4265
      %v4336 = vmul.f32 %v4266, %v4266
      %v4337 = vmul.f32 %v4267, %v4267
      %v4338 = vmul.f32 %v4268, %v4268
      %v4339 = vmul.f32 %v4269, %v4269
      %v4340 = vmul.f32 %v4270, %v4270
      %v4341 = vmul.f32 %v4271, %v4271
      %v4342 = vadd.f32 %v4310, %v4311
      %v4343 = vadd.f32 %v4342, %v4312
      %v4344 = vadd.f32 %v4343, %v4313
      %v4345 = vadd.f32 %v4344, %v4314
      %v4346 = vadd.f32 %v4345, %v4315
      %v4347 = vadd.f32 %v4346, %v4316
      %v4348 = vadd.f32 %v4347, %v4317
      %v4349 = vadd.f32 %v4348, %v4318
      %v4350 = vadd.f32 %v4349, %v4319
      %v4351 = vadd.f32 %v4350, %v4320
      %v4352 = vadd.f32 %v4351, %v4321
      %v4353 = vadd.f32 %v4352, %v4322
      %v4354 = vadd.f32 %v4353, %v4323
      %v4355 = vadd.f32 %v4354, %v4324
      %v4356 = vadd.f32 %v4355, %v4325
      %v4357 = vadd.f32 %v4356, %v4326
      %v4358 = vadd.f32 %v4357, %v4327
      %v4359 = vadd.f32 %v4358, %v4328
      %v4360 = vadd.f32 %v4359, %v4329
      %v4361 = vadd.f32 %v4360, %v4330
      %v4362 = vadd.f32 %v4361, %v4331
      %v4363 = vadd.f32 %v4362, %v4332
      %v4364 = vadd.f32 %v4363, %v4333
      %v4365 = vadd.f32 %v4364, %v4334
      %v4366 = vadd.f32 %v4365, %v4335
      %v4367 = vadd.f32 %v4366, %v4336
      %v4368 = vadd.f32 %v4367, %v4337
      %v4369 = vadd.f32 %v4368, %v4338
      %v4370 = vadd.f32 %v4369, %v4339
      %v4371 = vadd.f32 %v4370, %v4340
      %v4372 = vadd.f32 %v4371, %v4341
      %v4373 = vrot.slane %v4372, 4
      %v4374 = vadd.f32 %v4372, %v4373
      %v4375 = vrot.slane %v4374, 2
      %v4376 = vadd.f32 %v4374, %v4375
      %v4377 = vrot.slane %v4376, 1
      %v4378 = vadd.f32 %v4376, %v4377
      %4379 = vst [vmem:[%s214] sm:$0x1] %v4378
      %p4380 = scmp.lt.s32.totalorder %s16, 1
      %s4381 = scalar_select %p4380, %s16, 1
      %s4382 = smul.addr %s4381, 32
      %s4383 = smul.addr %s4382, 8
      %s4384 = scalar_lea.vmem %s2, %s4383
      %p4385 = scmp.lt.s32.totalorder %s16, 1
      %s4386 = scalar_select %p4385, %s16, 1
      %s4387 = scalar_lea.vmem %s3, %s4386
      %p4388 = scmp.lt.s32.totalorder %s16, 1
      %s4389 = scalar_select %p4388, %s16, 1
      %s4390 = scalar_lea.vmem %s4, %s4389
      // Predicated region
      $region29: #{basic_conv2d.2} parent=27 // pred_check
        %p4391 = pneg %p81
      $region30: #{basic_conv2d.2} parent=27 // pred_check_branch
        %4393 = sbr.rel (%p4391) target = $region32
      $region31: #{basic_conv2d.2} parent=27 // pred_region
        _
      $region32: #{basic_conv2d.2} parent=27 // pred_fallthru
        _
      // Predicated region
      $region33: #{basic_conv2d.2} parent=27 // pred_check
        %p4394 = pneg %p107
      $region34: #{basic_conv2d.2} parent=27 // pred_check_branch
        %4396 = sbr.rel (%p4394) target = $region36
      $region35: #{basic_conv2d.2} parent=27 // pred_region
        _
      $region36: #{basic_conv2d.2} parent=27 // pred_fallthru
        _
      // Predicated region
      $region37: #{basic_conv2d.2} parent=27 // pred_check
        %p4397 = pneg %p133
      $region38: #{basic_conv2d.2} parent=27 // pred_check_branch
        %4399 = sbr.rel (%p4397) target = $region40
      $region39: #{basic_conv2d.2} parent=27 // pred_region
        _
      $region40: #{basic_conv2d.2} parent=27 // pred_fallthru
        _
    $region28: #{basic_conv2d.2} parent=5 // pred_fallthru
      _
    %p4400 = scmp.le.s32.totalorder 2, %s11
    // Predicated region
    $region41: #{basic_conv2d.2} parent=5 // pred_check
      %p4401 = pneg %p4400
    $region42: #{basic_conv2d.2} parent=5 // pred_check_branch
      %4403 = sbr.rel (%p4401) target = $region44
    $region43: #{basic_conv2d.2} parent=5 // pred_region
      %s4404 = ssub.s32 %s11, 2
      // Predicated region
      $region45: #{basic_conv2d.2} parent=43 // pred_check
        %p4405 = pneg %p87
      $region46: #{basic_conv2d.2} parent=43 // pred_check_branch
        %4407 = sbr.rel (%p4405) target = $region48
      $region47: #{basic_conv2d.2} parent=43 // pred_region
        %p4408 = scmp.lt.s32.totalorder %s17, 1
        %s4409 = scalar_select %p4408, %s17, 1
        %s4410 = smul.addr %s4409, 32
        %s4411 = smul.addr %s4410, 8
        %s4412 = scalar_lea.vmem %s2, %s4411
      $region48: #{basic_conv2d.2} parent=43 // pred_fallthru
        _
      // Predicated region
      $region49: #{basic_conv2d.2} parent=43 // pred_check
        %p4413 = pneg %p113
      $region50: #{basic_conv2d.2} parent=43 // pred_check_branch
        %4415 = sbr.rel (%p4413) target = $region52
      $region51: #{basic_conv2d.2} parent=43 // pred_region
        %p4416 = scmp.lt.s32.totalorder %s17, 1
        %s4417 = scalar_select %p4416, %s17, 1
        %s4418 = scalar_lea.vmem %s3, %s4417
      $region52: #{basic_conv2d.2} parent=43 // pred_fallthru
        _
      // Predicated region
      $region53: #{basic_conv2d.2} parent=43 // pred_check
        %p4419 = pneg %p139
      $region54: #{basic_conv2d.2} parent=43 // pred_check_branch
        %4421 = sbr.rel (%p4419) target = $region56
      $region55: #{basic_conv2d.2} parent=43 // pred_region
        %p4422 = scmp.lt.s32.totalorder %s17, 1
        %s4423 = scalar_select %p4422, %s17, 1
        %s4424 = scalar_lea.vmem %s4, %s4423
      $region56: #{basic_conv2d.2} parent=43 // pred_fallthru
        _
    $region44: #{basic_conv2d.2} parent=5 // pred_fallthru
      _
  $region6: #{basic_conv2d.2} parent=0 // loop_footer
    %s15 = sadd.s32 1, %s11
  $region7: #{basic_conv2d.2} parent=0 // loop_footer_branch
    %10 = sbr.rel target = $region3
  $region8: #{basic_conv2d.2} parent=0 // loop_exit
    _

</llo_original>
